<compile_context>
chip_gen: v5e
topology: v5e:2x2
jax: 0.10.0
libtpu: 0.0.40
codegen_flags: <defaults>
</compile_context>

<pallas_src>
import functools

import numpy as np

import jax
import jax.numpy as jnp
from jax.experimental import pallas as pl
from jax.experimental.pallas import tpu as pltpu

NUM_NODE = 4
MULTIPLIER = 4
C_PREV_PREV = 48
C_PREV = 48
C = 16
NUM_EDGES = sum(2 + i for i in range(NUM_NODE))          # 14
NUM_OPS = 4                                               # none/skip/avg/max
BN_EPS = 1e-5
NEG_BIG = -1e30          # finite "-inf" for max-pool borders (post-BN data << 1e30)


# ---------------------------------------------------------------------------
# Host-built constants (pure functions of the static shape).
# ---------------------------------------------------------------------------
@functools.lru_cache(maxsize=None)
def _avg_pool_matrix(h, w):
    """(H*W, H*W) matrix M such that avg_pool3x3(x) = x @ M per image,
    with count_include_pad=False denominators folded into the weights."""
    hw = h * w
    m = np.zeros((hw, hw), np.float32)
    for r in range(h):
        for cc in range(w):
            dst = r * w + cc
            r0, r1 = max(r - 1, 0), min(r + 1, h - 1)
            c0, c1 = max(cc - 1, 0), min(cc + 1, w - 1)
            inv = 1.0 / ((r1 - r0 + 1) * (c1 - c0 + 1))
            for rr in range(r0, r1 + 1):
                for c2 in range(c0, c1 + 1):
                    m[rr * w + c2, dst] = inv
    return m


@functools.lru_cache(maxsize=None)
def _lane_coords(n, h, w):
    """(2, N*H*W) f32: row 0 = global row id (img*H + r), row 1 = image id."""
    p = n * h * w
    lane = np.arange(p, dtype=np.int64)
    return np.stack([lane // w, lane // (h * w)], axis=0).astype(np.float32)


# ---------------------------------------------------------------------------
# Fused cell kernel.  Layouts (all f32, lane axis = N*H*W):
#   coord_ref : (2, P)            lane coordinates (global row id, image id)
#   x0/x1_ref : (N, C_in, H*W)    raw s0 / s1 (NCHW with H,W collapsed)
#   w0/w1_ref : (C, C_in)         transposed 1x1-conv weights
#   mavg_ref  : (H*W, H*W)        avg-pool-3x3 matrix (per image)
#   l0..l3    : (C, (2+i)*3*C)    per-node DAG LHS (arch weights folded in)
#   o_ref     : (N, 4*C, H*W)     output, NCHW with H,W collapsed
#   bank      : VMEM scratch (15*C, P): per feeder [state | BN(avg) | BN(max)]
# ---------------------------------------------------------------------------
def _darts_cell_kernel(coord_ref, x0_ref, x1_ref, w0_ref, w1_ref, mavg_ref,
                       l0_ref, l1_ref, l2_ref, l3_ref, o_ref, bank,
                       *, n, h, w, c):
    hw = h * w
    p = n * hw
    f32 = jnp.float32
    inv_p = 1.0 / p

    # ---- separable max-pool border biases (computed once, 4 small rolls) ----
    # The validity of each lane shift is derived by rolling the coordinate rows
    # with the SAME pltpu.roll call used on the data, so it is exact regardless
    # of the rotation direction convention.
    coords = coord_ref[...]                       # (2, P) f32 (small integers)
    rowg = coords[0:1, :]
    img = coords[1:2, :]

    def neg_bias(shift, vertical):
        rc = pltpu.roll(coords, shift, axis=1)
        if vertical:
            d = rc[0:1, :] - rowg
            valid = (rc[1:2, :] == img) & ((d == 1.0) | (d == -1.0))
        else:
            valid = rc[0:1, :] == rowg
        return jnp.where(valid, f32(0.0), f32(NEG_BIG))   # (1, P)

    h_taps = [(s, neg_bias(s, False)) for s in (1, p - 1)]      # cols +-1
    v_taps = [(s, neg_bias(s, True)) for s in (w, p - w)]       # rows +-1

    def max3x3(x):                               # (rows, P) -> (rows, P)
        hm = x                                   # center column always valid
        for s, nb in h_taps:
            hm = jnp.maximum(hm, pltpu.roll(x, s, axis=1) + nb)
        mx = hm                                  # center row always valid
        for s, nb in v_taps:
            mx = jnp.maximum(mx, pltpu.roll(hm, s, axis=1) + nb)
        return mx

    def avg3x3(x):                               # (rows, P) -> (rows, P), MXU
        parts = [jnp.dot(x[:, t * hw:(t + 1) * hw], mavg_ref[...],
                         preferred_element_type=f32) for t in range(n)]
        return parts[0] if n == 1 else jnp.concatenate(parts, axis=1)

    def batch_norm(x):
        # BatchNorm2d(affine=False), training mode; one-pass per-channel stats
        # (channel == row in this layout), biased variance.
        s1 = jnp.sum(x, axis=1, keepdims=True)
        s2 = jnp.sum(x * x, axis=1, keepdims=True)
        mean = s1 * inv_p
        var = jnp.maximum(s2 * inv_p - mean * mean, 0.0)
        return (x - mean) * jax.lax.rsqrt(var + BN_EPS)

    def pool_bn(x):                              # -> (BN(avg), BN(max))
        rows = x.shape[0]
        bn = batch_norm(jnp.concatenate([avg3x3(x), max3x3(x)], axis=0))
        return bn[:rows, :], bn[rows:, :]

    # ---- preprocess0/1: ReLU -> 1x1 conv (MXU, per image) -> BN -------------
    y_parts = []
    for t in range(n):
        y0 = jnp.dot(w0_ref[...], jnp.maximum(x0_ref[t], 0.0),
                     preferred_element_type=f32)                 # (c, hw)
        y1 = jnp.dot(w1_ref[...], jnp.maximum(x1_ref[t], 0.0),
                     preferred_element_type=f32)                 # (c, hw)
        y_parts.append(jnp.concatenate([y0, y1], axis=0))        # (2c, hw)
    y = batch_norm(y_parts[0] if n == 1 else jnp.concatenate(y_parts, axis=1))

    # Feeders 0 and 1 (batched pooling over both preprocessed states).
    a_bn, m_bn = pool_bn(y)
    bank[0 * c:1 * c, :] = y[:c, :]
    bank[1 * c:2 * c, :] = a_bn[:c, :]
    bank[2 * c:3 * c, :] = m_bn[:c, :]
    bank[3 * c:4 * c, :] = y[c:2 * c, :]
    bank[4 * c:5 * c, :] = a_bn[c:2 * c, :]
    bank[5 * c:6 * c, :] = m_bn[c:2 * c, :]

    # ---- DAG: node_i = L_i @ bank[:K_i]  (14 weighted edge sums on the MXU) -
    l_refs = (l0_ref, l1_ref, l2_ref, l3_ref)
    for i in range(NUM_NODE):
        k = (2 + i) * 3 * c
        s = jnp.dot(l_refs[i][...], bank[0:k, :],
                    preferred_element_type=f32)                  # (c, P)
        for t in range(n):                       # NCHW output, lane-dense
            o_ref[t, i * c:(i + 1) * c, :] = s[:, t * hw:(t + 1) * hw]
        if i < NUM_NODE - 1:                     # this node feeds later nodes
            f = 2 + i
            a_bn, m_bn = pool_bn(s)
            bank[(3 * f + 0) * c:(3 * f + 1) * c, :] = s
            bank[(3 * f + 1) * c:(3 * f + 2) * c, :] = a_bn
            bank[(3 * f + 2) * c:(3 * f + 3) * c, :] = m_bn


# ---------------------------------------------------------------------------
# DartsCell.forward wrapper (PyTorch-compatible NCHW interface)
# ---------------------------------------------------------------------------
@jax.jit
def darts_cell_forward(s0_nchw, s1_nchw, weights, prep0_w, prep1_w):
    n, c0, h, w = s0_nchw.shape
    c1 = s1_nchw.shape[1]
    hw = h * w
    p = n * hw

    # Only free reshapes here (no transposes, no concats of big tensors).
    x0 = s0_nchw.astype(jnp.float32).reshape(n, c0, hw)
    x1 = s1_nchw.astype(jnp.float32).reshape(n, c1, hw)
    w0t = prep0_w.astype(jnp.float32).T                         # (C, C0)
    w1t = prep1_w.astype(jnp.float32).T                         # (C, C1)

    # Host-built constants (baked into the executable).
    m_avg = _avg_pool_matrix(h, w)                              # (hw, hw)
    coords = _lane_coords(n, h, w)                              # (2, p)

    # Per-node DAG LHS: scalar-diagonal blocks from the arch weights, with the
    # reference's / len(states) factor folded in.  Op order per feeder block:
    # [skip_connect (identity), avg_pool_3x3+BN, max_pool_3x3+BN]; 'none' -> 0.
    eye_c = jnp.eye(C, dtype=jnp.float32)
    wts = weights.astype(jnp.float32)
    l_mats = []
    off = 0
    for i in range(NUM_NODE):
        wk = wts[off:off + 2 + i, 1:NUM_OPS].reshape(1, -1)     # (1, 3*(2+i))
        l_mats.append(jnp.kron(wk, eye_c) / (2.0 + i))          # (C, (2+i)*3*C)
        off += 2 + i

    kernel = functools.partial(_darts_cell_kernel, n=n, h=h, w=w, c=C)
    num_inputs = 6 + NUM_NODE
    out = pl.pallas_call(
        kernel,
        out_shape=jax.ShapeDtypeStruct((n, MULTIPLIER * C, hw), jnp.float32),
        in_specs=[pl.BlockSpec(memory_space=pltpu.MemorySpace.VMEM)
                  for _ in range(num_inputs)],
        out_specs=pl.BlockSpec(memory_space=pltpu.MemorySpace.VMEM),
        scratch_shapes=[pltpu.VMEM(((2 + NUM_NODE - 1) * 3 * C, p),
                                   jnp.float32)],                # feeder bank
    )(coords, x0, x1, w0t, w1t, m_avg, *l_mats)

    # (N, 4C, H*W) -> (N, 4C, H, W): free reshape.
    return out.reshape(n, MULTIPLIER * C, h, w)


# ---------------------------------------------------------------------------
# Driver
# ---------------------------------------------------------------------------
if __name__ == "__main__":
    key = jax.random.PRNGKey(0)
    k0, k1, kw, kp0, kp1 = jax.random.split(key, 5)

    N, H, W = 2, 16, 16
    s0 = jax.random.normal(k0, (N, C_PREV_PREV, H, W), dtype=jnp.float32)
    s1 = jax.random.normal(k1, (N, C_PREV, H, W), dtype=jnp.float32)

    # Architecture weights [14, 4] (softmax over ops, as in DARTS search).
    weights = jax.nn.softmax(
        jax.random.normal(kw, (NUM_EDGES, NUM_OPS), dtype=jnp.float32), axis=-1)

    # Deterministic 1x1-conv weights for the two preprocess layers.
    # torch Conv2d weight is (Cout, Cin, 1, 1); here stored as (Cin, Cout).
    prep0_w = 0.1 * jax.random.normal(kp0, (C_PREV_PREV, C), dtype=jnp.float32)
    prep1_w = 0.1 * jax.random.normal(kp1, (C_PREV, C), dtype=jnp.float32)

    out = darts_cell_forward(s0, s1, weights, prep0_w, prep1_w)
    out = jax.block_until_ready(out)

    assert out.shape == (N, MULTIPLIER * C, H, W), out.shape
    assert bool(jnp.all(jnp.isfinite(out)))
    print("KERNEL_OK")
</pallas_src>

<mosaic_0001>
module attributes {stable_mosaic.version = 11 : i64} {
  func.func @_darts_cell_kernel(%arg0: memref<2x512xf32, #tpu.memory_space<vmem>>, %arg1: memref<2x48x256xf32, #tpu.memory_space<vmem>>, %arg2: memref<2x48x256xf32, #tpu.memory_space<vmem>>, %arg3: memref<16x48xf32, #tpu.memory_space<vmem>>, %arg4: memref<16x48xf32, #tpu.memory_space<vmem>>, %arg5: memref<256x256xf32, #tpu.memory_space<vmem>>, %arg6: memref<16x96xf32, #tpu.memory_space<vmem>>, %arg7: memref<16x144xf32, #tpu.memory_space<vmem>>, %arg8: memref<16x192xf32, #tpu.memory_space<vmem>>, %arg9: memref<16x240xf32, #tpu.memory_space<vmem>>, %arg10: memref<2x64x256xf32, #tpu.memory_space<vmem>>, %arg11: memref<240x512xf32, #tpu.memory_space<vmem>>) attributes {dimension_semantics = [], scalar_prefetch = 0 : i64, scratch_operands = 1 : i64, tpu.core_type = #tpu.core_type<tc>} {
    %c0 = arith.constant 0 : index
    %c0_0 = arith.constant 0 : index
    %0 = vector.load %arg0[%c0, %c0_0] : memref<2x512xf32, #tpu.memory_space<vmem>>, vector<2x512xf32>
    %1 = vector.extract_strided_slice %0 {offsets = [0, 0], sizes = [1, 512], strides = [1, 1]} : vector<2x512xf32> to vector<1x512xf32>
    %2 = vector.extract_strided_slice %0 {offsets = [1, 0], sizes = [1, 512], strides = [1, 1]} : vector<2x512xf32> to vector<1x512xf32>
    %c1_i32 = arith.constant 1 : i32
    %3 = tpu.dynamic_rotate %0 by %c1_i32 dim 1 : vector<2x512xf32>, i32 -> vector<2x512xf32>
    %4 = vector.extract_strided_slice %3 {offsets = [0, 0], sizes = [1, 512], strides = [1, 1]} : vector<2x512xf32> to vector<1x512xf32>
    %5 = arith.cmpf oeq, %4, %1 : vector<1x512xf32>
    %cst = arith.constant 0.000000e+00 : f32
    %cst_1 = arith.constant -1.000000e+30 : f32
    %6 = vector.broadcast %cst : f32 to vector<1x512xf32>
    %7 = vector.broadcast %cst_1 : f32 to vector<1x512xf32>
    %8 = arith.select %5, %6, %7 : vector<1x512xi1>, vector<1x512xf32>
    %c511_i32 = arith.constant 511 : i32
    %9 = tpu.dynamic_rotate %0 by %c511_i32 dim 1 : vector<2x512xf32>, i32 -> vector<2x512xf32>
    %10 = vector.extract_strided_slice %9 {offsets = [0, 0], sizes = [1, 512], strides = [1, 1]} : vector<2x512xf32> to vector<1x512xf32>
    %11 = arith.cmpf oeq, %10, %1 : vector<1x512xf32>
    %cst_2 = arith.constant 0.000000e+00 : f32
    %cst_3 = arith.constant -1.000000e+30 : f32
    %12 = vector.broadcast %cst_2 : f32 to vector<1x512xf32>
    %13 = vector.broadcast %cst_3 : f32 to vector<1x512xf32>
    %14 = arith.select %11, %12, %13 : vector<1x512xi1>, vector<1x512xf32>
    %c16_i32 = arith.constant 16 : i32
    %15 = tpu.dynamic_rotate %0 by %c16_i32 dim 1 : vector<2x512xf32>, i32 -> vector<2x512xf32>
    %16 = vector.extract_strided_slice %15 {offsets = [0, 0], sizes = [1, 512], strides = [1, 1]} : vector<2x512xf32> to vector<1x512xf32>
    %17 = arith.subf %16, %1 : vector<1x512xf32>
    %18 = vector.extract_strided_slice %15 {offsets = [1, 0], sizes = [1, 512], strides = [1, 1]} : vector<2x512xf32> to vector<1x512xf32>
    %19 = arith.cmpf oeq, %18, %2 : vector<1x512xf32>
    %cst_4 = arith.constant 1.000000e+00 : f32
    %20 = vector.broadcast %cst_4 : f32 to vector<1x512xf32>
    %21 = arith.cmpf oeq, %17, %20 : vector<1x512xf32>
    %cst_5 = arith.constant -1.000000e+00 : f32
    %22 = vector.broadcast %cst_5 : f32 to vector<1x512xf32>
    %23 = arith.cmpf oeq, %17, %22 : vector<1x512xf32>
    %24 = arith.ori %21, %23 : vector<1x512xi1>
    %25 = arith.andi %19, %24 : vector<1x512xi1>
    %cst_6 = arith.constant 0.000000e+00 : f32
    %cst_7 = arith.constant -1.000000e+30 : f32
    %26 = vector.broadcast %cst_6 : f32 to vector<1x512xf32>
    %27 = vector.broadcast %cst_7 : f32 to vector<1x512xf32>
    %28 = arith.select %25, %26, %27 : vector<1x512xi1>, vector<1x512xf32>
    %c496_i32 = arith.constant 496 : i32
    %29 = tpu.dynamic_rotate %0 by %c496_i32 dim 1 : vector<2x512xf32>, i32 -> vector<2x512xf32>
    %30 = vector.extract_strided_slice %29 {offsets = [0, 0], sizes = [1, 512], strides = [1, 1]} : vector<2x512xf32> to vector<1x512xf32>
    %31 = arith.subf %30, %1 : vector<1x512xf32>
    %32 = vector.extract_strided_slice %29 {offsets = [1, 0], sizes = [1, 512], strides = [1, 1]} : vector<2x512xf32> to vector<1x512xf32>
    %33 = arith.cmpf oeq, %32, %2 : vector<1x512xf32>
    %cst_8 = arith.constant 1.000000e+00 : f32
    %34 = vector.broadcast %cst_8 : f32 to vector<1x512xf32>
    %35 = arith.cmpf oeq, %31, %34 : vector<1x512xf32>
    %cst_9 = arith.constant -1.000000e+00 : f32
    %36 = vector.broadcast %cst_9 : f32 to vector<1x512xf32>
    %37 = arith.cmpf oeq, %31, %36 : vector<1x512xf32>
    %38 = arith.ori %35, %37 : vector<1x512xi1>
    %39 = arith.andi %33, %38 : vector<1x512xi1>
    %cst_10 = arith.constant 0.000000e+00 : f32
    %cst_11 = arith.constant -1.000000e+30 : f32
    %40 = vector.broadcast %cst_10 : f32 to vector<1x512xf32>
    %41 = vector.broadcast %cst_11 : f32 to vector<1x512xf32>
    %42 = arith.select %39, %40, %41 : vector<1x512xi1>, vector<1x512xf32>
    %c0_12 = arith.constant 0 : index
    %c0_13 = arith.constant 0 : index
    %43 = vector.load %arg3[%c0_12, %c0_13] : memref<16x48xf32, #tpu.memory_space<vmem>>, vector<16x48xf32>
    %c0_14 = arith.constant 0 : index
    %c0_15 = arith.constant 0 : index
    %c0_16 = arith.constant 0 : index
    %44 = vector.load %arg1[%c0_14, %c0_15, %c0_16] : memref<2x48x256xf32, #tpu.memory_space<vmem>>, vector<1x48x256xf32>
    %45 = vector.shape_cast %44 : vector<1x48x256xf32> to vector<48x256xf32>
    %cst_17 = arith.constant 0.000000e+00 : f32
    %46 = vector.broadcast %cst_17 : f32 to vector<48x256xf32>
    %47 = arith.maximumf %45, %46 : vector<48x256xf32>
    %cst_18 = arith.constant dense<0.000000e+00> : vector<16x256xf32>
    %48 = tpu.matmul %43, %47, %cst_18 {dimension_numbers = #tpu.dot_dimension_numbers<[1], [0], [0], [1], [0, 0, 1, 1], [], []>} : vector<16x48xf32>, vector<48x256xf32>, vector<16x256xf32> -> vector<16x256xf32>
    %c0_19 = arith.constant 0 : index
    %c0_20 = arith.constant 0 : index
    %49 = vector.load %arg4[%c0_19, %c0_20] : memref<16x48xf32, #tpu.memory_space<vmem>>, vector<16x48xf32>
    %c0_21 = arith.constant 0 : index
    %c0_22 = arith.constant 0 : index
    %c0_23 = arith.constant 0 : index
    %50 = vector.load %arg2[%c0_21, %c0_22, %c0_23] : memref<2x48x256xf32, #tpu.memory_space<vmem>>, vector<1x48x256xf32>
    %51 = vector.shape_cast %50 : vector<1x48x256xf32> to vector<48x256xf32>
    %cst_24 = arith.constant 0.000000e+00 : f32
    %52 = vector.broadcast %cst_24 : f32 to vector<48x256xf32>
    %53 = arith.maximumf %51, %52 : vector<48x256xf32>
    %cst_25 = arith.constant dense<0.000000e+00> : vector<16x256xf32>
    %54 = tpu.matmul %49, %53, %cst_25 {dimension_numbers = #tpu.dot_dimension_numbers<[1], [0], [0], [1], [0, 0, 1, 1], [], []>} : vector<16x48xf32>, vector<48x256xf32>, vector<16x256xf32> -> vector<16x256xf32>
    %55 = tpu.concatenate %48, %54 in 0 : vector<16x256xf32>, vector<16x256xf32> -> vector<32x256xf32>
    %c0_26 = arith.constant 0 : index
    %c0_27 = arith.constant 0 : index
    %56 = vector.load %arg3[%c0_26, %c0_27] : memref<16x48xf32, #tpu.memory_space<vmem>>, vector<16x48xf32>
    %c1 = arith.constant 1 : index
    %c0_28 = arith.constant 0 : index
    %c0_29 = arith.constant 0 : index
    %57 = vector.load %arg1[%c1, %c0_28, %c0_29] : memref<2x48x256xf32, #tpu.memory_space<vmem>>, vector<1x48x256xf32>
    %58 = vector.shape_cast %57 : vector<1x48x256xf32> to vector<48x256xf32>
    %cst_30 = arith.constant 0.000000e+00 : f32
    %59 = vector.broadcast %cst_30 : f32 to vector<48x256xf32>
    %60 = arith.maximumf %58, %59 : vector<48x256xf32>
    %cst_31 = arith.constant dense<0.000000e+00> : vector<16x256xf32>
    %61 = tpu.matmul %56, %60, %cst_31 {dimension_numbers = #tpu.dot_dimension_numbers<[1], [0], [0], [1], [0, 0, 1, 1], [], []>} : vector<16x48xf32>, vector<48x256xf32>, vector<16x256xf32> -> vector<16x256xf32>
    %c0_32 = arith.constant 0 : index
    %c0_33 = arith.constant 0 : index
    %62 = vector.load %arg4[%c0_32, %c0_33] : memref<16x48xf32, #tpu.memory_space<vmem>>, vector<16x48xf32>
    %c1_34 = arith.constant 1 : index
    %c0_35 = arith.constant 0 : index
    %c0_36 = arith.constant 0 : index
    %63 = vector.load %arg2[%c1_34, %c0_35, %c0_36] : memref<2x48x256xf32, #tpu.memory_space<vmem>>, vector<1x48x256xf32>
    %64 = vector.shape_cast %63 : vector<1x48x256xf32> to vector<48x256xf32>
    %cst_37 = arith.constant 0.000000e+00 : f32
    %65 = vector.broadcast %cst_37 : f32 to vector<48x256xf32>
    %66 = arith.maximumf %64, %65 : vector<48x256xf32>
    %cst_38 = arith.constant dense<0.000000e+00> : vector<16x256xf32>
    %67 = tpu.matmul %62, %66, %cst_38 {dimension_numbers = #tpu.dot_dimension_numbers<[1], [0], [0], [1], [0, 0, 1, 1], [], []>} : vector<16x48xf32>, vector<48x256xf32>, vector<16x256xf32> -> vector<16x256xf32>
    %68 = tpu.concatenate %61, %67 in 0 : vector<16x256xf32>, vector<16x256xf32> -> vector<32x256xf32>
    %69 = tpu.concatenate %55, %68 in 1 : vector<32x256xf32>, vector<32x256xf32> -> vector<32x512xf32>
    %cst_39 = arith.constant dense<0.000000e+00> : vector<32xf32>
    %70 = vector.multi_reduction <add>, %69, %cst_39 [1] : vector<32x512xf32> to vector<32xf32>
    %71 = vector.shape_cast %70 : vector<32xf32> to vector<32x1xf32>
    %72 = arith.mulf %69, %69 : vector<32x512xf32>
    %cst_40 = arith.constant dense<0.000000e+00> : vector<32xf32>
    %73 = vector.multi_reduction <add>, %72, %cst_40 [1] : vector<32x512xf32> to vector<32xf32>
    %74 = vector.shape_cast %73 : vector<32xf32> to vector<32x1xf32>
    %cst_41 = arith.constant 0.001953125 : f32
    %75 = vector.broadcast %cst_41 : f32 to vector<32x1xf32>
    %76 = arith.mulf %71, %75 : vector<32x1xf32>
    %cst_42 = arith.constant 0.001953125 : f32
    %77 = vector.broadcast %cst_42 : f32 to vector<32x1xf32>
    %78 = arith.mulf %74, %77 : vector<32x1xf32>
    %79 = arith.mulf %76, %76 : vector<32x1xf32>
    %80 = arith.subf %78, %79 : vector<32x1xf32>
    %cst_43 = arith.constant 0.000000e+00 : f32
    %81 = vector.broadcast %cst_43 : f32 to vector<32x1xf32>
    %82 = arith.maximumf %80, %81 : vector<32x1xf32>
    %83 = vector.broadcast %76 : vector<32x1xf32> to vector<32x512xf32>
    %84 = arith.subf %69, %83 : vector<32x512xf32>
    %cst_44 = arith.constant 9.99999974E-6 : f32
    %85 = vector.broadcast %cst_44 : f32 to vector<32x1xf32>
    %86 = arith.addf %82, %85 : vector<32x1xf32>
    %87 = math.rsqrt %86 : vector<32x1xf32>
    %88 = vector.broadcast %87 : vector<32x1xf32> to vector<32x512xf32>
    %89 = arith.mulf %84, %88 : vector<32x512xf32>
    %90 = vector.extract_strided_slice %89 {offsets = [0, 0], sizes = [32, 256], strides = [1, 1]} : vector<32x512xf32> to vector<32x256xf32>
    %c0_45 = arith.constant 0 : index
    %c0_46 = arith.constant 0 : index
    %91 = vector.load %arg5[%c0_45, %c0_46] : memref<256x256xf32, #tpu.memory_space<vmem>>, vector<256x256xf32>
    %cst_47 = arith.constant dense<0.000000e+00> : vector<32x256xf32>
    %92 = tpu.matmul %90, %91, %cst_47 {dimension_numbers = #tpu.dot_dimension_numbers<[1], [0], [0], [1], [0, 0, 1, 1], [], []>} : vector<32x256xf32>, vector<256x256xf32>, vector<32x256xf32> -> vector<32x256xf32>
    %93 = vector.extract_strided_slice %89 {offsets = [0, 256], sizes = [32, 256], strides = [1, 1]} : vector<32x512xf32> to vector<32x256xf32>
    %c0_48 = arith.constant 0 : index
    %c0_49 = arith.constant 0 : index
    %94 = vector.load %arg5[%c0_48, %c0_49] : memref<256x256xf32, #tpu.memory_space<vmem>>, vector<256x256xf32>
    %cst_50 = arith.constant dense<0.000000e+00> : vector<32x256xf32>
    %95 = tpu.matmul %93, %94, %cst_50 {dimension_numbers = #tpu.dot_dimension_numbers<[1], [0], [0], [1], [0, 0, 1, 1], [], []>} : vector<32x256xf32>, vector<256x256xf32>, vector<32x256xf32> -> vector<32x256xf32>
    %96 = tpu.concatenate %92, %95 in 1 : vector<32x256xf32>, vector<32x256xf32> -> vector<32x512xf32>
    %c1_i32_51 = arith.constant 1 : i32
    %97 = tpu.dynamic_rotate %89 by %c1_i32_51 dim 1 : vector<32x512xf32>, i32 -> vector<32x512xf32>
    %98 = vector.broadcast %8 : vector<1x512xf32> to vector<32x512xf32>
    %99 = arith.addf %97, %98 : vector<32x512xf32>
    %100 = arith.maximumf %89, %99 : vector<32x512xf32>
    %c511_i32_52 = arith.constant 511 : i32
    %101 = tpu.dynamic_rotate %89 by %c511_i32_52 dim 1 : vector<32x512xf32>, i32 -> vector<32x512xf32>
    %102 = vector.broadcast %14 : vector<1x512xf32> to vector<32x512xf32>
    %103 = arith.addf %101, %102 : vector<32x512xf32>
    %104 = arith.maximumf %100, %103 : vector<32x512xf32>
    %c16_i32_53 = arith.constant 16 : i32
    %105 = tpu.dynamic_rotate %104 by %c16_i32_53 dim 1 : vector<32x512xf32>, i32 -> vector<32x512xf32>
    %106 = vector.broadcast %28 : vector<1x512xf32> to vector<32x512xf32>
    %107 = arith.addf %105, %106 : vector<32x512xf32>
    %108 = arith.maximumf %104, %107 : vector<32x512xf32>
    %c496_i32_54 = arith.constant 496 : i32
    %109 = tpu.dynamic_rotate %104 by %c496_i32_54 dim 1 : vector<32x512xf32>, i32 -> vector<32x512xf32>
    %110 = vector.broadcast %42 : vector<1x512xf32> to vector<32x512xf32>
    %111 = arith.addf %109, %110 : vector<32x512xf32>
    %112 = arith.maximumf %108, %111 : vector<32x512xf32>
    %113 = tpu.concatenate %96, %112 in 0 : vector<32x512xf32>, vector<32x512xf32> -> vector<64x512xf32>
    %cst_55 = arith.constant dense<0.000000e+00> : vector<64xf32>
    %114 = vector.multi_reduction <add>, %113, %cst_55 [1] : vector<64x512xf32> to vector<64xf32>
    %115 = vector.shape_cast %114 : vector<64xf32> to vector<64x1xf32>
    %116 = arith.mulf %113, %113 : vector<64x512xf32>
    %cst_56 = arith.constant dense<0.000000e+00> : vector<64xf32>
    %117 = vector.multi_reduction <add>, %116, %cst_56 [1] : vector<64x512xf32> to vector<64xf32>
    %118 = vector.shape_cast %117 : vector<64xf32> to vector<64x1xf32>
    %cst_57 = arith.constant 0.001953125 : f32
    %119 = vector.broadcast %cst_57 : f32 to vector<64x1xf32>
    %120 = arith.mulf %115, %119 : vector<64x1xf32>
    %cst_58 = arith.constant 0.001953125 : f32
    %121 = vector.broadcast %cst_58 : f32 to vector<64x1xf32>
    %122 = arith.mulf %118, %121 : vector<64x1xf32>
    %123 = arith.mulf %120, %120 : vector<64x1xf32>
    %124 = arith.subf %122, %123 : vector<64x1xf32>
    %cst_59 = arith.constant 0.000000e+00 : f32
    %125 = vector.broadcast %cst_59 : f32 to vector<64x1xf32>
    %126 = arith.maximumf %124, %125 : vector<64x1xf32>
    %127 = vector.broadcast %120 : vector<64x1xf32> to vector<64x512xf32>
    %128 = arith.subf %113, %127 : vector<64x512xf32>
    %cst_60 = arith.constant 9.99999974E-6 : f32
    %129 = vector.broadcast %cst_60 : f32 to vector<64x1xf32>
    %130 = arith.addf %126, %129 : vector<64x1xf32>
    %131 = math.rsqrt %130 : vector<64x1xf32>
    %132 = vector.broadcast %131 : vector<64x1xf32> to vector<64x512xf32>
    %133 = arith.mulf %128, %132 : vector<64x512xf32>
    %134 = vector.extract_strided_slice %133 {offsets = [0, 0], sizes = [32, 512], strides = [1, 1]} : vector<64x512xf32> to vector<32x512xf32>
    %135 = vector.extract_strided_slice %133 {offsets = [32, 0], sizes = [32, 512], strides = [1, 1]} : vector<64x512xf32> to vector<32x512xf32>
    %136 = vector.extract_strided_slice %89 {offsets = [0, 0], sizes = [16, 512], strides = [1, 1]} : vector<32x512xf32> to vector<16x512xf32>
    %c0_61 = arith.constant 0 : index
    %c0_62 = arith.constant 0 : index
    %137 = vector.load %arg11[%c0_61, %c0_62] : memref<240x512xf32, #tpu.memory_space<vmem>>, vector<16x512xf32>
    tpu.vector_store %arg11[%c0_61, %c0_62], %136 {strides = array<i32>} : memref<240x512xf32, #tpu.memory_space<vmem>>, vector<16x512xf32>,
    %138 = vector.extract_strided_slice %134 {offsets = [0, 0], sizes = [16, 512], strides = [1, 1]} : vector<32x512xf32> to vector<16x512xf32>
    %c16 = arith.constant 16 : index
    %c0_63 = arith.constant 0 : index
    %139 = vector.load %arg11[%c16, %c0_63] : memref<240x512xf32, #tpu.memory_space<vmem>>, vector<16x512xf32>
    tpu.vector_store %arg11[%c16, %c0_63], %138 {strides = array<i32>} : memref<240x512xf32, #tpu.memory_space<vmem>>, vector<16x512xf32>,
    %140 = vector.extract_strided_slice %135 {offsets = [0, 0], sizes = [16, 512], strides = [1, 1]} : vector<32x512xf32> to vector<16x512xf32>
    %c32 = arith.constant 32 : index
    %c0_64 = arith.constant 0 : index
    %141 = vector.load %arg11[%c32, %c0_64] : memref<240x512xf32, #tpu.memory_space<vmem>>, vector<16x512xf32>
    tpu.vector_store %arg11[%c32, %c0_64], %140 {strides = array<i32>} : memref<240x512xf32, #tpu.memory_space<vmem>>, vector<16x512xf32>,
    %142 = vector.extract_strided_slice %89 {offsets = [16, 0], sizes = [16, 512], strides = [1, 1]} : vector<32x512xf32> to vector<16x512xf32>
    %c48 = arith.constant 48 : index
    %c0_65 = arith.constant 0 : index
    %143 = vector.load %arg11[%c48, %c0_65] : memref<240x512xf32, #tpu.memory_space<vmem>>, vector<16x512xf32>
    tpu.vector_store %arg11[%c48, %c0_65], %142 {strides = array<i32>} : memref<240x512xf32, #tpu.memory_space<vmem>>, vector<16x512xf32>,
    %144 = vector.extract_strided_slice %134 {offsets = [16, 0], sizes = [16, 512], strides = [1, 1]} : vector<32x512xf32> to vector<16x512xf32>
    %c64 = arith.constant 64 : index
    %c0_66 = arith.constant 0 : index
    %145 = vector.load %arg11[%c64, %c0_66] : memref<240x512xf32, #tpu.memory_space<vmem>>, vector<16x512xf32>
    tpu.vector_store %arg11[%c64, %c0_66], %144 {strides = array<i32>} : memref<240x512xf32, #tpu.memory_space<vmem>>, vector<16x512xf32>,
    %146 = vector.extract_strided_slice %135 {offsets = [16, 0], sizes = [16, 512], strides = [1, 1]} : vector<32x512xf32> to vector<16x512xf32>
    %c80 = arith.constant 80 : index
    %c0_67 = arith.constant 0 : index
    %147 = vector.load %arg11[%c80, %c0_67] : memref<240x512xf32, #tpu.memory_space<vmem>>, vector<16x512xf32>
    tpu.vector_store %arg11[%c80, %c0_67], %146 {strides = array<i32>} : memref<240x512xf32, #tpu.memory_space<vmem>>, vector<16x512xf32>,
    %c0_68 = arith.constant 0 : index
    %c0_69 = arith.constant 0 : index
    %148 = vector.load %arg6[%c0_68, %c0_69] : memref<16x96xf32, #tpu.memory_space<vmem>>, vector<16x96xf32>
    %c0_70 = arith.constant 0 : index
    %c0_71 = arith.constant 0 : index
    %149 = vector.load %arg11[%c0_70, %c0_71] : memref<240x512xf32, #tpu.memory_space<vmem>>, vector<96x512xf32>
    %cst_72 = arith.constant dense<0.000000e+00> : vector<16x512xf32>
    %150 = tpu.matmul %148, %149, %cst_72 {dimension_numbers = #tpu.dot_dimension_numbers<[1], [0], [0], [1], [0, 0, 1, 1], [], []>} : vector<16x96xf32>, vector<96x512xf32>, vector<16x512xf32> -> vector<16x512xf32>
    %151 = vector.extract_strided_slice %150 {offsets = [0, 0], sizes = [16, 256], strides = [1, 1]} : vector<16x512xf32> to vector<16x256xf32>
    %c0_73 = arith.constant 0 : index
    %c0_74 = arith.constant 0 : index
    %c0_75 = arith.constant 0 : index
    %152 = vector.load %arg10[%c0_73, %c0_74, %c0_75] : memref<2x64x256xf32, #tpu.memory_space<vmem>>, vector<1x16x256xf32>
    %153 = vector.shape_cast %152 : vector<1x16x256xf32> to vector<16x256xf32>
    %154 = vector.shape_cast %151 : vector<16x256xf32> to vector<1x16x256xf32>
    tpu.vector_store %arg10[%c0_73, %c0_74, %c0_75], %154 {strides = array<i32>} : memref<2x64x256xf32, #tpu.memory_space<vmem>>, vector<1x16x256xf32>,
    %155 = vector.extract_strided_slice %150 {offsets = [0, 256], sizes = [16, 256], strides = [1, 1]} : vector<16x512xf32> to vector<16x256xf32>
    %c1_76 = arith.constant 1 : index
    %c0_77 = arith.constant 0 : index
    %c0_78 = arith.constant 0 : index
    %156 = vector.load %arg10[%c1_76, %c0_77, %c0_78] : memref<2x64x256xf32, #tpu.memory_space<vmem>>, vector<1x16x256xf32>
    %157 = vector.shape_cast %156 : vector<1x16x256xf32> to vector<16x256xf32>
    %158 = vector.shape_cast %155 : vector<16x256xf32> to vector<1x16x256xf32>
    tpu.vector_store %arg10[%c1_76, %c0_77, %c0_78], %158 {strides = array<i32>} : memref<2x64x256xf32, #tpu.memory_space<vmem>>, vector<1x16x256xf32>,
    %159 = vector.extract_strided_slice %150 {offsets = [0, 0], sizes = [16, 256], strides = [1, 1]} : vector<16x512xf32> to vector<16x256xf32>
    %c0_79 = arith.constant 0 : index
    %c0_80 = arith.constant 0 : index
    %160 = vector.load %arg5[%c0_79, %c0_80] : memref<256x256xf32, #tpu.memory_space<vmem>>, vector<256x256xf32>
    %cst_81 = arith.constant dense<0.000000e+00> : vector<16x256xf32>
    %161 = tpu.matmul %159, %160, %cst_81 {dimension_numbers = #tpu.dot_dimension_numbers<[1], [0], [0], [1], [0, 0, 1, 1], [], []>} : vector<16x256xf32>, vector<256x256xf32>, vector<16x256xf32> -> vector<16x256xf32>
    %162 = vector.extract_strided_slice %150 {offsets = [0, 256], sizes = [16, 256], strides = [1, 1]} : vector<16x512xf32> to vector<16x256xf32>
    %c0_82 = arith.constant 0 : index
    %c0_83 = arith.constant 0 : index
    %163 = vector.load %arg5[%c0_82, %c0_83] : memref<256x256xf32, #tpu.memory_space<vmem>>, vector<256x256xf32>
    %cst_84 = arith.constant dense<0.000000e+00> : vector<16x256xf32>
    %164 = tpu.matmul %162, %163, %cst_84 {dimension_numbers = #tpu.dot_dimension_numbers<[1], [0], [0], [1], [0, 0, 1, 1], [], []>} : vector<16x256xf32>, vector<256x256xf32>, vector<16x256xf32> -> vector<16x256xf32>
    %165 = tpu.concatenate %161, %164 in 1 : vector<16x256xf32>, vector<16x256xf32> -> vector<16x512xf32>
    %c1_i32_85 = arith.constant 1 : i32
    %166 = tpu.dynamic_rotate %150 by %c1_i32_85 dim 1 : vector<16x512xf32>, i32 -> vector<16x512xf32>
    %167 = vector.broadcast %8 : vector<1x512xf32> to vector<16x512xf32>
    %168 = arith.addf %166, %167 : vector<16x512xf32>
    %169 = arith.maximumf %150, %168 : vector<16x512xf32>
    %c511_i32_86 = arith.constant 511 : i32
    %170 = tpu.dynamic_rotate %150 by %c511_i32_86 dim 1 : vector<16x512xf32>, i32 -> vector<16x512xf32>
    %171 = vector.broadcast %14 : vector<1x512xf32> to vector<16x512xf32>
    %172 = arith.addf %170, %171 : vector<16x512xf32>
    %173 = arith.maximumf %169, %172 : vector<16x512xf32>
    %c16_i32_87 = arith.constant 16 : i32
    %174 = tpu.dynamic_rotate %173 by %c16_i32_87 dim 1 : vector<16x512xf32>, i32 -> vector<16x512xf32>
    %175 = vector.broadcast %28 : vector<1x512xf32> to vector<16x512xf32>
    %176 = arith.addf %174, %175 : vector<16x512xf32>
    %177 = arith.maximumf %173, %176 : vector<16x512xf32>
    %c496_i32_88 = arith.constant 496 : i32
    %178 = tpu.dynamic_rotate %173 by %c496_i32_88 dim 1 : vector<16x512xf32>, i32 -> vector<16x512xf32>
    %179 = vector.broadcast %42 : vector<1x512xf32> to vector<16x512xf32>
    %180 = arith.addf %178, %179 : vector<16x512xf32>
    %181 = arith.maximumf %177, %180 : vector<16x512xf32>
    %182 = tpu.concatenate %165, %181 in 0 : vector<16x512xf32>, vector<16x512xf32> -> vector<32x512xf32>
    %cst_89 = arith.constant dense<0.000000e+00> : vector<32xf32>
    %183 = vector.multi_reduction <add>, %182, %cst_89 [1] : vector<32x512xf32> to vector<32xf32>
    %184 = vector.shape_cast %183 : vector<32xf32> to vector<32x1xf32>
    %185 = arith.mulf %182, %182 : vector<32x512xf32>
    %cst_90 = arith.constant dense<0.000000e+00> : vector<32xf32>
    %186 = vector.multi_reduction <add>, %185, %cst_90 [1] : vector<32x512xf32> to vector<32xf32>
    %187 = vector.shape_cast %186 : vector<32xf32> to vector<32x1xf32>
    %cst_91 = arith.constant 0.001953125 : f32
    %188 = vector.broadcast %cst_91 : f32 to vector<32x1xf32>
    %189 = arith.mulf %184, %188 : vector<32x1xf32>
    %cst_92 = arith.constant 0.001953125 : f32
    %190 = vector.broadcast %cst_92 : f32 to vector<32x1xf32>
    %191 = arith.mulf %187, %190 : vector<32x1xf32>
    %192 = arith.mulf %189, %189 : vector<32x1xf32>
    %193 = arith.subf %191, %192 : vector<32x1xf32>
    %cst_93 = arith.constant 0.000000e+00 : f32
    %194 = vector.broadcast %cst_93 : f32 to vector<32x1xf32>
    %195 = arith.maximumf %193, %194 : vector<32x1xf32>
    %196 = vector.broadcast %189 : vector<32x1xf32> to vector<32x512xf32>
    %197 = arith.subf %182, %196 : vector<32x512xf32>
    %cst_94 = arith.constant 9.99999974E-6 : f32
    %198 = vector.broadcast %cst_94 : f32 to vector<32x1xf32>
    %199 = arith.addf %195, %198 : vector<32x1xf32>
    %200 = math.rsqrt %199 : vector<32x1xf32>
    %201 = vector.broadcast %200 : vector<32x1xf32> to vector<32x512xf32>
    %202 = arith.mulf %197, %201 : vector<32x512xf32>
    %203 = vector.extract_strided_slice %202 {offsets = [0, 0], sizes = [16, 512], strides = [1, 1]} : vector<32x512xf32> to vector<16x512xf32>
    %204 = vector.extract_strided_slice %202 {offsets = [16, 0], sizes = [16, 512], strides = [1, 1]} : vector<32x512xf32> to vector<16x512xf32>
    %c96 = arith.constant 96 : index
    %c0_95 = arith.constant 0 : index
    %205 = vector.load %arg11[%c96, %c0_95] : memref<240x512xf32, #tpu.memory_space<vmem>>, vector<16x512xf32>
    tpu.vector_store %arg11[%c96, %c0_95], %150 {strides = array<i32>} : memref<240x512xf32, #tpu.memory_space<vmem>>, vector<16x512xf32>,
    %c112 = arith.constant 112 : index
    %c0_96 = arith.constant 0 : index
    %206 = vector.load %arg11[%c112, %c0_96] : memref<240x512xf32, #tpu.memory_space<vmem>>, vector<16x512xf32>
    tpu.vector_store %arg11[%c112, %c0_96], %203 {strides = array<i32>} : memref<240x512xf32, #tpu.memory_space<vmem>>, vector<16x512xf32>,
    %c128 = arith.constant 128 : index
    %c0_97 = arith.constant 0 : index
    %207 = vector.load %arg11[%c128, %c0_97] : memref<240x512xf32, #tpu.memory_space<vmem>>, vector<16x512xf32>
    tpu.vector_store %arg11[%c128, %c0_97], %204 {strides = array<i32>} : memref<240x512xf32, #tpu.memory_space<vmem>>, vector<16x512xf32>,
    %c0_98 = arith.constant 0 : index
    %c0_99 = arith.constant 0 : index
    %208 = vector.load %arg7[%c0_98, %c0_99] : memref<16x144xf32, #tpu.memory_space<vmem>>, vector<16x144xf32>
    %c0_100 = arith.constant 0 : index
    %c0_101 = arith.constant 0 : index
    %209 = vector.load %arg11[%c0_100, %c0_101] : memref<240x512xf32, #tpu.memory_space<vmem>>, vector<144x512xf32>
    %cst_102 = arith.constant dense<0.000000e+00> : vector<16x512xf32>
    %210 = tpu.matmul %208, %209, %cst_102 {dimension_numbers = #tpu.dot_dimension_numbers<[1], [0], [0], [1], [0, 0, 1, 1], [], []>} : vector<16x144xf32>, vector<144x512xf32>, vector<16x512xf32> -> vector<16x512xf32>
    %211 = vector.extract_strided_slice %210 {offsets = [0, 0], sizes = [16, 256], strides = [1, 1]} : vector<16x512xf32> to vector<16x256xf32>
    %c0_103 = arith.constant 0 : index
    %c16_104 = arith.constant 16 : index
    %c0_105 = arith.constant 0 : index
    %212 = vector.load %arg10[%c0_103, %c16_104, %c0_105] : memref<2x64x256xf32, #tpu.memory_space<vmem>>, vector<1x16x256xf32>
    %213 = vector.shape_cast %212 : vector<1x16x256xf32> to vector<16x256xf32>
    %214 = vector.shape_cast %211 : vector<16x256xf32> to vector<1x16x256xf32>
    tpu.vector_store %arg10[%c0_103, %c16_104, %c0_105], %214 {strides = array<i32>} : memref<2x64x256xf32, #tpu.memory_space<vmem>>, vector<1x16x256xf32>,
    %215 = vector.extract_strided_slice %210 {offsets = [0, 256], sizes = [16, 256], strides = [1, 1]} : vector<16x512xf32> to vector<16x256xf32>
    %c1_106 = arith.constant 1 : index
    %c16_107 = arith.constant 16 : index
    %c0_108 = arith.constant 0 : index
    %216 = vector.load %arg10[%c1_106, %c16_107, %c0_108] : memref<2x64x256xf32, #tpu.memory_space<vmem>>, vector<1x16x256xf32>
    %217 = vector.shape_cast %216 : vector<1x16x256xf32> to vector<16x256xf32>
    %218 = vector.shape_cast %215 : vector<16x256xf32> to vector<1x16x256xf32>
    tpu.vector_store %arg10[%c1_106, %c16_107, %c0_108], %218 {strides = array<i32>} : memref<2x64x256xf32, #tpu.memory_space<vmem>>, vector<1x16x256xf32>,
    %219 = vector.extract_strided_slice %210 {offsets = [0, 0], sizes = [16, 256], strides = [1, 1]} : vector<16x512xf32> to vector<16x256xf32>
    %c0_109 = arith.constant 0 : index
    %c0_110 = arith.constant 0 : index
    %220 = vector.load %arg5[%c0_109, %c0_110] : memref<256x256xf32, #tpu.memory_space<vmem>>, vector<256x256xf32>
    %cst_111 = arith.constant dense<0.000000e+00> : vector<16x256xf32>
    %221 = tpu.matmul %219, %220, %cst_111 {dimension_numbers = #tpu.dot_dimension_numbers<[1], [0], [0], [1], [0, 0, 1, 1], [], []>} : vector<16x256xf32>, vector<256x256xf32>, vector<16x256xf32> -> vector<16x256xf32>
    %222 = vector.extract_strided_slice %210 {offsets = [0, 256], sizes = [16, 256], strides = [1, 1]} : vector<16x512xf32> to vector<16x256xf32>
    %c0_112 = arith.constant 0 : index
    %c0_113 = arith.constant 0 : index
    %223 = vector.load %arg5[%c0_112, %c0_113] : memref<256x256xf32, #tpu.memory_space<vmem>>, vector<256x256xf32>
    %cst_114 = arith.constant dense<0.000000e+00> : vector<16x256xf32>
    %224 = tpu.matmul %222, %223, %cst_114 {dimension_numbers = #tpu.dot_dimension_numbers<[1], [0], [0], [1], [0, 0, 1, 1], [], []>} : vector<16x256xf32>, vector<256x256xf32>, vector<16x256xf32> -> vector<16x256xf32>
    %225 = tpu.concatenate %221, %224 in 1 : vector<16x256xf32>, vector<16x256xf32> -> vector<16x512xf32>
    %c1_i32_115 = arith.constant 1 : i32
    %226 = tpu.dynamic_rotate %210 by %c1_i32_115 dim 1 : vector<16x512xf32>, i32 -> vector<16x512xf32>
    %227 = vector.broadcast %8 : vector<1x512xf32> to vector<16x512xf32>
    %228 = arith.addf %226, %227 : vector<16x512xf32>
    %229 = arith.maximumf %210, %228 : vector<16x512xf32>
    %c511_i32_116 = arith.constant 511 : i32
    %230 = tpu.dynamic_rotate %210 by %c511_i32_116 dim 1 : vector<16x512xf32>, i32 -> vector<16x512xf32>
    %231 = vector.broadcast %14 : vector<1x512xf32> to vector<16x512xf32>
    %232 = arith.addf %230, %231 : vector<16x512xf32>
    %233 = arith.maximumf %229, %232 : vector<16x512xf32>
    %c16_i32_117 = arith.constant 16 : i32
    %234 = tpu.dynamic_rotate %233 by %c16_i32_117 dim 1 : vector<16x512xf32>, i32 -> vector<16x512xf32>
    %235 = vector.broadcast %28 : vector<1x512xf32> to vector<16x512xf32>
    %236 = arith.addf %234, %235 : vector<16x512xf32>
    %237 = arith.maximumf %233, %236 : vector<16x512xf32>
    %c496_i32_118 = arith.constant 496 : i32
    %238 = tpu.dynamic_rotate %233 by %c496_i32_118 dim 1 : vector<16x512xf32>, i32 -> vector<16x512xf32>
    %239 = vector.broadcast %42 : vector<1x512xf32> to vector<16x512xf32>
    %240 = arith.addf %238, %239 : vector<16x512xf32>
    %241 = arith.maximumf %237, %240 : vector<16x512xf32>
    %242 = tpu.concatenate %225, %241 in 0 : vector<16x512xf32>, vector<16x512xf32> -> vector<32x512xf32>
    %cst_119 = arith.constant dense<0.000000e+00> : vector<32xf32>
    %243 = vector.multi_reduction <add>, %242, %cst_119 [1] : vector<32x512xf32> to vector<32xf32>
    %244 = vector.shape_cast %243 : vector<32xf32> to vector<32x1xf32>
    %245 = arith.mulf %242, %242 : vector<32x512xf32>
    %cst_120 = arith.constant dense<0.000000e+00> : vector<32xf32>
    %246 = vector.multi_reduction <add>, %245, %cst_120 [1] : vector<32x512xf32> to vector<32xf32>
    %247 = vector.shape_cast %246 : vector<32xf32> to vector<32x1xf32>
    %cst_121 = arith.constant 0.001953125 : f32
    %248 = vector.broadcast %cst_121 : f32 to vector<32x1xf32>
    %249 = arith.mulf %244, %248 : vector<32x1xf32>
    %cst_122 = arith.constant 0.001953125 : f32
    %250 = vector.broadcast %cst_122 : f32 to vector<32x1xf32>
    %251 = arith.mulf %247, %250 : vector<32x1xf32>
    %252 = arith.mulf %249, %249 : vector<32x1xf32>
    %253 = arith.subf %251, %252 : vector<32x1xf32>
    %cst_123 = arith.constant 0.000000e+00 : f32
    %254 = vector.broadcast %cst_123 : f32 to vector<32x1xf32>
    %255 = arith.maximumf %253, %254 : vector<32x1xf32>
    %256 = vector.broadcast %249 : vector<32x1xf32> to vector<32x512xf32>
    %257 = arith.subf %242, %256 : vector<32x512xf32>
    %cst_124 = arith.constant 9.99999974E-6 : f32
    %258 = vector.broadcast %cst_124 : f32 to vector<32x1xf32>
    %259 = arith.addf %255, %258 : vector<32x1xf32>
    %260 = math.rsqrt %259 : vector<32x1xf32>
    %261 = vector.broadcast %260 : vector<32x1xf32> to vector<32x512xf32>
    %262 = arith.mulf %257, %261 : vector<32x512xf32>
    %263 = vector.extract_strided_slice %262 {offsets = [0, 0], sizes = [16, 512], strides = [1, 1]} : vector<32x512xf32> to vector<16x512xf32>
    %264 = vector.extract_strided_slice %262 {offsets = [16, 0], sizes = [16, 512], strides = [1, 1]} : vector<32x512xf32> to vector<16x512xf32>
    %c144 = arith.constant 144 : index
    %c0_125 = arith.constant 0 : index
    %265 = vector.load %arg11[%c144, %c0_125] : memref<240x512xf32, #tpu.memory_space<vmem>>, vector<16x512xf32>
    tpu.vector_store %arg11[%c144, %c0_125], %210 {strides = array<i32>} : memref<240x512xf32, #tpu.memory_space<vmem>>, vector<16x512xf32>,
    %c160 = arith.constant 160 : index
    %c0_126 = arith.constant 0 : index
    %266 = vector.load %arg11[%c160, %c0_126] : memref<240x512xf32, #tpu.memory_space<vmem>>, vector<16x512xf32>
    tpu.vector_store %arg11[%c160, %c0_126], %263 {strides = array<i32>} : memref<240x512xf32, #tpu.memory_space<vmem>>, vector<16x512xf32>,
    %c176 = arith.constant 176 : index
    %c0_127 = arith.constant 0 : index
    %267 = vector.load %arg11[%c176, %c0_127] : memref<240x512xf32, #tpu.memory_space<vmem>>, vector<16x512xf32>
    tpu.vector_store %arg11[%c176, %c0_127], %264 {strides = array<i32>} : memref<240x512xf32, #tpu.memory_space<vmem>>, vector<16x512xf32>,
    %c0_128 = arith.constant 0 : index
    %c0_129 = arith.constant 0 : index
    %268 = vector.load %arg8[%c0_128, %c0_129] : memref<16x192xf32, #tpu.memory_space<vmem>>, vector<16x192xf32>
    %c0_130 = arith.constant 0 : index
    %c0_131 = arith.constant 0 : index
    %269 = vector.load %arg11[%c0_130, %c0_131] : memref<240x512xf32, #tpu.memory_space<vmem>>, vector<192x512xf32>
    %cst_132 = arith.constant dense<0.000000e+00> : vector<16x512xf32>
    %270 = tpu.matmul %268, %269, %cst_132 {dimension_numbers = #tpu.dot_dimension_numbers<[1], [0], [0], [1], [0, 0, 1, 1], [], []>} : vector<16x192xf32>, vector<192x512xf32>, vector<16x512xf32> -> vector<16x512xf32>
    %271 = vector.extract_strided_slice %270 {offsets = [0, 0], sizes = [16, 256], strides = [1, 1]} : vector<16x512xf32> to vector<16x256xf32>
    %c0_133 = arith.constant 0 : index
    %c32_134 = arith.constant 32 : index
    %c0_135 = arith.constant 0 : index
    %272 = vector.load %arg10[%c0_133, %c32_134, %c0_135] : memref<2x64x256xf32, #tpu.memory_space<vmem>>, vector<1x16x256xf32>
    %273 = vector.shape_cast %272 : vector<1x16x256xf32> to vector<16x256xf32>
    %274 = vector.shape_cast %271 : vector<16x256xf32> to vector<1x16x256xf32>
    tpu.vector_store %arg10[%c0_133, %c32_134, %c0_135], %274 {strides = array<i32>} : memref<2x64x256xf32, #tpu.memory_space<vmem>>, vector<1x16x256xf32>,
    %275 = vector.extract_strided_slice %270 {offsets = [0, 256], sizes = [16, 256], strides = [1, 1]} : vector<16x512xf32> to vector<16x256xf32>
    %c1_136 = arith.constant 1 : index
    %c32_137 = arith.constant 32 : index
    %c0_138 = arith.constant 0 : index
    %276 = vector.load %arg10[%c1_136, %c32_137, %c0_138] : memref<2x64x256xf32, #tpu.memory_space<vmem>>, vector<1x16x256xf32>
    %277 = vector.shape_cast %276 : vector<1x16x256xf32> to vector<16x256xf32>
    %278 = vector.shape_cast %275 : vector<16x256xf32> to vector<1x16x256xf32>
    tpu.vector_store %arg10[%c1_136, %c32_137, %c0_138], %278 {strides = array<i32>} : memref<2x64x256xf32, #tpu.memory_space<vmem>>, vector<1x16x256xf32>,
    %279 = vector.extract_strided_slice %270 {offsets = [0, 0], sizes = [16, 256], strides = [1, 1]} : vector<16x512xf32> to vector<16x256xf32>
    %c0_139 = arith.constant 0 : index
    %c0_140 = arith.constant 0 : index
    %280 = vector.load %arg5[%c0_139, %c0_140] : memref<256x256xf32, #tpu.memory_space<vmem>>, vector<256x256xf32>
    %cst_141 = arith.constant dense<0.000000e+00> : vector<16x256xf32>
    %281 = tpu.matmul %279, %280, %cst_141 {dimension_numbers = #tpu.dot_dimension_numbers<[1], [0], [0], [1], [0, 0, 1, 1], [], []>} : vector<16x256xf32>, vector<256x256xf32>, vector<16x256xf32> -> vector<16x256xf32>
    %282 = vector.extract_strided_slice %270 {offsets = [0, 256], sizes = [16, 256], strides = [1, 1]} : vector<16x512xf32> to vector<16x256xf32>
    %c0_142 = arith.constant 0 : index
    %c0_143 = arith.constant 0 : index
    %283 = vector.load %arg5[%c0_142, %c0_143] : memref<256x256xf32, #tpu.memory_space<vmem>>, vector<256x256xf32>
    %cst_144 = arith.constant dense<0.000000e+00> : vector<16x256xf32>
    %284 = tpu.matmul %282, %283, %cst_144 {dimension_numbers = #tpu.dot_dimension_numbers<[1], [0], [0], [1], [0, 0, 1, 1], [], []>} : vector<16x256xf32>, vector<256x256xf32>, vector<16x256xf32> -> vector<16x256xf32>
    %285 = tpu.concatenate %281, %284 in 1 : vector<16x256xf32>, vector<16x256xf32> -> vector<16x512xf32>
    %c1_i32_145 = arith.constant 1 : i32
    %286 = tpu.dynamic_rotate %270 by %c1_i32_145 dim 1 : vector<16x512xf32>, i32 -> vector<16x512xf32>
    %287 = vector.broadcast %8 : vector<1x512xf32> to vector<16x512xf32>
    %288 = arith.addf %286, %287 : vector<16x512xf32>
    %289 = arith.maximumf %270, %288 : vector<16x512xf32>
    %c511_i32_146 = arith.constant 511 : i32
    %290 = tpu.dynamic_rotate %270 by %c511_i32_146 dim 1 : vector<16x512xf32>, i32 -> vector<16x512xf32>
    %291 = vector.broadcast %14 : vector<1x512xf32> to vector<16x512xf32>
    %292 = arith.addf %290, %291 : vector<16x512xf32>
    %293 = arith.maximumf %289, %292 : vector<16x512xf32>
    %c16_i32_147 = arith.constant 16 : i32
    %294 = tpu.dynamic_rotate %293 by %c16_i32_147 dim 1 : vector<16x512xf32>, i32 -> vector<16x512xf32>
    %295 = vector.broadcast %28 : vector<1x512xf32> to vector<16x512xf32>
    %296 = arith.addf %294, %295 : vector<16x512xf32>
    %297 = arith.maximumf %293, %296 : vector<16x512xf32>
    %c496_i32_148 = arith.constant 496 : i32
    %298 = tpu.dynamic_rotate %293 by %c496_i32_148 dim 1 : vector<16x512xf32>, i32 -> vector<16x512xf32>
    %299 = vector.broadcast %42 : vector<1x512xf32> to vector<16x512xf32>
    %300 = arith.addf %298, %299 : vector<16x512xf32>
    %301 = arith.maximumf %297, %300 : vector<16x512xf32>
    %302 = tpu.concatenate %285, %301 in 0 : vector<16x512xf32>, vector<16x512xf32> -> vector<32x512xf32>
    %cst_149 = arith.constant dense<0.000000e+00> : vector<32xf32>
    %303 = vector.multi_reduction <add>, %302, %cst_149 [1] : vector<32x512xf32> to vector<32xf32>
    %304 = vector.shape_cast %303 : vector<32xf32> to vector<32x1xf32>
    %305 = arith.mulf %302, %302 : vector<32x512xf32>
    %cst_150 = arith.constant dense<0.000000e+00> : vector<32xf32>
    %306 = vector.multi_reduction <add>, %305, %cst_150 [1] : vector<32x512xf32> to vector<32xf32>
    %307 = vector.shape_cast %306 : vector<32xf32> to vector<32x1xf32>
    %cst_151 = arith.constant 0.001953125 : f32
    %308 = vector.broadcast %cst_151 : f32 to vector<32x1xf32>
    %309 = arith.mulf %304, %308 : vector<32x1xf32>
    %cst_152 = arith.constant 0.001953125 : f32
    %310 = vector.broadcast %cst_152 : f32 to vector<32x1xf32>
    %311 = arith.mulf %307, %310 : vector<32x1xf32>
    %312 = arith.mulf %309, %309 : vector<32x1xf32>
    %313 = arith.subf %311, %312 : vector<32x1xf32>
    %cst_153 = arith.constant 0.000000e+00 : f32
    %314 = vector.broadcast %cst_153 : f32 to vector<32x1xf32>
    %315 = arith.maximumf %313, %314 : vector<32x1xf32>
    %316 = vector.broadcast %309 : vector<32x1xf32> to vector<32x512xf32>
    %317 = arith.subf %302, %316 : vector<32x512xf32>
    %cst_154 = arith.constant 9.99999974E-6 : f32
    %318 = vector.broadcast %cst_154 : f32 to vector<32x1xf32>
    %319 = arith.addf %315, %318 : vector<32x1xf32>
    %320 = math.rsqrt %319 : vector<32x1xf32>
    %321 = vector.broadcast %320 : vector<32x1xf32> to vector<32x512xf32>
    %322 = arith.mulf %317, %321 : vector<32x512xf32>
    %323 = vector.extract_strided_slice %322 {offsets = [0, 0], sizes = [16, 512], strides = [1, 1]} : vector<32x512xf32> to vector<16x512xf32>
    %324 = vector.extract_strided_slice %322 {offsets = [16, 0], sizes = [16, 512], strides = [1, 1]} : vector<32x512xf32> to vector<16x512xf32>
    %c192 = arith.constant 192 : index
    %c0_155 = arith.constant 0 : index
    %325 = vector.load %arg11[%c192, %c0_155] : memref<240x512xf32, #tpu.memory_space<vmem>>, vector<16x512xf32>
    tpu.vector_store %arg11[%c192, %c0_155], %270 {strides = array<i32>} : memref<240x512xf32, #tpu.memory_space<vmem>>, vector<16x512xf32>,
    %c208 = arith.constant 208 : index
    %c0_156 = arith.constant 0 : index
    %326 = vector.load %arg11[%c208, %c0_156] : memref<240x512xf32, #tpu.memory_space<vmem>>, vector<16x512xf32>
    tpu.vector_store %arg11[%c208, %c0_156], %323 {strides = array<i32>} : memref<240x512xf32, #tpu.memory_space<vmem>>, vector<16x512xf32>,
    %c224 = arith.constant 224 : index
    %c0_157 = arith.constant 0 : index
    %327 = vector.load %arg11[%c224, %c0_157] : memref<240x512xf32, #tpu.memory_space<vmem>>, vector<16x512xf32>
    tpu.vector_store %arg11[%c224, %c0_157], %324 {strides = array<i32>} : memref<240x512xf32, #tpu.memory_space<vmem>>, vector<16x512xf32>,
    %c0_158 = arith.constant 0 : index
    %c0_159 = arith.constant 0 : index
    %328 = vector.load %arg9[%c0_158, %c0_159] : memref<16x240xf32, #tpu.memory_space<vmem>>, vector<16x240xf32>
    %c0_160 = arith.constant 0 : index
    %c0_161 = arith.constant 0 : index
    %329 = vector.load %arg11[%c0_160, %c0_161] : memref<240x512xf32, #tpu.memory_space<vmem>>, vector<240x512xf32>
    %cst_162 = arith.constant dense<0.000000e+00> : vector<16x512xf32>
    %330 = tpu.matmul %328, %329, %cst_162 {dimension_numbers = #tpu.dot_dimension_numbers<[1], [0], [0], [1], [0, 0, 1, 1], [], []>} : vector<16x240xf32>, vector<240x512xf32>, vector<16x512xf32> -> vector<16x512xf32>
    %331 = vector.extract_strided_slice %330 {offsets = [0, 0], sizes = [16, 256], strides = [1, 1]} : vector<16x512xf32> to vector<16x256xf32>
    %c0_163 = arith.constant 0 : index
    %c48_164 = arith.constant 48 : index
    %c0_165 = arith.constant 0 : index
    %332 = vector.load %arg10[%c0_163, %c48_164, %c0_165] : memref<2x64x256xf32, #tpu.memory_space<vmem>>, vector<1x16x256xf32>
    %333 = vector.shape_cast %332 : vector<1x16x256xf32> to vector<16x256xf32>
    %334 = vector.shape_cast %331 : vector<16x256xf32> to vector<1x16x256xf32>
    tpu.vector_store %arg10[%c0_163, %c48_164, %c0_165], %334 {strides = array<i32>} : memref<2x64x256xf32, #tpu.memory_space<vmem>>, vector<1x16x256xf32>,
    %335 = vector.extract_strided_slice %330 {offsets = [0, 256], sizes = [16, 256], strides = [1, 1]} : vector<16x512xf32> to vector<16x256xf32>
    %c1_166 = arith.constant 1 : index
    %c48_167 = arith.constant 48 : index
    %c0_168 = arith.constant 0 : index
    %336 = vector.load %arg10[%c1_166, %c48_167, %c0_168] : memref<2x64x256xf32, #tpu.memory_space<vmem>>, vector<1x16x256xf32>
    %337 = vector.shape_cast %336 : vector<1x16x256xf32> to vector<16x256xf32>
    %338 = vector.shape_cast %335 : vector<16x256xf32> to vector<1x16x256xf32>
    tpu.vector_store %arg10[%c1_166, %c48_167, %c0_168], %338 {strides = array<i32>} : memref<2x64x256xf32, #tpu.memory_space<vmem>>, vector<1x16x256xf32>,
    return
  }
}

</mosaic_0001>

<llo_original>
// kernel: darts_cell_forward.1
$region0: #{darts_cell_forward.1}
  #allocation0 [shape = 'u32[]', space=smem, size = 0x4, offset = 0x4, fixed_abs, tag = 'smem constant byte address 0x4 - core index']
  #allocation1 [shape = 'u32[72,128]{1,0:T(1,128)}', space=vmem, size = 0x9000, scoped, tag = 'internal scratch']
  #allocation2 [shape = 'f32[240,512]{1,0:T(8,128)}', space=vmem, size = 0x78000, scoped, tag = 'scratch operand']
  %s0 = inlined_call_operand.vmem [shape: f32[2,512], index: 0, kind: input, shape index: {}]
  %s1 = inlined_call_operand.vmem [shape: f32[2,48,256], index: 1, kind: input, shape index: {}]
  %s2 = inlined_call_operand.vmem [shape: f32[2,48,256], index: 2, kind: input, shape index: {}]
  %s3 = inlined_call_operand.vmem [shape: f32[16,48], index: 3, kind: input, shape index: {}]
  %s4 = inlined_call_operand.vmem [shape: f32[16,48], index: 4, kind: input, shape index: {}]
  %s5 = inlined_call_operand.vmem [shape: f32[256,256], index: 5, kind: input, shape index: {}]
  %s6 = inlined_call_operand.vmem [shape: f32[16,96], index: 6, kind: input, shape index: {}]
  %s7 = inlined_call_operand.vmem [shape: f32[16,144], index: 7, kind: input, shape index: {}]
  %s8 = inlined_call_operand.vmem [shape: f32[16,192], index: 8, kind: input, shape index: {}]
  %s9 = inlined_call_operand.vmem [shape: f32[16,240], index: 9, kind: input, shape index: {}]
  %s10 = inlined_call_operand.vmem [shape: f32[2,64,256], index: 10, kind: output, shape index: {}]
  %s11 = sld [smem:[#allocation0]]
  $region50: #{darts_cell_forward.1} parent=0
    _
  %s13 = ssub.s32 1, %s11
  %s14 = scalar_select 0, %s13, %s11
  // Predicated region
  $region2: #{darts_cell_forward.1} parent=0 // pred_check
    _
  $region3: #{darts_cell_forward.1} parent=0 // pred_check_branch
    %16 = sbr.rel (0) target = $region5
  $region4: #{darts_cell_forward.1} parent=0 // pred_region
    _
  $region5: #{darts_cell_forward.1} parent=0 // pred_fallthru
    _
  // Predicated region
  $region6: #{darts_cell_forward.1} parent=0 // pred_check
    _
  $region7: #{darts_cell_forward.1} parent=0 // pred_check_branch
    %18 = sbr.rel (0) target = $region9
  $region8: #{darts_cell_forward.1} parent=0 // pred_region
    _
  $region9: #{darts_cell_forward.1} parent=0 // pred_fallthru
    _
  // Predicated region
  $region10: #{darts_cell_forward.1} parent=0 // pred_check
    _
  $region11: #{darts_cell_forward.1} parent=0 // pred_check_branch
    %20 = sbr.rel (0) target = $region13
  $region12: #{darts_cell_forward.1} parent=0 // pred_region
    _
  $region13: #{darts_cell_forward.1} parent=0 // pred_fallthru
    _
  // Predicated region
  $region14: #{darts_cell_forward.1} parent=0 // pred_check
    _
  $region15: #{darts_cell_forward.1} parent=0 // pred_check_branch
    %22 = sbr.rel (0) target = $region17
  $region16: #{darts_cell_forward.1} parent=0 // pred_region
    _
  $region17: #{darts_cell_forward.1} parent=0 // pred_fallthru
    _
  // Predicated region
  $region18: #{darts_cell_forward.1} parent=0 // pred_check
    _
  $region19: #{darts_cell_forward.1} parent=0 // pred_check_branch
    %24 = sbr.rel (0) target = $region21
  $region20: #{darts_cell_forward.1} parent=0 // pred_region
    _
  $region21: #{darts_cell_forward.1} parent=0 // pred_fallthru
    _
  // Predicated region
  $region22: #{darts_cell_forward.1} parent=0 // pred_check
    _
  $region23: #{darts_cell_forward.1} parent=0 // pred_check_branch
    %26 = sbr.rel (0) target = $region25
  $region24: #{darts_cell_forward.1} parent=0 // pred_region
    _
  $region25: #{darts_cell_forward.1} parent=0 // pred_fallthru
    _
  // Predicated region
  $region26: #{darts_cell_forward.1} parent=0 // pred_check
    _
  $region27: #{darts_cell_forward.1} parent=0 // pred_check_branch
    %28 = sbr.rel (0) target = $region29
  $region28: #{darts_cell_forward.1} parent=0 // pred_region
    _
  $region29: #{darts_cell_forward.1} parent=0 // pred_fallthru
    _
  // Predicated region
  $region30: #{darts_cell_forward.1} parent=0 // pred_check
    _
  $region31: #{darts_cell_forward.1} parent=0 // pred_check_branch
    %30 = sbr.rel (0) target = $region33
  $region32: #{darts_cell_forward.1} parent=0 // pred_region
    _
  $region33: #{darts_cell_forward.1} parent=0 // pred_fallthru
    _
  // Predicated region
  $region34: #{darts_cell_forward.1} parent=0 // pred_check
    _
  $region35: #{darts_cell_forward.1} parent=0 // pred_check_branch
    %32 = sbr.rel (0) target = $region37
  $region36: #{darts_cell_forward.1} parent=0 // pred_region
    _
  $region37: #{darts_cell_forward.1} parent=0 // pred_fallthru
    _
  // Predicated region
  $region38: #{darts_cell_forward.1} parent=0 // pred_check
    _
  $region39: #{darts_cell_forward.1} parent=0 // pred_check_branch
    %34 = sbr.rel (0) target = $region41
  $region40: #{darts_cell_forward.1} parent=0 // pred_region
    _
  $region41: #{darts_cell_forward.1} parent=0 // pred_fallthru
    _
  %v35 = vld [vmem:[%s0] sm:$0xff]
  %37 = vst [vmem:[#allocation1] ss:$4 sm:$0xff] %v35
  %v38 = vld.sshfl [vmem:[#allocation1] sm:$0xff pattern:$0x73625140]
  %v39 = vld.sshfl [vmem:[#allocation1 + $0x8] sm:$0xff pattern:$0x73625140]
  %v40 = vld.sshfl [vmem:[#allocation1 + $0x10] sm:$0xff pattern:$0x73625140]
  %v41 = vld.sshfl [vmem:[#allocation1 + $0x18] sm:$0xff pattern:$0x73625140]
  %46 = vrot.lane.b32.xlu0 %v38, 1
  %v47 = vpop.permute.xlu0 %46
  %48 = vrot.lane.b32.xlu0 %v39, 1
  %v49 = vpop.permute.xlu0 %48
  %50 = vrot.lane.b32.xlu0 %v40, 1
  %v51 = vpop.permute.xlu0 %50
  %52 = vrot.lane.b32.xlu0 %v41, 1
  %v53 = vpop.permute.xlu0 %52
  %v54 = vlaneseq
  %v55 = vand.u32 %v54, 127
  %vm56 = vcmp.lt.s32.totalorder %v55, 1
  %v57 = vsel %vm56, %v51, %v53
  %v58 = vsel %vm56, %v49, %v51
  %v59 = vsel %vm56, %v47, %v49
  %v60 = vsel %vm56, %v53, %v47
  %v61 = vperm.slane %v35, 0
  %v62 = vperm.slane %v35, 2
  %v63 = vperm.slane %v35, 4
  %v64 = vperm.slane %v35, 6
  %vm69 = vcmp.eq.f32.partialorder %v60, %v61
  %vm70 = vcmp.eq.f32.partialorder %v59, %v62
  %vm71 = vcmp.eq.f32.partialorder %v58, %v63
  %vm72 = vcmp.eq.f32.partialorder %v57, %v64
  %v73 = vsel %vm69, 0.0, -1e+30
  %v74 = vsel %vm70, 0.0, -1e+30
  %v75 = vsel %vm71, 0.0, -1e+30
  %v76 = vsel %vm72, 0.0, -1e+30
  %77 = vst [vmem:[#allocation1] ss:$4 sm:$0xff] %v35
  %v78 = vld.sshfl [vmem:[#allocation1] sm:$0xff pattern:$0x73625140]
  %v79 = vld.sshfl [vmem:[#allocation1 + $0x8] sm:$0xff pattern:$0x73625140]
  %v80 = vld.sshfl [vmem:[#allocation1 + $0x10] sm:$0xff pattern:$0x73625140]
  %v81 = vld.sshfl [vmem:[#allocation1 + $0x18] sm:$0xff pattern:$0x73625140]
  %86 = vrot.lane.b32.xlu0 %v78, 127
  %v87 = vpop.permute.xlu0 %86
  %88 = vrot.lane.b32.xlu0 %v79, 127
  %v89 = vpop.permute.xlu0 %88
  %90 = vrot.lane.b32.xlu0 %v80, 127
  %v91 = vpop.permute.xlu0 %90
  %92 = vrot.lane.b32.xlu0 %v81, 127
  %v93 = vpop.permute.xlu0 %92
  %vm94 = vcmp.lt.s32.totalorder %v55, 127
  %v95 = vsel %vm94, %v91, %v93
  %v96 = vsel %vm94, %v89, %v91
  %v97 = vsel %vm94, %v87, %v89
  %v98 = vsel %vm94, %v93, %v87
  %vm99 = vcmp.eq.f32.partialorder %v97, %v61
  %vm100 = vcmp.eq.f32.partialorder %v96, %v62
  %vm101 = vcmp.eq.f32.partialorder %v95, %v63
  %vm102 = vcmp.eq.f32.partialorder %v98, %v64
  %v103 = vsel %vm99, 0.0, -1e+30
  %v104 = vsel %vm100, 0.0, -1e+30
  %v105 = vsel %vm101, 0.0, -1e+30
  %v106 = vsel %vm102, 0.0, -1e+30
  %107 = vst [vmem:[#allocation1] ss:$4 sm:$0xff] %v35
  %v108 = vld.sshfl [vmem:[#allocation1] sm:$0xff pattern:$0x73625140]
  %v109 = vld.sshfl [vmem:[#allocation1 + $0x8] sm:$0xff pattern:$0x73625140]
  %v110 = vld.sshfl [vmem:[#allocation1 + $0x10] sm:$0xff pattern:$0x73625140]
  %v111 = vld.sshfl [vmem:[#allocation1 + $0x18] sm:$0xff pattern:$0x73625140]
  %116 = vrot.lane.b32.xlu0 %v108, 16
  %v117 = vpop.permute.xlu0 %116
  %118 = vrot.lane.b32.xlu0 %v109, 16
  %v119 = vpop.permute.xlu0 %118
  %120 = vrot.lane.b32.xlu0 %v110, 16
  %v121 = vpop.permute.xlu0 %120
  %122 = vrot.lane.b32.xlu0 %v111, 16
  %v123 = vpop.permute.xlu0 %122
  %vm124 = vcmp.lt.s32.totalorder %v55, 16
  %v125 = vsel %vm124, %v121, %v123
  %v126 = vsel %vm124, %v119, %v121
  %v127 = vsel %vm124, %v117, %v119
  %v128 = vsel %vm124, %v123, %v117
  %v129 = vsub.f32 %v128, %v61
  %v130 = vsub.f32 %v127, %v62
  %v131 = vsub.f32 %v126, %v63
  %v132 = vsub.f32 %v125, %v64
  %v133 = vperm.slane %v35, 1
  %v134 = vperm.slane %v35, 3
  %v135 = vperm.slane %v35, 5
  %v136 = vperm.slane %v35, 7
  %vm141 = vcmp.eq.f32.partialorder %v128, %v133
  %vm142 = vcmp.eq.f32.partialorder %v127, %v134
  %vm143 = vcmp.eq.f32.partialorder %v126, %v135
  %vm144 = vcmp.eq.f32.partialorder %v125, %v136
  %vm145 = vcmp.eq.f32.partialorder %v129, 1.0
  %vm146 = vcmp.eq.f32.partialorder %v130, 1.0
  %vm147 = vcmp.eq.f32.partialorder %v131, 1.0
  %vm148 = vcmp.eq.f32.partialorder %v132, 1.0
  %vm149 = vcmp.eq.f32.partialorder %v129, -1.0
  %vm150 = vcmp.eq.f32.partialorder %v130, -1.0
  %vm151 = vcmp.eq.f32.partialorder %v131, -1.0
  %vm152 = vcmp.eq.f32.partialorder %v132, -1.0
  %vm153 = vmor %vm145, %vm149
  %vm154 = vmor %vm146, %vm150
  %vm155 = vmor %vm147, %vm151
  %vm156 = vmor %vm148, %vm152
  %v157 = vsel %vm153, 1, 0
  %v158 = vsel %vm154, 1, 0
  %v159 = vsel %vm155, 1, 0
  %v160 = vsel %vm156, 1, 0
  %v161 = vrot.slane %v157, 7
  %v162 = vrot.slane %v158, 7
  %v163 = vrot.slane %v159, 7
  %v164 = vrot.slane %v160, 7
  %vm165 = vcmp.ne.s32.totalorder %v161, 0
  %vm166 = vcmp.ne.s32.totalorder %v162, 0
  %vm167 = vcmp.ne.s32.totalorder %v163, 0
  %vm168 = vcmp.ne.s32.totalorder %v164, 0
  %vm169 = vmand %vm141, %vm165
  %vm170 = vmand %vm142, %vm166
  %vm171 = vmand %vm143, %vm167
  %vm172 = vmand %vm144, %vm168
  %v173 = vsel %vm169, 0.0, -1e+30
  %v174 = vsel %vm170, 0.0, -1e+30
  %v175 = vsel %vm171, 0.0, -1e+30
  %v176 = vsel %vm172, 0.0, -1e+30
  %177 = vst [vmem:[#allocation1] ss:$4 sm:$0xff] %v35
  %v178 = vld.sshfl [vmem:[#allocation1] sm:$0xff pattern:$0x73625140]
  %v179 = vld.sshfl [vmem:[#allocation1 + $0x8] sm:$0xff pattern:$0x73625140]
  %v180 = vld.sshfl [vmem:[#allocation1 + $0x10] sm:$0xff pattern:$0x73625140]
  %v181 = vld.sshfl [vmem:[#allocation1 + $0x18] sm:$0xff pattern:$0x73625140]
  %186 = vrot.lane.b32.xlu0 %v178, 112
  %v187 = vpop.permute.xlu0 %186
  %188 = vrot.lane.b32.xlu0 %v179, 112
  %v189 = vpop.permute.xlu0 %188
  %190 = vrot.lane.b32.xlu0 %v180, 112
  %v191 = vpop.permute.xlu0 %190
  %192 = vrot.lane.b32.xlu0 %v181, 112
  %v193 = vpop.permute.xlu0 %192
  %vm194 = vcmp.lt.s32.totalorder %v55, 112
  %v195 = vsel %vm194, %v191, %v193
  %v196 = vsel %vm194, %v189, %v191
  %v197 = vsel %vm194, %v187, %v189
  %v198 = vsel %vm194, %v193, %v187
  %v199 = vsub.f32 %v197, %v61
  %v200 = vsub.f32 %v196, %v62
  %v201 = vsub.f32 %v195, %v63
  %v202 = vsub.f32 %v198, %v64
  %vm203 = vcmp.eq.f32.partialorder %v197, %v133
  %vm204 = vcmp.eq.f32.partialorder %v196, %v134
  %vm205 = vcmp.eq.f32.partialorder %v195, %v135
  %vm206 = vcmp.eq.f32.partialorder %v198, %v136
  %vm207 = vcmp.eq.f32.partialorder %v199, 1.0
  %vm208 = vcmp.eq.f32.partialorder %v200, 1.0
  %vm209 = vcmp.eq.f32.partialorder %v201, 1.0
  %vm210 = vcmp.eq.f32.partialorder %v202, 1.0
  %vm211 = vcmp.eq.f32.partialorder %v199, -1.0
  %vm212 = vcmp.eq.f32.partialorder %v200, -1.0
  %vm213 = vcmp.eq.f32.partialorder %v201, -1.0
  %vm214 = vcmp.eq.f32.partialorder %v202, -1.0
  %vm215 = vmor %vm207, %vm211
  %vm216 = vmor %vm208, %vm212
  %vm217 = vmor %vm209, %vm213
  %vm218 = vmor %vm210, %vm214
  %v219 = vsel %vm215, 1, 0
  %v220 = vsel %vm216, 1, 0
  %v221 = vsel %vm217, 1, 0
  %v222 = vsel %vm218, 1, 0
  %v223 = vrot.slane %v219, 7
  %v224 = vrot.slane %v220, 7
  %v225 = vrot.slane %v221, 7
  %v226 = vrot.slane %v222, 7
  %vm227 = vcmp.ne.s32.totalorder %v223, 0
  %vm228 = vcmp.ne.s32.totalorder %v224, 0
  %vm229 = vcmp.ne.s32.totalorder %v225, 0
  %vm230 = vcmp.ne.s32.totalorder %v226, 0
  %vm231 = vmand %vm203, %vm227
  %vm232 = vmand %vm204, %vm228
  %vm233 = vmand %vm205, %vm229
  %vm234 = vmand %vm206, %vm230
  %v235 = vsel %vm231, 0.0, -1e+30
  %v236 = vsel %vm232, 0.0, -1e+30
  %v237 = vsel %vm233, 0.0, -1e+30
  %v238 = vsel %vm234, 0.0, -1e+30
  %v239 = vld [vmem:[%s3] sm:$0xff]
  %v240 = vld [vmem:[%s3 + $0x8] sm:$0xff]
  %v241 = vld [vmem:[%s1] sm:$0xff]
  %v242 = vld [vmem:[%s1 + $0x8] sm:$0xff]
  %v243 = vld [vmem:[%s1 + $0x10] sm:$0xff]
  %v244 = vld [vmem:[%s1 + $0x18] sm:$0xff]
  %v245 = vld [vmem:[%s1 + $0x20] sm:$0xff]
  %v246 = vld [vmem:[%s1 + $0x28] sm:$0xff]
  %v247 = vld [vmem:[%s1 + $0x30] sm:$0xff]
  %v248 = vld [vmem:[%s1 + $0x38] sm:$0xff]
  %v249 = vld [vmem:[%s1 + $0x40] sm:$0xff]
  %v250 = vld [vmem:[%s1 + $0x48] sm:$0xff]
  %v251 = vld [vmem:[%s1 + $0x50] sm:$0xff]
  %v252 = vld [vmem:[%s1 + $0x58] sm:$0xff]
  %v253 = vmax.f32 %v241, 0.0
  %v254 = vmax.f32 %v242, 0.0
  %v255 = vmax.f32 %v243, 0.0
  %v256 = vmax.f32 %v244, 0.0
  %v257 = vmax.f32 %v245, 0.0
  %v258 = vmax.f32 %v246, 0.0
  %v259 = vmax.f32 %v247, 0.0
  %v260 = vmax.f32 %v248, 0.0
  %v261 = vmax.f32 %v249, 0.0
  %v262 = vmax.f32 %v250, 0.0
  %v263 = vmax.f32 %v251, 0.0
  %v264 = vmax.f32 %v252, 0.0
  %vm265 = vcmask 392192
  %v267 = vsel %vm265, %v239, 0
  %v270 = vsel %vm265, %v240, 0
  %272 = vmatpush.msra.mxu0 0.0
  %273 = vmatpush.msra.mxu0 0.0
  %274 = vmatpush.msra.mxu0 0.0
  %275 = vmatpush.msra.mxu0 0.0
  %276 = vmatpush.msra.mxu0 0.0
  %277 = vmatpush.msra.mxu0 0.0
  %278 = vmatpush.msra.mxu0 0.0
  %279 = vmatpush.msra.mxu0 0.0
  %280 = vmatpush.msra.mxu0 0.0
  %281 = vmatpush.msra.mxu0 0.0
  %282 = vmatpush.msra.mxu0 %v263
  %283 = vmatpush.msra.mxu0 %v261
  %284 = vmatpush.msra.mxu0 %v259
  %285 = vmatpush.msra.mxu0 %v257
  %286 = vmatpush.msra.mxu0 %v255
  %287 = vmatpush.msra.mxu0 %v253
  %288 = vmatmul.f32.gmra.mxu0 %v267
  %v289 = vpop.f32.mrf.mxu0
  %v290 = vadd.f32 0.0, %v289
  %291 = vmatmul.f32.gmra.mxu0 %v270
  %v292 = vpop.f32.mrf.mxu0
  %v293 = vadd.f32 0.0, %v292
  %294 = vdwg.mxu0
  %295 = vmatpush.msra.mxu0 0.0
  %296 = vmatpush.msra.mxu0 0.0
  %297 = vmatpush.msra.mxu0 0.0
  %298 = vmatpush.msra.mxu0 0.0
  %299 = vmatpush.msra.mxu0 0.0
  %300 = vmatpush.msra.mxu0 0.0
  %301 = vmatpush.msra.mxu0 0.0
  %302 = vmatpush.msra.mxu0 0.0
  %303 = vmatpush.msra.mxu0 0.0
  %304 = vmatpush.msra.mxu0 0.0
  %305 = vmatpush.msra.mxu0 %v264
  %306 = vmatpush.msra.mxu0 %v262
  %307 = vmatpush.msra.mxu0 %v260
  %308 = vmatpush.msra.mxu0 %v258
  %309 = vmatpush.msra.mxu0 %v256
  %310 = vmatpush.msra.mxu0 %v254
  %311 = vmatmul.f32.gmra.mxu0 %v267
  %v312 = vpop.f32.mrf.mxu0
  %v313 = vadd.f32 0.0, %v312
  %314 = vmatmul.f32.gmra.mxu0 %v270
  %v315 = vpop.f32.mrf.mxu0
  %v316 = vadd.f32 0.0, %v315
  %317 = vdwg.mxu0
  %v318 = vld [vmem:[%s4] sm:$0xff]
  %v319 = vld [vmem:[%s4 + $0x8] sm:$0xff]
  %v320 = vld [vmem:[%s2] sm:$0xff]
  %v321 = vld [vmem:[%s2 + $0x8] sm:$0xff]
  %v322 = vld [vmem:[%s2 + $0x10] sm:$0xff]
  %v323 = vld [vmem:[%s2 + $0x18] sm:$0xff]
  %v324 = vld [vmem:[%s2 + $0x20] sm:$0xff]
  %v325 = vld [vmem:[%s2 + $0x28] sm:$0xff]
  %v326 = vld [vmem:[%s2 + $0x30] sm:$0xff]
  %v327 = vld [vmem:[%s2 + $0x38] sm:$0xff]
  %v328 = vld [vmem:[%s2 + $0x40] sm:$0xff]
  %v329 = vld [vmem:[%s2 + $0x48] sm:$0xff]
  %v330 = vld [vmem:[%s2 + $0x50] sm:$0xff]
  %v331 = vld [vmem:[%s2 + $0x58] sm:$0xff]
  %v332 = vmax.f32 %v320, 0.0
  %v333 = vmax.f32 %v321, 0.0
  %v334 = vmax.f32 %v322, 0.0
  %v335 = vmax.f32 %v323, 0.0
  %v336 = vmax.f32 %v324, 0.0
  %v337 = vmax.f32 %v325, 0.0
  %v338 = vmax.f32 %v326, 0.0
  %v339 = vmax.f32 %v327, 0.0
  %v340 = vmax.f32 %v328, 0.0
  %v341 = vmax.f32 %v329, 0.0
  %v342 = vmax.f32 %v330, 0.0
  %v343 = vmax.f32 %v331, 0.0
  %v345 = vsel %vm265, %v318, 0
  %v348 = vsel %vm265, %v319, 0
  %350 = vmatpush.msra.mxu0 0.0
  %351 = vmatpush.msra.mxu0 0.0
  %352 = vmatpush.msra.mxu0 0.0
  %353 = vmatpush.msra.mxu0 0.0
  %354 = vmatpush.msra.mxu0 0.0
  %355 = vmatpush.msra.mxu0 0.0
  %356 = vmatpush.msra.mxu0 0.0
  %357 = vmatpush.msra.mxu0 0.0
  %358 = vmatpush.msra.mxu0 0.0
  %359 = vmatpush.msra.mxu0 0.0
  %360 = vmatpush.msra.mxu0 %v342
  %361 = vmatpush.msra.mxu0 %v340
  %362 = vmatpush.msra.mxu0 %v338
  %363 = vmatpush.msra.mxu0 %v336
  %364 = vmatpush.msra.mxu0 %v334
  %365 = vmatpush.msra.mxu0 %v332
  %366 = vmatmul.f32.gmra.mxu0 %v345
  %v367 = vpop.f32.mrf.mxu0
  %v368 = vadd.f32 0.0, %v367
  %369 = vmatmul.f32.gmra.mxu0 %v348
  %v370 = vpop.f32.mrf.mxu0
  %v371 = vadd.f32 0.0, %v370
  %372 = vdwg.mxu0
  %373 = vmatpush.msra.mxu0 0.0
  %374 = vmatpush.msra.mxu0 0.0
  %375 = vmatpush.msra.mxu0 0.0
  %376 = vmatpush.msra.mxu0 0.0
  %377 = vmatpush.msra.mxu0 0.0
  %378 = vmatpush.msra.mxu0 0.0
  %379 = vmatpush.msra.mxu0 0.0
  %380 = vmatpush.msra.mxu0 0.0
  %381 = vmatpush.msra.mxu0 0.0
  %382 = vmatpush.msra.mxu0 0.0
  %383 = vmatpush.msra.mxu0 %v343
  %384 = vmatpush.msra.mxu0 %v341
  %385 = vmatpush.msra.mxu0 %v339
  %386 = vmatpush.msra.mxu0 %v337
  %387 = vmatpush.msra.mxu0 %v335
  %388 = vmatpush.msra.mxu0 %v333
  %389 = vmatmul.f32.gmra.mxu0 %v345
  %v390 = vpop.f32.mrf.mxu0
  %v391 = vadd.f32 0.0, %v390
  %392 = vmatmul.f32.gmra.mxu0 %v348
  %v393 = vpop.f32.mrf.mxu0
  %v394 = vadd.f32 0.0, %v393
  %395 = vdwg.mxu0
  %s396 = scalar_lea.vmem %s1, 96
  %v397 = vld [vmem:[%s396] sm:$0xff]
  %v398 = vld [vmem:[%s396 + $0x8] sm:$0xff]
  %v399 = vld [vmem:[%s396 + $0x10] sm:$0xff]
  %v400 = vld [vmem:[%s396 + $0x18] sm:$0xff]
  %v401 = vld [vmem:[%s396 + $0x20] sm:$0xff]
  %v402 = vld [vmem:[%s396 + $0x28] sm:$0xff]
  %v403 = vld [vmem:[%s396 + $0x30] sm:$0xff]
  %v404 = vld [vmem:[%s396 + $0x38] sm:$0xff]
  %v405 = vld [vmem:[%s396 + $0x40] sm:$0xff]
  %v406 = vld [vmem:[%s396 + $0x48] sm:$0xff]
  %v407 = vld [vmem:[%s396 + $0x50] sm:$0xff]
  %v408 = vld [vmem:[%s396 + $0x58] sm:$0xff]
  %v409 = vmax.f32 %v397, 0.0
  %v410 = vmax.f32 %v398, 0.0
  %v411 = vmax.f32 %v399, 0.0
  %v412 = vmax.f32 %v400, 0.0
  %v413 = vmax.f32 %v401, 0.0
  %v414 = vmax.f32 %v402, 0.0
  %v415 = vmax.f32 %v403, 0.0
  %v416 = vmax.f32 %v404, 0.0
  %v417 = vmax.f32 %v405, 0.0
  %v418 = vmax.f32 %v406, 0.0
  %v419 = vmax.f32 %v407, 0.0
  %v420 = vmax.f32 %v408, 0.0
  %421 = vmatpush.msra.mxu0 0.0
  %422 = vmatpush.msra.mxu0 0.0
  %423 = vmatpush.msra.mxu0 0.0
  %424 = vmatpush.msra.mxu0 0.0
  %425 = vmatpush.msra.mxu0 0.0
  %426 = vmatpush.msra.mxu0 0.0
  %427 = vmatpush.msra.mxu0 0.0
  %428 = vmatpush.msra.mxu0 0.0
  %429 = vmatpush.msra.mxu0 0.0
  %430 = vmatpush.msra.mxu0 0.0
  %431 = vmatpush.msra.mxu0 %v419
  %432 = vmatpush.msra.mxu0 %v417
  %433 = vmatpush.msra.mxu0 %v415
  %434 = vmatpush.msra.mxu0 %v413
  %435 = vmatpush.msra.mxu0 %v411
  %436 = vmatpush.msra.mxu0 %v409
  %437 = vmatmul.f32.gmra.mxu0 %v267
  %v438 = vpop.f32.mrf.mxu0
  %v439 = vadd.f32 0.0, %v438
  %440 = vmatmul.f32.gmra.mxu0 %v270
  %v441 = vpop.f32.mrf.mxu0
  %v442 = vadd.f32 0.0, %v441
  %443 = vdwg.mxu0
  %444 = vmatpush.msra.mxu0 0.0
  %445 = vmatpush.msra.mxu0 0.0
  %446 = vmatpush.msra.mxu0 0.0
  %447 = vmatpush.msra.mxu0 0.0
  %448 = vmatpush.msra.mxu0 0.0
  %449 = vmatpush.msra.mxu0 0.0
  %450 = vmatpush.msra.mxu0 0.0
  %451 = vmatpush.msra.mxu0 0.0
  %452 = vmatpush.msra.mxu0 0.0
  %453 = vmatpush.msra.mxu0 0.0
  %454 = vmatpush.msra.mxu0 %v420
  %455 = vmatpush.msra.mxu0 %v418
  %456 = vmatpush.msra.mxu0 %v416
  %457 = vmatpush.msra.mxu0 %v414
  %458 = vmatpush.msra.mxu0 %v412
  %459 = vmatpush.msra.mxu0 %v410
  %460 = vmatmul.f32.gmra.mxu0 %v267
  %v461 = vpop.f32.mrf.mxu0
  %v462 = vadd.f32 0.0, %v461
  %463 = vmatmul.f32.gmra.mxu0 %v270
  %v464 = vpop.f32.mrf.mxu0
  %v465 = vadd.f32 0.0, %v464
  %466 = vdwg.mxu0
  %s467 = scalar_lea.vmem %s2, 96
  %v468 = vld [vmem:[%s467] sm:$0xff]
  %v469 = vld [vmem:[%s467 + $0x8] sm:$0xff]
  %v470 = vld [vmem:[%s467 + $0x10] sm:$0xff]
  %v471 = vld [vmem:[%s467 + $0x18] sm:$0xff]
  %v472 = vld [vmem:[%s467 + $0x20] sm:$0xff]
  %v473 = vld [vmem:[%s467 + $0x28] sm:$0xff]
  %v474 = vld [vmem:[%s467 + $0x30] sm:$0xff]
  %v475 = vld [vmem:[%s467 + $0x38] sm:$0xff]
  %v476 = vld [vmem:[%s467 + $0x40] sm:$0xff]
  %v477 = vld [vmem:[%s467 + $0x48] sm:$0xff]
  %v478 = vld [vmem:[%s467 + $0x50] sm:$0xff]
  %v479 = vld [vmem:[%s467 + $0x58] sm:$0xff]
  %v480 = vmax.f32 %v468, 0.0
  %v481 = vmax.f32 %v469, 0.0
  %v482 = vmax.f32 %v470, 0.0
  %v483 = vmax.f32 %v471, 0.0
  %v484 = vmax.f32 %v472, 0.0
  %v485 = vmax.f32 %v473, 0.0
  %v486 = vmax.f32 %v474, 0.0
  %v487 = vmax.f32 %v475, 0.0
  %v488 = vmax.f32 %v476, 0.0
  %v489 = vmax.f32 %v477, 0.0
  %v490 = vmax.f32 %v478, 0.0
  %v491 = vmax.f32 %v479, 0.0
  %492 = vmatpush.msra.mxu0 0.0
  %493 = vmatpush.msra.mxu0 0.0
  %494 = vmatpush.msra.mxu0 0.0
  %495 = vmatpush.msra.mxu0 0.0
  %496 = vmatpush.msra.mxu0 0.0
  %497 = vmatpush.msra.mxu0 0.0
  %498 = vmatpush.msra.mxu0 0.0
  %499 = vmatpush.msra.mxu0 0.0
  %500 = vmatpush.msra.mxu0 0.0
  %501 = vmatpush.msra.mxu0 0.0
  %502 = vmatpush.msra.mxu0 %v490
  %503 = vmatpush.msra.mxu0 %v488
  %504 = vmatpush.msra.mxu0 %v486
  %505 = vmatpush.msra.mxu0 %v484
  %506 = vmatpush.msra.mxu0 %v482
  %507 = vmatpush.msra.mxu0 %v480
  %508 = vmatmul.f32.gmra.mxu0 %v345
  %v509 = vpop.f32.mrf.mxu0
  %v510 = vadd.f32 0.0, %v509
  %511 = vmatmul.f32.gmra.mxu0 %v348
  %v512 = vpop.f32.mrf.mxu0
  %v513 = vadd.f32 0.0, %v512
  %514 = vdwg.mxu0
  %515 = vmatpush.msra.mxu0 0.0
  %516 = vmatpush.msra.mxu0 0.0
  %517 = vmatpush.msra.mxu0 0.0
  %518 = vmatpush.msra.mxu0 0.0
  %519 = vmatpush.msra.mxu0 0.0
  %520 = vmatpush.msra.mxu0 0.0
  %521 = vmatpush.msra.mxu0 0.0
  %522 = vmatpush.msra.mxu0 0.0
  %523 = vmatpush.msra.mxu0 0.0
  %524 = vmatpush.msra.mxu0 0.0
  %525 = vmatpush.msra.mxu0 %v491
  %526 = vmatpush.msra.mxu0 %v489
  %527 = vmatpush.msra.mxu0 %v487
  %528 = vmatpush.msra.mxu0 %v485
  %529 = vmatpush.msra.mxu0 %v483
  %530 = vmatpush.msra.mxu0 %v481
  %531 = vmatmul.f32.gmra.mxu0 %v345
  %v532 = vpop.f32.mrf.mxu0
  %v533 = vadd.f32 0.0, %v532
  %534 = vmatmul.f32.gmra.mxu0 %v348
  %v535 = vpop.f32.mrf.mxu0
  %v536 = vadd.f32 0.0, %v535
  %537 = vdwg.mxu0
  %v538 = vadd.f32 %v290, %v313
  %v539 = vadd.f32 %v538, %v439
  %v540 = vadd.f32 %v539, %v462
  %541 = vadd.xlane.f32.xlu0 %v540
  %v542 = vpop.xlane.xlu0 %541
  %v543 = vadd.f32 %v293, %v316
  %v544 = vadd.f32 %v543, %v442
  %v545 = vadd.f32 %v544, %v465
  %546 = vadd.xlane.f32.xlu0 %v545
  %v547 = vpop.xlane.xlu0 %546
  %v548 = vadd.f32 %v368, %v391
  %v549 = vadd.f32 %v548, %v510
  %v550 = vadd.f32 %v549, %v533
  %551 = vadd.xlane.f32.xlu0 %v550
  %v552 = vpop.xlane.xlu0 %551
  %v553 = vadd.f32 %v371, %v394
  %v554 = vadd.f32 %v553, %v513
  %v555 = vadd.f32 %v554, %v536
  %556 = vadd.xlane.f32.xlu0 %v555
  %v557 = vpop.xlane.xlu0 %556
  %v558 = vmul.f32 %v290, %v290
  %v559 = vmul.f32 %v313, %v313
  %v560 = vmul.f32 %v439, %v439
  %v561 = vmul.f32 %v462, %v462
  %v562 = vmul.f32 %v293, %v293
  %v563 = vmul.f32 %v316, %v316
  %v564 = vmul.f32 %v442, %v442
  %v565 = vmul.f32 %v465, %v465
  %v566 = vmul.f32 %v368, %v368
  %v567 = vmul.f32 %v391, %v391
  %v568 = vmul.f32 %v510, %v510
  %v569 = vmul.f32 %v533, %v533
  %v570 = vmul.f32 %v371, %v371
  %v571 = vmul.f32 %v394, %v394
  %v572 = vmul.f32 %v513, %v513
  %v573 = vmul.f32 %v536, %v536
  %v574 = vadd.f32 %v558, %v559
  %v575 = vadd.f32 %v574, %v560
  %v576 = vadd.f32 %v575, %v561
  %577 = vadd.xlane.f32.xlu0 %v576
  %v578 = vpop.xlane.xlu0 %577
  %v579 = vadd.f32 %v562, %v563
  %v580 = vadd.f32 %v579, %v564
  %v581 = vadd.f32 %v580, %v565
  %582 = vadd.xlane.f32.xlu0 %v581
  %v583 = vpop.xlane.xlu0 %582
  %v584 = vadd.f32 %v566, %v567
  %v585 = vadd.f32 %v584, %v568
  %v586 = vadd.f32 %v585, %v569
  %587 = vadd.xlane.f32.xlu0 %v586
  %v588 = vpop.xlane.xlu0 %587
  %v589 = vadd.f32 %v570, %v571
  %v590 = vadd.f32 %v589, %v572
  %v591 = vadd.f32 %v590, %v573
  %592 = vadd.xlane.f32.xlu0 %v591
  %v593 = vpop.xlane.xlu0 %592
  %v594 = vmul.f32 %v542, 0.001953125
  %v595 = vmul.f32 %v547, 0.001953125
  %v596 = vmul.f32 %v552, 0.001953125
  %v597 = vmul.f32 %v557, 0.001953125
  %v598 = vmul.f32 %v578, 0.001953125
  %v599 = vmul.f32 %v583, 0.001953125
  %v600 = vmul.f32 %v588, 0.001953125
  %v601 = vmul.f32 %v593, 0.001953125
  %v602 = vmul.f32 %v594, %v594
  %v603 = vmul.f32 %v595, %v595
  %v604 = vmul.f32 %v596, %v596
  %v605 = vmul.f32 %v597, %v597
  %v606 = vsub.f32 %v598, %v602
  %v607 = vsub.f32 %v599, %v603
  %v608 = vsub.f32 %v600, %v604
  %v609 = vsub.f32 %v601, %v605
  %v610 = vmax.f32 %v606, 0.0
  %v611 = vmax.f32 %v607, 0.0
  %v612 = vmax.f32 %v608, 0.0
  %v613 = vmax.f32 %v609, 0.0
  %v614 = vsub.f32 %v290, %v594
  %v615 = vsub.f32 %v313, %v594
  %v616 = vsub.f32 %v439, %v594
  %v617 = vsub.f32 %v462, %v594
  %v618 = vsub.f32 %v293, %v595
  %v619 = vsub.f32 %v316, %v595
  %v620 = vsub.f32 %v442, %v595
  %v621 = vsub.f32 %v465, %v595
  %v622 = vsub.f32 %v368, %v596
  %v623 = vsub.f32 %v391, %v596
  %v624 = vsub.f32 %v510, %v596
  %v625 = vsub.f32 %v533, %v596
  %v626 = vsub.f32 %v371, %v597
  %v627 = vsub.f32 %v394, %v597
  %v628 = vsub.f32 %v513, %v597
  %v629 = vsub.f32 %v536, %v597
  %v630 = vadd.f32 %v610, 1e-05
  %v631 = vadd.f32 %v611, 1e-05
  %v632 = vadd.f32 %v612, 1e-05
  %v633 = vadd.f32 %v613, 1e-05
  %v634 = vrsqrt.pop %v630
  %v635 = vmul.f32 %v634, %v630
  %v636 = vmul.f32 %v635, %v634
  %v637 = vmul.f32 0.5, %v636
  %v638 = vsub.f32 1.5, %v637
  %v639 = vmul.f32 %v634, %v638
  %vm640 = vweird.f32 %v630
  %vm641 = vweird.f32 %v634
  %vm642 = vmor %vm640, %vm641
  %v643 = vsel %vm642, %v634, %v639
  %v644 = vrsqrt.pop %v631
  %v645 = vmul.f32 %v644, %v631
  %v646 = vmul.f32 %v645, %v644
  %v647 = vmul.f32 0.5, %v646
  %v648 = vsub.f32 1.5, %v647
  %v649 = vmul.f32 %v644, %v648
  %vm650 = vweird.f32 %v631
  %vm651 = vweird.f32 %v644
  %vm652 = vmor %vm650, %vm651
  %v653 = vsel %vm652, %v644, %v649
  %v654 = vrsqrt.pop %v632
  %v655 = vmul.f32 %v654, %v632
  %v656 = vmul.f32 %v655, %v654
  %v657 = vmul.f32 0.5, %v656
  %v658 = vsub.f32 1.5, %v657
  %v659 = vmul.f32 %v654, %v658
  %vm660 = vweird.f32 %v632
  %vm661 = vweird.f32 %v654
  %vm662 = vmor %vm660, %vm661
  %v663 = vsel %vm662, %v654, %v659
  %v664 = vrsqrt.pop %v633
  %v665 = vmul.f32 %v664, %v633
  %v666 = vmul.f32 %v665, %v664
  %v667 = vmul.f32 0.5, %v666
  %v668 = vsub.f32 1.5, %v667
  %v669 = vmul.f32 %v664, %v668
  %vm670 = vweird.f32 %v633
  %vm671 = vweird.f32 %v664
  %vm672 = vmor %vm670, %vm671
  %v673 = vsel %vm672, %v664, %v669
  %v674 = vmul.f32 %v614, %v643
  %v675 = vmul.f32 %v615, %v643
  %v676 = vmul.f32 %v616, %v643
  %v677 = vmul.f32 %v617, %v643
  %v678 = vmul.f32 %v618, %v653
  %v679 = vmul.f32 %v619, %v653
  %v680 = vmul.f32 %v620, %v653
  %v681 = vmul.f32 %v621, %v653
  %v682 = vmul.f32 %v622, %v663
  %v683 = vmul.f32 %v623, %v663
  %v684 = vmul.f32 %v624, %v663
  %v685 = vmul.f32 %v625, %v663
  %v686 = vmul.f32 %v626, %v673
  %v687 = vmul.f32 %v627, %v673
  %v688 = vmul.f32 %v628, %v673
  %v689 = vmul.f32 %v629, %v673
  %v690 = vld [vmem:[%s5] sm:$0xff]
  %v691 = vld [vmem:[%s5 + $0x8] sm:$0xff]
  %v692 = vld [vmem:[%s5 + $0x10] sm:$0xff]
  %v693 = vld [vmem:[%s5 + $0x18] sm:$0xff]
  %v694 = vld [vmem:[%s5 + $0x20] sm:$0xff]
  %v695 = vld [vmem:[%s5 + $0x28] sm:$0xff]
  %v696 = vld [vmem:[%s5 + $0x30] sm:$0xff]
  %v697 = vld [vmem:[%s5 + $0x38] sm:$0xff]
  %v698 = vld [vmem:[%s5 + $0x40] sm:$0xff]
  %v699 = vld [vmem:[%s5 + $0x48] sm:$0xff]
  %v700 = vld [vmem:[%s5 + $0x50] sm:$0xff]
  %v701 = vld [vmem:[%s5 + $0x58] sm:$0xff]
  %v702 = vld [vmem:[%s5 + $0x60] sm:$0xff]
  %v703 = vld [vmem:[%s5 + $0x68] sm:$0xff]
  %v704 = vld [vmem:[%s5 + $0x70] sm:$0xff]
  %v705 = vld [vmem:[%s5 + $0x78] sm:$0xff]
  %v706 = vld [vmem:[%s5 + $0x80] sm:$0xff]
  %v707 = vld [vmem:[%s5 + $0x88] sm:$0xff]
  %v708 = vld [vmem:[%s5 + $0x90] sm:$0xff]
  %v709 = vld [vmem:[%s5 + $0x98] sm:$0xff]
  %v710 = vld [vmem:[%s5 + $0xa0] sm:$0xff]
  %v711 = vld [vmem:[%s5 + $0xa8] sm:$0xff]
  %v712 = vld [vmem:[%s5 + $0xb0] sm:$0xff]
  %v713 = vld [vmem:[%s5 + $0xb8] sm:$0xff]
  %v714 = vld [vmem:[%s5 + $0xc0] sm:$0xff]
  %v715 = vld [vmem:[%s5 + $0xc8] sm:$0xff]
  %v716 = vld [vmem:[%s5 + $0xd0] sm:$0xff]
  %v717 = vld [vmem:[%s5 + $0xd8] sm:$0xff]
  %v718 = vld [vmem:[%s5 + $0xe0] sm:$0xff]
  %v719 = vld [vmem:[%s5 + $0xe8] sm:$0xff]
  %v720 = vld [vmem:[%s5 + $0xf0] sm:$0xff]
  %v721 = vld [vmem:[%s5 + $0xf8] sm:$0xff]
  %v722 = vld [vmem:[%s5 + $0x100] sm:$0xff]
  %v723 = vld [vmem:[%s5 + $0x108] sm:$0xff]
  %v724 = vld [vmem:[%s5 + $0x110] sm:$0xff]
  %v725 = vld [vmem:[%s5 + $0x118] sm:$0xff]
  %v726 = vld [vmem:[%s5 + $0x120] sm:$0xff]
  %v727 = vld [vmem:[%s5 + $0x128] sm:$0xff]
  %v728 = vld [vmem:[%s5 + $0x130] sm:$0xff]
  %v729 = vld [vmem:[%s5 + $0x138] sm:$0xff]
  %v730 = vld [vmem:[%s5 + $0x140] sm:$0xff]
  %v731 = vld [vmem:[%s5 + $0x148] sm:$0xff]
  %v732 = vld [vmem:[%s5 + $0x150] sm:$0xff]
  %v733 = vld [vmem:[%s5 + $0x158] sm:$0xff]
  %v734 = vld [vmem:[%s5 + $0x160] sm:$0xff]
  %v735 = vld [vmem:[%s5 + $0x168] sm:$0xff]
  %v736 = vld [vmem:[%s5 + $0x170] sm:$0xff]
  %v737 = vld [vmem:[%s5 + $0x178] sm:$0xff]
  %v738 = vld [vmem:[%s5 + $0x180] sm:$0xff]
  %v739 = vld [vmem:[%s5 + $0x188] sm:$0xff]
  %v740 = vld [vmem:[%s5 + $0x190] sm:$0xff]
  %v741 = vld [vmem:[%s5 + $0x198] sm:$0xff]
  %v742 = vld [vmem:[%s5 + $0x1a0] sm:$0xff]
  %v743 = vld [vmem:[%s5 + $0x1a8] sm:$0xff]
  %v744 = vld [vmem:[%s5 + $0x1b0] sm:$0xff]
  %v745 = vld [vmem:[%s5 + $0x1b8] sm:$0xff]
  %v746 = vld [vmem:[%s5 + $0x1c0] sm:$0xff]
  %v747 = vld [vmem:[%s5 + $0x1c8] sm:$0xff]
  %v748 = vld [vmem:[%s5 + $0x1d0] sm:$0xff]
  %v749 = vld [vmem:[%s5 + $0x1d8] sm:$0xff]
  %v750 = vld [vmem:[%s5 + $0x1e0] sm:$0xff]
  %v751 = vld [vmem:[%s5 + $0x1e8] sm:$0xff]
  %v752 = vld [vmem:[%s5 + $0x1f0] sm:$0xff]
  %v753 = vld [vmem:[%s5 + $0x1f8] sm:$0xff]
  %754 = vmatpush.msra.mxu0 %v720
  %755 = vmatpush.msra.mxu0 %v718
  %756 = vmatpush.msra.mxu0 %v716
  %757 = vmatpush.msra.mxu0 %v714
  %758 = vmatpush.msra.mxu0 %v712
  %759 = vmatpush.msra.mxu0 %v710
  %760 = vmatpush.msra.mxu0 %v708
  %761 = vmatpush.msra.mxu0 %v706
  %762 = vmatpush.msra.mxu0 %v704
  %763 = vmatpush.msra.mxu0 %v702
  %764 = vmatpush.msra.mxu0 %v700
  %765 = vmatpush.msra.mxu0 %v698
  %766 = vmatpush.msra.mxu0 %v696
  %767 = vmatpush.msra.mxu0 %v694
  %768 = vmatpush.msra.mxu0 %v692
  %769 = vmatpush.msra.mxu0 %v690
  %770 = vmatmul.f32.gmra.mxu0 %v674
  %v771 = vpop.f32.mrf.mxu0
  %v772 = vadd.f32 0.0, %v771
  %773 = vmatmul.f32.gmra.mxu0 %v678
  %v774 = vpop.f32.mrf.mxu0
  %v775 = vadd.f32 0.0, %v774
  %776 = vmatmul.f32.gmra.mxu0 %v682
  %v777 = vpop.f32.mrf.mxu0
  %v778 = vadd.f32 0.0, %v777
  %779 = vmatmul.f32.gmra.mxu0 %v686
  %v780 = vpop.f32.mrf.mxu0
  %v781 = vadd.f32 0.0, %v780
  %782 = vdwg.mxu0
  %783 = vmatpush.msra.mxu0 %v752
  %784 = vmatpush.msra.mxu0 %v750
  %785 = vmatpush.msra.mxu0 %v748
  %786 = vmatpush.msra.mxu0 %v746
  %787 = vmatpush.msra.mxu0 %v744
  %788 = vmatpush.msra.mxu0 %v742
  %789 = vmatpush.msra.mxu0 %v740
  %790 = vmatpush.msra.mxu0 %v738
  %791 = vmatpush.msra.mxu0 %v736
  %792 = vmatpush.msra.mxu0 %v734
  %793 = vmatpush.msra.mxu0 %v732
  %794 = vmatpush.msra.mxu0 %v730
  %795 = vmatpush.msra.mxu0 %v728
  %796 = vmatpush.msra.mxu0 %v726
  %797 = vmatpush.msra.mxu0 %v724
  %798 = vmatpush.msra.mxu0 %v722
  %799 = vmatmul.f32.gmra.mxu0 %v675
  %v800 = vpop.f32.mrf.mxu0
  %v801 = vadd.f32 %v772, %v800
  %802 = vmatmul.f32.gmra.mxu0 %v679
  %v803 = vpop.f32.mrf.mxu0
  %v804 = vadd.f32 %v775, %v803
  %805 = vmatmul.f32.gmra.mxu0 %v683
  %v806 = vpop.f32.mrf.mxu0
  %v807 = vadd.f32 %v778, %v806
  %808 = vmatmul.f32.gmra.mxu0 %v687
  %v809 = vpop.f32.mrf.mxu0
  %v810 = vadd.f32 %v781, %v809
  %811 = vdwg.mxu0
  %812 = vmatpush.msra.mxu0 %v721
  %813 = vmatpush.msra.mxu0 %v719
  %814 = vmatpush.msra.mxu0 %v717
  %815 = vmatpush.msra.mxu0 %v715
  %816 = vmatpush.msra.mxu0 %v713
  %817 = vmatpush.msra.mxu0 %v711
  %818 = vmatpush.msra.mxu0 %v709
  %819 = vmatpush.msra.mxu0 %v707
  %820 = vmatpush.msra.mxu0 %v705
  %821 = vmatpush.msra.mxu0 %v703
  %822 = vmatpush.msra.mxu0 %v701
  %823 = vmatpush.msra.mxu0 %v699
  %824 = vmatpush.msra.mxu0 %v697
  %825 = vmatpush.msra.mxu0 %v695
  %826 = vmatpush.msra.mxu0 %v693
  %827 = vmatpush.msra.mxu0 %v691
  %828 = vmatmul.f32.gmra.mxu0 %v674
  %v829 = vpop.f32.mrf.mxu0
  %v830 = vadd.f32 0.0, %v829
  %831 = vmatmul.f32.gmra.mxu0 %v678
  %v832 = vpop.f32.mrf.mxu0
  %v833 = vadd.f32 0.0, %v832
  %834 = vmatmul.f32.gmra.mxu0 %v682
  %v835 = vpop.f32.mrf.mxu0
  %v836 = vadd.f32 0.0, %v835
  %837 = vmatmul.f32.gmra.mxu0 %v686
  %v838 = vpop.f32.mrf.mxu0
  %v839 = vadd.f32 0.0, %v838
  %840 = vdwg.mxu0
  %841 = vmatpush.msra.mxu0 %v753
  %842 = vmatpush.msra.mxu0 %v751
  %843 = vmatpush.msra.mxu0 %v749
  %844 = vmatpush.msra.mxu0 %v747
  %845 = vmatpush.msra.mxu0 %v745
  %846 = vmatpush.msra.mxu0 %v743
  %847 = vmatpush.msra.mxu0 %v741
  %848 = vmatpush.msra.mxu0 %v739
  %849 = vmatpush.msra.mxu0 %v737
  %850 = vmatpush.msra.mxu0 %v735
  %851 = vmatpush.msra.mxu0 %v733
  %852 = vmatpush.msra.mxu0 %v731
  %853 = vmatpush.msra.mxu0 %v729
  %854 = vmatpush.msra.mxu0 %v727
  %855 = vmatpush.msra.mxu0 %v725
  %856 = vmatpush.msra.mxu0 %v723
  %857 = vmatmul.f32.gmra.mxu0 %v675
  %v858 = vpop.f32.mrf.mxu0
  %v859 = vadd.f32 %v830, %v858
  %860 = vmatmul.f32.gmra.mxu0 %v679
  %v861 = vpop.f32.mrf.mxu0
  %v862 = vadd.f32 %v833, %v861
  %863 = vmatmul.f32.gmra.mxu0 %v683
  %v864 = vpop.f32.mrf.mxu0
  %v865 = vadd.f32 %v836, %v864
  %866 = vmatmul.f32.gmra.mxu0 %v687
  %v867 = vpop.f32.mrf.mxu0
  %v868 = vadd.f32 %v839, %v867
  %869 = vdwg.mxu0
  %870 = vmatpush.msra.mxu0 %v720
  %871 = vmatpush.msra.mxu0 %v718
  %872 = vmatpush.msra.mxu0 %v716
  %873 = vmatpush.msra.mxu0 %v714
  %874 = vmatpush.msra.mxu0 %v712
  %875 = vmatpush.msra.mxu0 %v710
  %876 = vmatpush.msra.mxu0 %v708
  %877 = vmatpush.msra.mxu0 %v706
  %878 = vmatpush.msra.mxu0 %v704
  %879 = vmatpush.msra.mxu0 %v702
  %880 = vmatpush.msra.mxu0 %v700
  %881 = vmatpush.msra.mxu0 %v698
  %882 = vmatpush.msra.mxu0 %v696
  %883 = vmatpush.msra.mxu0 %v694
  %884 = vmatpush.msra.mxu0 %v692
  %885 = vmatpush.msra.mxu0 %v690
  %886 = vmatmul.f32.gmra.mxu0 %v676
  %v887 = vpop.f32.mrf.mxu0
  %v888 = vadd.f32 0.0, %v887
  %889 = vmatmul.f32.gmra.mxu0 %v680
  %v890 = vpop.f32.mrf.mxu0
  %v891 = vadd.f32 0.0, %v890
  %892 = vmatmul.f32.gmra.mxu0 %v684
  %v893 = vpop.f32.mrf.mxu0
  %v894 = vadd.f32 0.0, %v893
  %895 = vmatmul.f32.gmra.mxu0 %v688
  %v896 = vpop.f32.mrf.mxu0
  %v897 = vadd.f32 0.0, %v896
  %898 = vdwg.mxu0
  %899 = vmatpush.msra.mxu0 %v752
  %900 = vmatpush.msra.mxu0 %v750
  %901 = vmatpush.msra.mxu0 %v748
  %902 = vmatpush.msra.mxu0 %v746
  %903 = vmatpush.msra.mxu0 %v744
  %904 = vmatpush.msra.mxu0 %v742
  %905 = vmatpush.msra.mxu0 %v740
  %906 = vmatpush.msra.mxu0 %v738
  %907 = vmatpush.msra.mxu0 %v736
  %908 = vmatpush.msra.mxu0 %v734
  %909 = vmatpush.msra.mxu0 %v732
  %910 = vmatpush.msra.mxu0 %v730
  %911 = vmatpush.msra.mxu0 %v728
  %912 = vmatpush.msra.mxu0 %v726
  %913 = vmatpush.msra.mxu0 %v724
  %914 = vmatpush.msra.mxu0 %v722
  %915 = vmatmul.f32.gmra.mxu0 %v677
  %v916 = vpop.f32.mrf.mxu0
  %v917 = vadd.f32 %v888, %v916
  %918 = vmatmul.f32.gmra.mxu0 %v681
  %v919 = vpop.f32.mrf.mxu0
  %v920 = vadd.f32 %v891, %v919
  %921 = vmatmul.f32.gmra.mxu0 %v685
  %v922 = vpop.f32.mrf.mxu0
  %v923 = vadd.f32 %v894, %v922
  %924 = vmatmul.f32.gmra.mxu0 %v689
  %v925 = vpop.f32.mrf.mxu0
  %v926 = vadd.f32 %v897, %v925
  %927 = vdwg.mxu0
  %928 = vmatpush.msra.mxu0 %v721
  %929 = vmatpush.msra.mxu0 %v719
  %930 = vmatpush.msra.mxu0 %v717
  %931 = vmatpush.msra.mxu0 %v715
  %932 = vmatpush.msra.mxu0 %v713
  %933 = vmatpush.msra.mxu0 %v711
  %934 = vmatpush.msra.mxu0 %v709
  %935 = vmatpush.msra.mxu0 %v707
  %936 = vmatpush.msra.mxu0 %v705
  %937 = vmatpush.msra.mxu0 %v703
  %938 = vmatpush.msra.mxu0 %v701
  %939 = vmatpush.msra.mxu0 %v699
  %940 = vmatpush.msra.mxu0 %v697
  %941 = vmatpush.msra.mxu0 %v695
  %942 = vmatpush.msra.mxu0 %v693
  %943 = vmatpush.msra.mxu0 %v691
  %944 = vmatmul.f32.gmra.mxu0 %v676
  %v945 = vpop.f32.mrf.mxu0
  %v946 = vadd.f32 0.0, %v945
  %947 = vmatmul.f32.gmra.mxu0 %v680
  %v948 = vpop.f32.mrf.mxu0
  %v949 = vadd.f32 0.0, %v948
  %950 = vmatmul.f32.gmra.mxu0 %v684
  %v951 = vpop.f32.mrf.mxu0
  %v952 = vadd.f32 0.0, %v951
  %953 = vmatmul.f32.gmra.mxu0 %v688
  %v954 = vpop.f32.mrf.mxu0
  %v955 = vadd.f32 0.0, %v954
  %956 = vdwg.mxu0
  %957 = vmatpush.msra.mxu0 %v753
  %958 = vmatpush.msra.mxu0 %v751
  %959 = vmatpush.msra.mxu0 %v749
  %960 = vmatpush.msra.mxu0 %v747
  %961 = vmatpush.msra.mxu0 %v745
  %962 = vmatpush.msra.mxu0 %v743
  %963 = vmatpush.msra.mxu0 %v741
  %964 = vmatpush.msra.mxu0 %v739
  %965 = vmatpush.msra.mxu0 %v737
  %966 = vmatpush.msra.mxu0 %v735
  %967 = vmatpush.msra.mxu0 %v733
  %968 = vmatpush.msra.mxu0 %v731
  %969 = vmatpush.msra.mxu0 %v729
  %970 = vmatpush.msra.mxu0 %v727
  %971 = vmatpush.msra.mxu0 %v725
  %972 = vmatpush.msra.mxu0 %v723
  %973 = vmatmul.f32.gmra.mxu0 %v677
  %v974 = vpop.f32.mrf.mxu0
  %v975 = vadd.f32 %v946, %v974
  %976 = vmatmul.f32.gmra.mxu0 %v681
  %v977 = vpop.f32.mrf.mxu0
  %v978 = vadd.f32 %v949, %v977
  %979 = vmatmul.f32.gmra.mxu0 %v685
  %v980 = vpop.f32.mrf.mxu0
  %v981 = vadd.f32 %v952, %v980
  %982 = vmatmul.f32.gmra.mxu0 %v689
  %v983 = vpop.f32.mrf.mxu0
  %v984 = vadd.f32 %v955, %v983
  %985 = vdwg.mxu0
  %986 = vrot.lane.b32.xlu0 %v674, 1
  %v987 = vpop.permute.xlu0 %986
  %988 = vrot.lane.b32.xlu0 %v678, 1
  %v989 = vpop.permute.xlu0 %988
  %990 = vrot.lane.b32.xlu0 %v682, 1
  %v991 = vpop.permute.xlu0 %990
  %992 = vrot.lane.b32.xlu0 %v686, 1
  %v993 = vpop.permute.xlu0 %992
  %994 = vrot.lane.b32.xlu0 %v675, 1
  %v995 = vpop.permute.xlu0 %994
  %996 = vrot.lane.b32.xlu0 %v679, 1
  %v997 = vpop.permute.xlu0 %996
  %998 = vrot.lane.b32.xlu0 %v683, 1
  %v999 = vpop.permute.xlu0 %998
  %1000 = vrot.lane.b32.xlu0 %v687, 1
  %v1001 = vpop.permute.xlu0 %1000
  %1002 = vrot.lane.b32.xlu0 %v676, 1
  %v1003 = vpop.permute.xlu0 %1002
  %1004 = vrot.lane.b32.xlu0 %v680, 1
  %v1005 = vpop.permute.xlu0 %1004
  %1006 = vrot.lane.b32.xlu0 %v684, 1
  %v1007 = vpop.permute.xlu0 %1006
  %1008 = vrot.lane.b32.xlu0 %v688, 1
  %v1009 = vpop.permute.xlu0 %1008
  %1010 = vrot.lane.b32.xlu0 %v677, 1
  %v1011 = vpop.permute.xlu0 %1010
  %1012 = vrot.lane.b32.xlu0 %v681, 1
  %v1013 = vpop.permute.xlu0 %1012
  %1014 = vrot.lane.b32.xlu0 %v685, 1
  %v1015 = vpop.permute.xlu0 %1014
  %1016 = vrot.lane.b32.xlu0 %v689, 1
  %v1017 = vpop.permute.xlu0 %1016
  %v1018 = vsel %vm56, %v1003, %v1011
  %v1019 = vsel %vm56, %v1005, %v1013
  %v1020 = vsel %vm56, %v1007, %v1015
  %v1021 = vsel %vm56, %v1009, %v1017
  %v1022 = vsel %vm56, %v995, %v1003
  %v1023 = vsel %vm56, %v997, %v1005
  %v1024 = vsel %vm56, %v999, %v1007
  %v1025 = vsel %vm56, %v1001, %v1009
  %v1026 = vsel %vm56, %v987, %v995
  %v1027 = vsel %vm56, %v989, %v997
  %v1028 = vsel %vm56, %v991, %v999
  %v1029 = vsel %vm56, %v993, %v1001
  %v1030 = vsel %vm56, %v1011, %v987
  %v1031 = vsel %vm56, %v1013, %v989
  %v1032 = vsel %vm56, %v1015, %v991
  %v1033 = vsel %vm56, %v1017, %v993
  %v1034 = vperm.slane %v73, 0
  %v1035 = vperm.slane %v74, 0
  %v1036 = vperm.slane %v75, 0
  %v1037 = vperm.slane %v76, 0
  %v1038 = vadd.f32 %v1030, %v1034
  %v1039 = vadd.f32 %v1026, %v1035
  %v1040 = vadd.f32 %v1022, %v1036
  %v1041 = vadd.f32 %v1018, %v1037
  %v1042 = vadd.f32 %v1031, %v1034
  %v1043 = vadd.f32 %v1027, %v1035
  %v1044 = vadd.f32 %v1023, %v1036
  %v1045 = vadd.f32 %v1019, %v1037
  %v1046 = vadd.f32 %v1032, %v1034
  %v1047 = vadd.f32 %v1028, %v1035
  %v1048 = vadd.f32 %v1024, %v1036
  %v1049 = vadd.f32 %v1020, %v1037
  %v1050 = vadd.f32 %v1033, %v1034
  %v1051 = vadd.f32 %v1029, %v1035
  %v1052 = vadd.f32 %v1025, %v1036
  %v1053 = vadd.f32 %v1021, %v1037
  %v1054 = vmax.f32 %v674, %v1038
  %v1055 = vmax.f32 %v675, %v1039
  %v1056 = vmax.f32 %v676, %v1040
  %v1057 = vmax.f32 %v677, %v1041
  %v1058 = vmax.f32 %v678, %v1042
  %v1059 = vmax.f32 %v679, %v1043
  %v1060 = vmax.f32 %v680, %v1044
  %v1061 = vmax.f32 %v681, %v1045
  %v1062 = vmax.f32 %v682, %v1046
  %v1063 = vmax.f32 %v683, %v1047
  %v1064 = vmax.f32 %v684, %v1048
  %v1065 = vmax.f32 %v685, %v1049
  %v1066 = vmax.f32 %v686, %v1050
  %v1067 = vmax.f32 %v687, %v1051
  %v1068 = vmax.f32 %v688, %v1052
  %v1069 = vmax.f32 %v689, %v1053
  %1070 = vrot.lane.b32.xlu0 %v674, 127
  %v1071 = vpop.permute.xlu0 %1070
  %1072 = vrot.lane.b32.xlu0 %v678, 127
  %v1073 = vpop.permute.xlu0 %1072
  %1074 = vrot.lane.b32.xlu0 %v682, 127
  %v1075 = vpop.permute.xlu0 %1074
  %1076 = vrot.lane.b32.xlu0 %v686, 127
  %v1077 = vpop.permute.xlu0 %1076
  %1078 = vrot.lane.b32.xlu0 %v675, 127
  %v1079 = vpop.permute.xlu0 %1078
  %1080 = vrot.lane.b32.xlu0 %v679, 127
  %v1081 = vpop.permute.xlu0 %1080
  %1082 = vrot.lane.b32.xlu0 %v683, 127
  %v1083 = vpop.permute.xlu0 %1082
  %1084 = vrot.lane.b32.xlu0 %v687, 127
  %v1085 = vpop.permute.xlu0 %1084
  %1086 = vrot.lane.b32.xlu0 %v676, 127
  %v1087 = vpop.permute.xlu0 %1086
  %1088 = vrot.lane.b32.xlu0 %v680, 127
  %v1089 = vpop.permute.xlu0 %1088
  %1090 = vrot.lane.b32.xlu0 %v684, 127
  %v1091 = vpop.permute.xlu0 %1090
  %1092 = vrot.lane.b32.xlu0 %v688, 127
  %v1093 = vpop.permute.xlu0 %1092
  %1094 = vrot.lane.b32.xlu0 %v677, 127
  %v1095 = vpop.permute.xlu0 %1094
  %1096 = vrot.lane.b32.xlu0 %v681, 127
  %v1097 = vpop.permute.xlu0 %1096
  %1098 = vrot.lane.b32.xlu0 %v685, 127
  %v1099 = vpop.permute.xlu0 %1098
  %1100 = vrot.lane.b32.xlu0 %v689, 127
  %v1101 = vpop.permute.xlu0 %1100
  %v1102 = vsel %vm94, %v1087, %v1095
  %v1103 = vsel %vm94, %v1089, %v1097
  %v1104 = vsel %vm94, %v1091, %v1099
  %v1105 = vsel %vm94, %v1093, %v1101
  %v1106 = vsel %vm94, %v1079, %v1087
  %v1107 = vsel %vm94, %v1081, %v1089
  %v1108 = vsel %vm94, %v1083, %v1091
  %v1109 = vsel %vm94, %v1085, %v1093
  %v1110 = vsel %vm94, %v1071, %v1079
  %v1111 = vsel %vm94, %v1073, %v1081
  %v1112 = vsel %vm94, %v1075, %v1083
  %v1113 = vsel %vm94, %v1077, %v1085
  %v1114 = vsel %vm94, %v1095, %v1071
  %v1115 = vsel %vm94, %v1097, %v1073
  %v1116 = vsel %vm94, %v1099, %v1075
  %v1117 = vsel %vm94, %v1101, %v1077
  %v1118 = vperm.slane %v103, 0
  %v1119 = vperm.slane %v104, 0
  %v1120 = vperm.slane %v105, 0
  %v1121 = vperm.slane %v106, 0
  %v1122 = vadd.f32 %v1110, %v1118
  %v1123 = vadd.f32 %v1106, %v1119
  %v1124 = vadd.f32 %v1102, %v1120
  %v1125 = vadd.f32 %v1114, %v1121
  %v1126 = vadd.f32 %v1111, %v1118
  %v1127 = vadd.f32 %v1107, %v1119
  %v1128 = vadd.f32 %v1103, %v1120
  %v1129 = vadd.f32 %v1115, %v1121
  %v1130 = vadd.f32 %v1112, %v1118
  %v1131 = vadd.f32 %v1108, %v1119
  %v1132 = vadd.f32 %v1104, %v1120
  %v1133 = vadd.f32 %v1116, %v1121
  %v1134 = vadd.f32 %v1113, %v1118
  %v1135 = vadd.f32 %v1109, %v1119
  %v1136 = vadd.f32 %v1105, %v1120
  %v1137 = vadd.f32 %v1117, %v1121
  %v1138 = vmax.f32 %v1054, %v1122
  %v1139 = vmax.f32 %v1055, %v1123
  %v1140 = vmax.f32 %v1056, %v1124
  %v1141 = vmax.f32 %v1057, %v1125
  %v1142 = vmax.f32 %v1058, %v1126
  %v1143 = vmax.f32 %v1059, %v1127
  %v1144 = vmax.f32 %v1060, %v1128
  %v1145 = vmax.f32 %v1061, %v1129
  %v1146 = vmax.f32 %v1062, %v1130
  %v1147 = vmax.f32 %v1063, %v1131
  %v1148 = vmax.f32 %v1064, %v1132
  %v1149 = vmax.f32 %v1065, %v1133
  %v1150 = vmax.f32 %v1066, %v1134
  %v1151 = vmax.f32 %v1067, %v1135
  %v1152 = vmax.f32 %v1068, %v1136
  %v1153 = vmax.f32 %v1069, %v1137
  %1154 = vrot.lane.b32.xlu0 %v1138, 16
  %v1155 = vpop.permute.xlu0 %1154
  %1156 = vrot.lane.b32.xlu0 %v1142, 16
  %v1157 = vpop.permute.xlu0 %1156
  %1158 = vrot.lane.b32.xlu0 %v1146, 16
  %v1159 = vpop.permute.xlu0 %1158
  %1160 = vrot.lane.b32.xlu0 %v1150, 16
  %v1161 = vpop.permute.xlu0 %1160
  %1162 = vrot.lane.b32.xlu0 %v1139, 16
  %v1163 = vpop.permute.xlu0 %1162
  %1164 = vrot.lane.b32.xlu0 %v1143, 16
  %v1165 = vpop.permute.xlu0 %1164
  %1166 = vrot.lane.b32.xlu0 %v1147, 16
  %v1167 = vpop.permute.xlu0 %1166
  %1168 = vrot.lane.b32.xlu0 %v1151, 16
  %v1169 = vpop.permute.xlu0 %1168
  %1170 = vrot.lane.b32.xlu0 %v1140, 16
  %v1171 = vpop.permute.xlu0 %1170
  %1172 = vrot.lane.b32.xlu0 %v1144, 16
  %v1173 = vpop.permute.xlu0 %1172
  %1174 = vrot.lane.b32.xlu0 %v1148, 16
  %v1175 = vpop.permute.xlu0 %1174
  %1176 = vrot.lane.b32.xlu0 %v1152, 16
  %v1177 = vpop.permute.xlu0 %1176
  %1178 = vrot.lane.b32.xlu0 %v1141, 16
  %v1179 = vpop.permute.xlu0 %1178
  %1180 = vrot.lane.b32.xlu0 %v1145, 16
  %v1181 = vpop.permute.xlu0 %1180
  %1182 = vrot.lane.b32.xlu0 %v1149, 16
  %v1183 = vpop.permute.xlu0 %1182
  %1184 = vrot.lane.b32.xlu0 %v1153, 16
  %v1185 = vpop.permute.xlu0 %1184
  %v1186 = vsel %vm124, %v1171, %v1179
  %v1187 = vsel %vm124, %v1173, %v1181
  %v1188 = vsel %vm124, %v1175, %v1183
  %v1189 = vsel %vm124, %v1177, %v1185
  %v1190 = vsel %vm124, %v1163, %v1171
  %v1191 = vsel %vm124, %v1165, %v1173
  %v1192 = vsel %vm124, %v1167, %v1175
  %v1193 = vsel %vm124, %v1169, %v1177
  %v1194 = vsel %vm124, %v1155, %v1163
  %v1195 = vsel %vm124, %v1157, %v1165
  %v1196 = vsel %vm124, %v1159, %v1167
  %v1197 = vsel %vm124, %v1161, %v1169
  %v1198 = vsel %vm124, %v1179, %v1155
  %v1199 = vsel %vm124, %v1181, %v1157
  %v1200 = vsel %vm124, %v1183, %v1159
  %v1201 = vsel %vm124, %v1185, %v1161
  %v1202 = vperm.slane %v173, 1
  %v1203 = vperm.slane %v174, 1
  %v1204 = vperm.slane %v175, 1
  %v1205 = vperm.slane %v176, 1
  %v1206 = vadd.f32 %v1198, %v1202
  %v1207 = vadd.f32 %v1194, %v1203
  %v1208 = vadd.f32 %v1190, %v1204
  %v1209 = vadd.f32 %v1186, %v1205
  %v1210 = vadd.f32 %v1199, %v1202
  %v1211 = vadd.f32 %v1195, %v1203
  %v1212 = vadd.f32 %v1191, %v1204
  %v1213 = vadd.f32 %v1187, %v1205
  %v1214 = vadd.f32 %v1200, %v1202
  %v1215 = vadd.f32 %v1196, %v1203
  %v1216 = vadd.f32 %v1192, %v1204
  %v1217 = vadd.f32 %v1188, %v1205
  %v1218 = vadd.f32 %v1201, %v1202
  %v1219 = vadd.f32 %v1197, %v1203
  %v1220 = vadd.f32 %v1193, %v1204
  %v1221 = vadd.f32 %v1189, %v1205
  %v1222 = vmax.f32 %v1138, %v1206
  %v1223 = vmax.f32 %v1139, %v1207
  %v1224 = vmax.f32 %v1140, %v1208
  %v1225 = vmax.f32 %v1141, %v1209
  %v1226 = vmax.f32 %v1142, %v1210
  %v1227 = vmax.f32 %v1143, %v1211
  %v1228 = vmax.f32 %v1144, %v1212
  %v1229 = vmax.f32 %v1145, %v1213
  %v1230 = vmax.f32 %v1146, %v1214
  %v1231 = vmax.f32 %v1147, %v1215
  %v1232 = vmax.f32 %v1148, %v1216
  %v1233 = vmax.f32 %v1149, %v1217
  %v1234 = vmax.f32 %v1150, %v1218
  %v1235 = vmax.f32 %v1151, %v1219
  %v1236 = vmax.f32 %v1152, %v1220
  %v1237 = vmax.f32 %v1153, %v1221
  %1238 = vrot.lane.b32.xlu0 %v1138, 112
  %v1239 = vpop.permute.xlu0 %1238
  %1240 = vrot.lane.b32.xlu0 %v1142, 112
  %v1241 = vpop.permute.xlu0 %1240
  %1242 = vrot.lane.b32.xlu0 %v1146, 112
  %v1243 = vpop.permute.xlu0 %1242
  %1244 = vrot.lane.b32.xlu0 %v1150, 112
  %v1245 = vpop.permute.xlu0 %1244
  %1246 = vrot.lane.b32.xlu0 %v1139, 112
  %v1247 = vpop.permute.xlu0 %1246
  %1248 = vrot.lane.b32.xlu0 %v1143, 112
  %v1249 = vpop.permute.xlu0 %1248
  %1250 = vrot.lane.b32.xlu0 %v1147, 112
  %v1251 = vpop.permute.xlu0 %1250
  %1252 = vrot.lane.b32.xlu0 %v1151, 112
  %v1253 = vpop.permute.xlu0 %1252
  %1254 = vrot.lane.b32.xlu0 %v1140, 112
  %v1255 = vpop.permute.xlu0 %1254
  %1256 = vrot.lane.b32.xlu0 %v1144, 112
  %v1257 = vpop.permute.xlu0 %1256
  %1258 = vrot.lane.b32.xlu0 %v1148, 112
  %v1259 = vpop.permute.xlu0 %1258
  %1260 = vrot.lane.b32.xlu0 %v1152, 112
  %v1261 = vpop.permute.xlu0 %1260
  %1262 = vrot.lane.b32.xlu0 %v1141, 112
  %v1263 = vpop.permute.xlu0 %1262
  %1264 = vrot.lane.b32.xlu0 %v1145, 112
  %v1265 = vpop.permute.xlu0 %1264
  %1266 = vrot.lane.b32.xlu0 %v1149, 112
  %v1267 = vpop.permute.xlu0 %1266
  %1268 = vrot.lane.b32.xlu0 %v1153, 112
  %v1269 = vpop.permute.xlu0 %1268
  %v1270 = vsel %vm194, %v1255, %v1263
  %v1271 = vsel %vm194, %v1257, %v1265
  %v1272 = vsel %vm194, %v1259, %v1267
  %v1273 = vsel %vm194, %v1261, %v1269
  %v1274 = vsel %vm194, %v1247, %v1255
  %v1275 = vsel %vm194, %v1249, %v1257
  %v1276 = vsel %vm194, %v1251, %v1259
  %v1277 = vsel %vm194, %v1253, %v1261
  %v1278 = vsel %vm194, %v1239, %v1247
  %v1279 = vsel %vm194, %v1241, %v1249
  %v1280 = vsel %vm194, %v1243, %v1251
  %v1281 = vsel %vm194, %v1245, %v1253
  %v1282 = vsel %vm194, %v1263, %v1239
  %v1283 = vsel %vm194, %v1265, %v1241
  %v1284 = vsel %vm194, %v1267, %v1243
  %v1285 = vsel %vm194, %v1269, %v1245
  %v1286 = vperm.slane %v235, 1
  %v1287 = vperm.slane %v236, 1
  %v1288 = vperm.slane %v237, 1
  %v1289 = vperm.slane %v238, 1
  %v1290 = vadd.f32 %v1278, %v1286
  %v1291 = vadd.f32 %v1274, %v1287
  %v1292 = vadd.f32 %v1270, %v1288
  %v1293 = vadd.f32 %v1282, %v1289
  %v1294 = vadd.f32 %v1279, %v1286
  %v1295 = vadd.f32 %v1275, %v1287
  %v1296 = vadd.f32 %v1271, %v1288
  %v1297 = vadd.f32 %v1283, %v1289
  %v1298 = vadd.f32 %v1280, %v1286
  %v1299 = vadd.f32 %v1276, %v1287
  %v1300 = vadd.f32 %v1272, %v1288
  %v1301 = vadd.f32 %v1284, %v1289
  %v1302 = vadd.f32 %v1281, %v1286
  %v1303 = vadd.f32 %v1277, %v1287
  %v1304 = vadd.f32 %v1273, %v1288
  %v1305 = vadd.f32 %v1285, %v1289
  %v1306 = vmax.f32 %v1222, %v1290
  %v1307 = vmax.f32 %v1223, %v1291
  %v1308 = vmax.f32 %v1224, %v1292
  %v1309 = vmax.f32 %v1225, %v1293
  %v1310 = vmax.f32 %v1226, %v1294
  %v1311 = vmax.f32 %v1227, %v1295
  %v1312 = vmax.f32 %v1228, %v1296
  %v1313 = vmax.f32 %v1229, %v1297
  %v1314 = vmax.f32 %v1230, %v1298
  %v1315 = vmax.f32 %v1231, %v1299
  %v1316 = vmax.f32 %v1232, %v1300
  %v1317 = vmax.f32 %v1233, %v1301
  %v1318 = vmax.f32 %v1234, %v1302
  %v1319 = vmax.f32 %v1235, %v1303
  %v1320 = vmax.f32 %v1236, %v1304
  %v1321 = vmax.f32 %v1237, %v1305
  %v1322 = vadd.f32 %v801, %v859
  %v1323 = vadd.f32 %v1322, %v917
  %v1324 = vadd.f32 %v1323, %v975
  %1325 = vadd.xlane.f32.xlu0 %v1324
  %v1326 = vpop.xlane.xlu0 %1325
  %v1327 = vadd.f32 %v804, %v862
  %v1328 = vadd.f32 %v1327, %v920
  %v1329 = vadd.f32 %v1328, %v978
  %1330 = vadd.xlane.f32.xlu0 %v1329
  %v1331 = vpop.xlane.xlu0 %1330
  %v1332 = vadd.f32 %v807, %v865
  %v1333 = vadd.f32 %v1332, %v923
  %v1334 = vadd.f32 %v1333, %v981
  %1335 = vadd.xlane.f32.xlu0 %v1334
  %v1336 = vpop.xlane.xlu0 %1335
  %v1337 = vadd.f32 %v810, %v868
  %v1338 = vadd.f32 %v1337, %v926
  %v1339 = vadd.f32 %v1338, %v984
  %1340 = vadd.xlane.f32.xlu0 %v1339
  %v1341 = vpop.xlane.xlu0 %1340
  %v1342 = vadd.f32 %v1306, %v1307
  %v1343 = vadd.f32 %v1342, %v1308
  %v1344 = vadd.f32 %v1343, %v1309
  %1345 = vadd.xlane.f32.xlu0 %v1344
  %v1346 = vpop.xlane.xlu0 %1345
  %v1347 = vadd.f32 %v1310, %v1311
  %v1348 = vadd.f32 %v1347, %v1312
  %v1349 = vadd.f32 %v1348, %v1313
  %1350 = vadd.xlane.f32.xlu0 %v1349
  %v1351 = vpop.xlane.xlu0 %1350
  %v1352 = vadd.f32 %v1314, %v1315
  %v1353 = vadd.f32 %v1352, %v1316
  %v1354 = vadd.f32 %v1353, %v1317
  %1355 = vadd.xlane.f32.xlu0 %v1354
  %v1356 = vpop.xlane.xlu0 %1355
  %v1357 = vadd.f32 %v1318, %v1319
  %v1358 = vadd.f32 %v1357, %v1320
  %v1359 = vadd.f32 %v1358, %v1321
  %1360 = vadd.xlane.f32.xlu0 %v1359
  %v1361 = vpop.xlane.xlu0 %1360
  %v1362 = vmul.f32 %v801, %v801
  %v1363 = vmul.f32 %v859, %v859
  %v1364 = vmul.f32 %v917, %v917
  %v1365 = vmul.f32 %v975, %v975
  %v1366 = vmul.f32 %v804, %v804
  %v1367 = vmul.f32 %v862, %v862
  %v1368 = vmul.f32 %v920, %v920
  %v1369 = vmul.f32 %v978, %v978
  %v1370 = vmul.f32 %v807, %v807
  %v1371 = vmul.f32 %v865, %v865
  %v1372 = vmul.f32 %v923, %v923
  %v1373 = vmul.f32 %v981, %v981
  %v1374 = vmul.f32 %v810, %v810
  %v1375 = vmul.f32 %v868, %v868
  %v1376 = vmul.f32 %v926, %v926
  %v1377 = vmul.f32 %v984, %v984
  %v1378 = vmul.f32 %v1306, %v1306
  %v1379 = vmul.f32 %v1307, %v1307
  %v1380 = vmul.f32 %v1308, %v1308
  %v1381 = vmul.f32 %v1309, %v1309
  %v1382 = vmul.f32 %v1310, %v1310
  %v1383 = vmul.f32 %v1311, %v1311
  %v1384 = vmul.f32 %v1312, %v1312
  %v1385 = vmul.f32 %v1313, %v1313
  %v1386 = vmul.f32 %v1314, %v1314
  %v1387 = vmul.f32 %v1315, %v1315
  %v1388 = vmul.f32 %v1316, %v1316
  %v1389 = vmul.f32 %v1317, %v1317
  %v1390 = vmul.f32 %v1318, %v1318
  %v1391 = vmul.f32 %v1319, %v1319
  %v1392 = vmul.f32 %v1320, %v1320
  %v1393 = vmul.f32 %v1321, %v1321
  %v1394 = vadd.f32 %v1362, %v1363
  %v1395 = vadd.f32 %v1394, %v1364
  %v1396 = vadd.f32 %v1395, %v1365
  %1397 = vadd.xlane.f32.xlu0 %v1396
  %v1398 = vpop.xlane.xlu0 %1397
  %v1399 = vadd.f32 %v1366, %v1367
  %v1400 = vadd.f32 %v1399, %v1368
  %v1401 = vadd.f32 %v1400, %v1369
  %1402 = vadd.xlane.f32.xlu0 %v1401
  %v1403 = vpop.xlane.xlu0 %1402
  %v1404 = vadd.f32 %v1370, %v1371
  %v1405 = vadd.f32 %v1404, %v1372
  %v1406 = vadd.f32 %v1405, %v1373
  %1407 = vadd.xlane.f32.xlu0 %v1406
  %v1408 = vpop.xlane.xlu0 %1407
  %v1409 = vadd.f32 %v1374, %v1375
  %v1410 = vadd.f32 %v1409, %v1376
  %v1411 = vadd.f32 %v1410, %v1377
  %1412 = vadd.xlane.f32.xlu0 %v1411
  %v1413 = vpop.xlane.xlu0 %1412
  %v1414 = vadd.f32 %v1378, %v1379
  %v1415 = vadd.f32 %v1414, %v1380
  %v1416 = vadd.f32 %v1415, %v1381
  %1417 = vadd.xlane.f32.xlu0 %v1416
  %v1418 = vpop.xlane.xlu0 %1417
  %v1419 = vadd.f32 %v1382, %v1383
  %v1420 = vadd.f32 %v1419, %v1384
  %v1421 = vadd.f32 %v1420, %v1385
  %1422 = vadd.xlane.f32.xlu0 %v1421
  %v1423 = vpop.xlane.xlu0 %1422
  %v1424 = vadd.f32 %v1386, %v1387
  %v1425 = vadd.f32 %v1424, %v1388
  %v1426 = vadd.f32 %v1425, %v1389
  %1427 = vadd.xlane.f32.xlu0 %v1426
  %v1428 = vpop.xlane.xlu0 %1427
  %v1429 = vadd.f32 %v1390, %v1391
  %v1430 = vadd.f32 %v1429, %v1392
  %v1431 = vadd.f32 %v1430, %v1393
  %1432 = vadd.xlane.f32.xlu0 %v1431
  %v1433 = vpop.xlane.xlu0 %1432
  %v1434 = vmul.f32 %v1326, 0.001953125
  %v1435 = vmul.f32 %v1331, 0.001953125
  %v1436 = vmul.f32 %v1336, 0.001953125
  %v1437 = vmul.f32 %v1341, 0.001953125
  %v1438 = vmul.f32 %v1346, 0.001953125
  %v1439 = vmul.f32 %v1351, 0.001953125
  %v1440 = vmul.f32 %v1356, 0.001953125
  %v1441 = vmul.f32 %v1361, 0.001953125
  %v1442 = vmul.f32 %v1398, 0.001953125
  %v1443 = vmul.f32 %v1403, 0.001953125
  %v1444 = vmul.f32 %v1408, 0.001953125
  %v1445 = vmul.f32 %v1413, 0.001953125
  %v1446 = vmul.f32 %v1418, 0.001953125
  %v1447 = vmul.f32 %v1423, 0.001953125
  %v1448 = vmul.f32 %v1428, 0.001953125
  %v1449 = vmul.f32 %v1433, 0.001953125
  %v1450 = vmul.f32 %v1434, %v1434
  %v1451 = vmul.f32 %v1435, %v1435
  %v1452 = vmul.f32 %v1436, %v1436
  %v1453 = vmul.f32 %v1437, %v1437
  %v1454 = vmul.f32 %v1438, %v1438
  %v1455 = vmul.f32 %v1439, %v1439
  %v1456 = vmul.f32 %v1440, %v1440
  %v1457 = vmul.f32 %v1441, %v1441
  %v1458 = vsub.f32 %v1442, %v1450
  %v1459 = vsub.f32 %v1443, %v1451
  %v1460 = vsub.f32 %v1444, %v1452
  %v1461 = vsub.f32 %v1445, %v1453
  %v1462 = vsub.f32 %v1446, %v1454
  %v1463 = vsub.f32 %v1447, %v1455
  %v1464 = vsub.f32 %v1448, %v1456
  %v1465 = vsub.f32 %v1449, %v1457
  %v1466 = vmax.f32 %v1458, 0.0
  %v1467 = vmax.f32 %v1459, 0.0
  %v1468 = vmax.f32 %v1460, 0.0
  %v1469 = vmax.f32 %v1461, 0.0
  %v1470 = vmax.f32 %v1462, 0.0
  %v1471 = vmax.f32 %v1463, 0.0
  %v1472 = vmax.f32 %v1464, 0.0
  %v1473 = vmax.f32 %v1465, 0.0
  %v1474 = vsub.f32 %v801, %v1434
  %v1475 = vsub.f32 %v859, %v1434
  %v1476 = vsub.f32 %v917, %v1434
  %v1477 = vsub.f32 %v975, %v1434
  %v1478 = vsub.f32 %v804, %v1435
  %v1479 = vsub.f32 %v862, %v1435
  %v1480 = vsub.f32 %v920, %v1435
  %v1481 = vsub.f32 %v978, %v1435
  %v1482 = vsub.f32 %v807, %v1436
  %v1483 = vsub.f32 %v865, %v1436
  %v1484 = vsub.f32 %v923, %v1436
  %v1485 = vsub.f32 %v981, %v1436
  %v1486 = vsub.f32 %v810, %v1437
  %v1487 = vsub.f32 %v868, %v1437
  %v1488 = vsub.f32 %v926, %v1437
  %v1489 = vsub.f32 %v984, %v1437
  %v1490 = vsub.f32 %v1306, %v1438
  %v1491 = vsub.f32 %v1307, %v1438
  %v1492 = vsub.f32 %v1308, %v1438
  %v1493 = vsub.f32 %v1309, %v1438
  %v1494 = vsub.f32 %v1310, %v1439
  %v1495 = vsub.f32 %v1311, %v1439
  %v1496 = vsub.f32 %v1312, %v1439
  %v1497 = vsub.f32 %v1313, %v1439
  %v1498 = vsub.f32 %v1314, %v1440
  %v1499 = vsub.f32 %v1315, %v1440
  %v1500 = vsub.f32 %v1316, %v1440
  %v1501 = vsub.f32 %v1317, %v1440
  %v1502 = vsub.f32 %v1318, %v1441
  %v1503 = vsub.f32 %v1319, %v1441
  %v1504 = vsub.f32 %v1320, %v1441
  %v1505 = vsub.f32 %v1321, %v1441
  %v1506 = vadd.f32 %v1466, 1e-05
  %v1507 = vadd.f32 %v1467, 1e-05
  %v1508 = vadd.f32 %v1468, 1e-05
  %v1509 = vadd.f32 %v1469, 1e-05
  %v1510 = vadd.f32 %v1470, 1e-05
  %v1511 = vadd.f32 %v1471, 1e-05
  %v1512 = vadd.f32 %v1472, 1e-05
  %v1513 = vadd.f32 %v1473, 1e-05
  %v1514 = vrsqrt.pop %v1506
  %v1515 = vmul.f32 %v1514, %v1506
  %v1516 = vmul.f32 %v1515, %v1514
  %v1517 = vmul.f32 0.5, %v1516
  %v1518 = vsub.f32 1.5, %v1517
  %v1519 = vmul.f32 %v1514, %v1518
  %vm1520 = vweird.f32 %v1506
  %vm1521 = vweird.f32 %v1514
  %vm1522 = vmor %vm1520, %vm1521
  %v1523 = vsel %vm1522, %v1514, %v1519
  %v1524 = vrsqrt.pop %v1507
  %v1525 = vmul.f32 %v1524, %v1507
  %v1526 = vmul.f32 %v1525, %v1524
  %v1527 = vmul.f32 0.5, %v1526
  %v1528 = vsub.f32 1.5, %v1527
  %v1529 = vmul.f32 %v1524, %v1528
  %vm1530 = vweird.f32 %v1507
  %vm1531 = vweird.f32 %v1524
  %vm1532 = vmor %vm1530, %vm1531
  %v1533 = vsel %vm1532, %v1524, %v1529
  %v1534 = vrsqrt.pop %v1508
  %v1535 = vmul.f32 %v1534, %v1508
  %v1536 = vmul.f32 %v1535, %v1534
  %v1537 = vmul.f32 0.5, %v1536
  %v1538 = vsub.f32 1.5, %v1537
  %v1539 = vmul.f32 %v1534, %v1538
  %vm1540 = vweird.f32 %v1508
  %vm1541 = vweird.f32 %v1534
  %vm1542 = vmor %vm1540, %vm1541
  %v1543 = vsel %vm1542, %v1534, %v1539
  %v1544 = vrsqrt.pop %v1509
  %v1545 = vmul.f32 %v1544, %v1509
  %v1546 = vmul.f32 %v1545, %v1544
  %v1547 = vmul.f32 0.5, %v1546
  %v1548 = vsub.f32 1.5, %v1547
  %v1549 = vmul.f32 %v1544, %v1548
  %vm1550 = vweird.f32 %v1509
  %vm1551 = vweird.f32 %v1544
  %vm1552 = vmor %vm1550, %vm1551
  %v1553 = vsel %vm1552, %v1544, %v1549
  %v1554 = vrsqrt.pop %v1510
  %v1555 = vmul.f32 %v1554, %v1510
  %v1556 = vmul.f32 %v1555, %v1554
  %v1557 = vmul.f32 0.5, %v1556
  %v1558 = vsub.f32 1.5, %v1557
  %v1559 = vmul.f32 %v1554, %v1558
  %vm1560 = vweird.f32 %v1510
  %vm1561 = vweird.f32 %v1554
  %vm1562 = vmor %vm1560, %vm1561
  %v1563 = vsel %vm1562, %v1554, %v1559
  %v1564 = vrsqrt.pop %v1511
  %v1565 = vmul.f32 %v1564, %v1511
  %v1566 = vmul.f32 %v1565, %v1564
  %v1567 = vmul.f32 0.5, %v1566
  %v1568 = vsub.f32 1.5, %v1567
  %v1569 = vmul.f32 %v1564, %v1568
  %vm1570 = vweird.f32 %v1511
  %vm1571 = vweird.f32 %v1564
  %vm1572 = vmor %vm1570, %vm1571
  %v1573 = vsel %vm1572, %v1564, %v1569
  %v1574 = vrsqrt.pop %v1512
  %v1575 = vmul.f32 %v1574, %v1512
  %v1576 = vmul.f32 %v1575, %v1574
  %v1577 = vmul.f32 0.5, %v1576
  %v1578 = vsub.f32 1.5, %v1577
  %v1579 = vmul.f32 %v1574, %v1578
  %vm1580 = vweird.f32 %v1512
  %vm1581 = vweird.f32 %v1574
  %vm1582 = vmor %vm1580, %vm1581
  %v1583 = vsel %vm1582, %v1574, %v1579
  %v1584 = vrsqrt.pop %v1513
  %v1585 = vmul.f32 %v1584, %v1513
  %v1586 = vmul.f32 %v1585, %v1584
  %v1587 = vmul.f32 0.5, %v1586
  %v1588 = vsub.f32 1.5, %v1587
  %v1589 = vmul.f32 %v1584, %v1588
  %vm1590 = vweird.f32 %v1513
  %vm1591 = vweird.f32 %v1584
  %vm1592 = vmor %vm1590, %vm1591
  %v1593 = vsel %vm1592, %v1584, %v1589
  %v1594 = vmul.f32 %v1474, %v1523
  %v1595 = vmul.f32 %v1475, %v1523
  %v1596 = vmul.f32 %v1476, %v1523
  %v1597 = vmul.f32 %v1477, %v1523
  %v1598 = vmul.f32 %v1478, %v1533
  %v1599 = vmul.f32 %v1479, %v1533
  %v1600 = vmul.f32 %v1480, %v1533
  %v1601 = vmul.f32 %v1481, %v1533
  %v1602 = vmul.f32 %v1482, %v1543
  %v1603 = vmul.f32 %v1483, %v1543
  %v1604 = vmul.f32 %v1484, %v1543
  %v1605 = vmul.f32 %v1485, %v1543
  %v1606 = vmul.f32 %v1486, %v1553
  %v1607 = vmul.f32 %v1487, %v1553
  %v1608 = vmul.f32 %v1488, %v1553
  %v1609 = vmul.f32 %v1489, %v1553
  %v1610 = vmul.f32 %v1490, %v1563
  %v1611 = vmul.f32 %v1491, %v1563
  %v1612 = vmul.f32 %v1492, %v1563
  %v1613 = vmul.f32 %v1493, %v1563
  %v1614 = vmul.f32 %v1494, %v1573
  %v1615 = vmul.f32 %v1495, %v1573
  %v1616 = vmul.f32 %v1496, %v1573
  %v1617 = vmul.f32 %v1497, %v1573
  %v1618 = vmul.f32 %v1498, %v1583
  %v1619 = vmul.f32 %v1499, %v1583
  %v1620 = vmul.f32 %v1500, %v1583
  %v1621 = vmul.f32 %v1501, %v1583
  %v1622 = vmul.f32 %v1502, %v1593
  %v1623 = vmul.f32 %v1503, %v1593
  %v1624 = vmul.f32 %v1504, %v1593
  %v1625 = vmul.f32 %v1505, %v1593
  %1626 = vst [vmem:[#allocation2] sm:$0xff] %v674
  %1627 = vst [vmem:[#allocation2 + $0x8] sm:$0xff] %v675
  %1628 = vst [vmem:[#allocation2 + $0x10] sm:$0xff] %v676
  %1629 = vst [vmem:[#allocation2 + $0x18] sm:$0xff] %v677
  %1630 = vst [vmem:[#allocation2 + $0x20] sm:$0xff] %v678
  %1631 = vst [vmem:[#allocation2 + $0x28] sm:$0xff] %v679
  %1632 = vst [vmem:[#allocation2 + $0x30] sm:$0xff] %v680
  %1633 = vst [vmem:[#allocation2 + $0x38] sm:$0xff] %v681
  %1634 = vst [vmem:[#allocation2 + $0x40] sm:$0xff] %v1594
  %1635 = vst [vmem:[#allocation2 + $0x48] sm:$0xff] %v1595
  %1636 = vst [vmem:[#allocation2 + $0x50] sm:$0xff] %v1596
  %1637 = vst [vmem:[#allocation2 + $0x58] sm:$0xff] %v1597
  %1638 = vst [vmem:[#allocation2 + $0x60] sm:$0xff] %v1598
  %1639 = vst [vmem:[#allocation2 + $0x68] sm:$0xff] %v1599
  %1640 = vst [vmem:[#allocation2 + $0x70] sm:$0xff] %v1600
  %1641 = vst [vmem:[#allocation2 + $0x78] sm:$0xff] %v1601
  %1642 = vst [vmem:[#allocation2 + $0x80] sm:$0xff] %v1610
  %1643 = vst [vmem:[#allocation2 + $0x88] sm:$0xff] %v1611
  %1644 = vst [vmem:[#allocation2 + $0x90] sm:$0xff] %v1612
  %1645 = vst [vmem:[#allocation2 + $0x98] sm:$0xff] %v1613
  %1646 = vst [vmem:[#allocation2 + $0xa0] sm:$0xff] %v1614
  %1647 = vst [vmem:[#allocation2 + $0xa8] sm:$0xff] %v1615
  %1648 = vst [vmem:[#allocation2 + $0xb0] sm:$0xff] %v1616
  %1649 = vst [vmem:[#allocation2 + $0xb8] sm:$0xff] %v1617
  %1650 = vst [vmem:[#allocation2 + $0xc0] sm:$0xff] %v682
  %1651 = vst [vmem:[#allocation2 + $0xc8] sm:$0xff] %v683
  %1652 = vst [vmem:[#allocation2 + $0xd0] sm:$0xff] %v684
  %1653 = vst [vmem:[#allocation2 + $0xd8] sm:$0xff] %v685
  %1654 = vst [vmem:[#allocation2 + $0xe0] sm:$0xff] %v686
  %1655 = vst [vmem:[#allocation2 + $0xe8] sm:$0xff] %v687
  %1656 = vst [vmem:[#allocation2 + $0xf0] sm:$0xff] %v688
  %1657 = vst [vmem:[#allocation2 + $0xf8] sm:$0xff] %v689
  %1658 = vst [vmem:[#allocation2 + $0x100] sm:$0xff] %v1602
  %1659 = vst [vmem:[#allocation2 + $0x108] sm:$0xff] %v1603
  %1660 = vst [vmem:[#allocation2 + $0x110] sm:$0xff] %v1604
  %1661 = vst [vmem:[#allocation2 + $0x118] sm:$0xff] %v1605
  %1662 = vst [vmem:[#allocation2 + $0x120] sm:$0xff] %v1606
  %1663 = vst [vmem:[#allocation2 + $0x128] sm:$0xff] %v1607
  %1664 = vst [vmem:[#allocation2 + $0x130] sm:$0xff] %v1608
  %1665 = vst [vmem:[#allocation2 + $0x138] sm:$0xff] %v1609
  %1666 = vst [vmem:[#allocation2 + $0x140] sm:$0xff] %v1618
  %1667 = vst [vmem:[#allocation2 + $0x148] sm:$0xff] %v1619
  %1668 = vst [vmem:[#allocation2 + $0x150] sm:$0xff] %v1620
  %1669 = vst [vmem:[#allocation2 + $0x158] sm:$0xff] %v1621
  %1670 = vst [vmem:[#allocation2 + $0x160] sm:$0xff] %v1622
  %1671 = vst [vmem:[#allocation2 + $0x168] sm:$0xff] %v1623
  %1672 = vst [vmem:[#allocation2 + $0x170] sm:$0xff] %v1624
  %1673 = vst [vmem:[#allocation2 + $0x178] sm:$0xff] %v1625
  %v1674 = vld [vmem:[%s6] sm:$0xff]
  %v1675 = vld [vmem:[%s6 + $0x8] sm:$0xff]
  %v1676 = vld [vmem:[#allocation2] sm:$0xff]
  %v1677 = vld [vmem:[#allocation2 + $0x8] sm:$0xff]
  %v1678 = vld [vmem:[#allocation2 + $0x10] sm:$0xff]
  %v1679 = vld [vmem:[#allocation2 + $0x18] sm:$0xff]
  %v1680 = vld [vmem:[#allocation2 + $0x20] sm:$0xff]
  %v1681 = vld [vmem:[#allocation2 + $0x28] sm:$0xff]
  %v1682 = vld [vmem:[#allocation2 + $0x30] sm:$0xff]
  %v1683 = vld [vmem:[#allocation2 + $0x38] sm:$0xff]
  %v1684 = vld [vmem:[#allocation2 + $0x40] sm:$0xff]
  %v1685 = vld [vmem:[#allocation2 + $0x48] sm:$0xff]
  %v1686 = vld [vmem:[#allocation2 + $0x50] sm:$0xff]
  %v1687 = vld [vmem:[#allocation2 + $0x58] sm:$0xff]
  %v1688 = vld [vmem:[#allocation2 + $0x60] sm:$0xff]
  %v1689 = vld [vmem:[#allocation2 + $0x68] sm:$0xff]
  %v1690 = vld [vmem:[#allocation2 + $0x70] sm:$0xff]
  %v1691 = vld [vmem:[#allocation2 + $0x78] sm:$0xff]
  %v1692 = vld [vmem:[#allocation2 + $0x80] sm:$0xff]
  %v1693 = vld [vmem:[#allocation2 + $0x88] sm:$0xff]
  %v1694 = vld [vmem:[#allocation2 + $0x90] sm:$0xff]
  %v1695 = vld [vmem:[#allocation2 + $0x98] sm:$0xff]
  %v1696 = vld [vmem:[#allocation2 + $0xa0] sm:$0xff]
  %v1697 = vld [vmem:[#allocation2 + $0xa8] sm:$0xff]
  %v1698 = vld [vmem:[#allocation2 + $0xb0] sm:$0xff]
  %v1699 = vld [vmem:[#allocation2 + $0xb8] sm:$0xff]
  %v1700 = vld [vmem:[#allocation2 + $0xc0] sm:$0xff]
  %v1701 = vld [vmem:[#allocation2 + $0xc8] sm:$0xff]
  %v1702 = vld [vmem:[#allocation2 + $0xd0] sm:$0xff]
  %v1703 = vld [vmem:[#allocation2 + $0xd8] sm:$0xff]
  %v1704 = vld [vmem:[#allocation2 + $0xe0] sm:$0xff]
  %v1705 = vld [vmem:[#allocation2 + $0xe8] sm:$0xff]
  %v1706 = vld [vmem:[#allocation2 + $0xf0] sm:$0xff]
  %v1707 = vld [vmem:[#allocation2 + $0xf8] sm:$0xff]
  %v1708 = vld [vmem:[#allocation2 + $0x100] sm:$0xff]
  %v1709 = vld [vmem:[#allocation2 + $0x108] sm:$0xff]
  %v1710 = vld [vmem:[#allocation2 + $0x110] sm:$0xff]
  %v1711 = vld [vmem:[#allocation2 + $0x118] sm:$0xff]
  %v1712 = vld [vmem:[#allocation2 + $0x120] sm:$0xff]
  %v1713 = vld [vmem:[#allocation2 + $0x128] sm:$0xff]
  %v1714 = vld [vmem:[#allocation2 + $0x130] sm:$0xff]
  %v1715 = vld [vmem:[#allocation2 + $0x138] sm:$0xff]
  %v1716 = vld [vmem:[#allocation2 + $0x140] sm:$0xff]
  %v1717 = vld [vmem:[#allocation2 + $0x148] sm:$0xff]
  %v1718 = vld [vmem:[#allocation2 + $0x150] sm:$0xff]
  %v1719 = vld [vmem:[#allocation2 + $0x158] sm:$0xff]
  %v1720 = vld [vmem:[#allocation2 + $0x160] sm:$0xff]
  %v1721 = vld [vmem:[#allocation2 + $0x168] sm:$0xff]
  %v1722 = vld [vmem:[#allocation2 + $0x170] sm:$0xff]
  %v1723 = vld [vmem:[#allocation2 + $0x178] sm:$0xff]
  %vm1724 = vcmask 785408
  %v1726 = vsel %vm1724, %v1674, 0
  %v1729 = vsel %vm1724, %v1675, 0
  %1731 = vmatpush.msra.mxu0 0.0
  %1732 = vmatpush.msra.mxu0 0.0
  %1733 = vmatpush.msra.mxu0 0.0
  %1734 = vmatpush.msra.mxu0 0.0
  %1735 = vmatpush.msra.mxu0 %v1720
  %1736 = vmatpush.msra.mxu0 %v1716
  %1737 = vmatpush.msra.mxu0 %v1712
  %1738 = vmatpush.msra.mxu0 %v1708
  %1739 = vmatpush.msra.mxu0 %v1704
  %1740 = vmatpush.msra.mxu0 %v1700
  %1741 = vmatpush.msra.mxu0 %v1696
  %1742 = vmatpush.msra.mxu0 %v1692
  %1743 = vmatpush.msra.mxu0 %v1688
  %1744 = vmatpush.msra.mxu0 %v1684
  %1745 = vmatpush.msra.mxu0 %v1680
  %1746 = vmatpush.msra.mxu0 %v1676
  %1747 = vmatmul.f32.gmra.mxu0 %v1726
  %v1748 = vpop.f32.mrf.mxu0
  %v1749 = vadd.f32 0.0, %v1748
  %1750 = vmatmul.f32.gmra.mxu0 %v1729
  %v1751 = vpop.f32.mrf.mxu0
  %v1752 = vadd.f32 0.0, %v1751
  %1753 = vdwg.mxu0
  %1754 = vmatpush.msra.mxu0 0.0
  %1755 = vmatpush.msra.mxu0 0.0
  %1756 = vmatpush.msra.mxu0 0.0
  %1757 = vmatpush.msra.mxu0 0.0
  %1758 = vmatpush.msra.mxu0 %v1721
  %1759 = vmatpush.msra.mxu0 %v1717
  %1760 = vmatpush.msra.mxu0 %v1713
  %1761 = vmatpush.msra.mxu0 %v1709
  %1762 = vmatpush.msra.mxu0 %v1705
  %1763 = vmatpush.msra.mxu0 %v1701
  %1764 = vmatpush.msra.mxu0 %v1697
  %1765 = vmatpush.msra.mxu0 %v1693
  %1766 = vmatpush.msra.mxu0 %v1689
  %1767 = vmatpush.msra.mxu0 %v1685
  %1768 = vmatpush.msra.mxu0 %v1681
  %1769 = vmatpush.msra.mxu0 %v1677
  %1770 = vmatmul.f32.gmra.mxu0 %v1726
  %v1771 = vpop.f32.mrf.mxu0
  %v1772 = vadd.f32 0.0, %v1771
  %1773 = vmatmul.f32.gmra.mxu0 %v1729
  %v1774 = vpop.f32.mrf.mxu0
  %v1775 = vadd.f32 0.0, %v1774
  %1776 = vdwg.mxu0
  %1777 = vmatpush.msra.mxu0 0.0
  %1778 = vmatpush.msra.mxu0 0.0
  %1779 = vmatpush.msra.mxu0 0.0
  %1780 = vmatpush.msra.mxu0 0.0
  %1781 = vmatpush.msra.mxu0 %v1722
  %1782 = vmatpush.msra.mxu0 %v1718
  %1783 = vmatpush.msra.mxu0 %v1714
  %1784 = vmatpush.msra.mxu0 %v1710
  %1785 = vmatpush.msra.mxu0 %v1706
  %1786 = vmatpush.msra.mxu0 %v1702
  %1787 = vmatpush.msra.mxu0 %v1698
  %1788 = vmatpush.msra.mxu0 %v1694
  %1789 = vmatpush.msra.mxu0 %v1690
  %1790 = vmatpush.msra.mxu0 %v1686
  %1791 = vmatpush.msra.mxu0 %v1682
  %1792 = vmatpush.msra.mxu0 %v1678
  %1793 = vmatmul.f32.gmra.mxu0 %v1726
  %v1794 = vpop.f32.mrf.mxu0
  %v1795 = vadd.f32 0.0, %v1794
  %1796 = vmatmul.f32.gmra.mxu0 %v1729
  %v1797 = vpop.f32.mrf.mxu0
  %v1798 = vadd.f32 0.0, %v1797
  %1799 = vdwg.mxu0
  %1800 = vmatpush.msra.mxu0 0.0
  %1801 = vmatpush.msra.mxu0 0.0
  %1802 = vmatpush.msra.mxu0 0.0
  %1803 = vmatpush.msra.mxu0 0.0
  %1804 = vmatpush.msra.mxu0 %v1723
  %1805 = vmatpush.msra.mxu0 %v1719
  %1806 = vmatpush.msra.mxu0 %v1715
  %1807 = vmatpush.msra.mxu0 %v1711
  %1808 = vmatpush.msra.mxu0 %v1707
  %1809 = vmatpush.msra.mxu0 %v1703
  %1810 = vmatpush.msra.mxu0 %v1699
  %1811 = vmatpush.msra.mxu0 %v1695
  %1812 = vmatpush.msra.mxu0 %v1691
  %1813 = vmatpush.msra.mxu0 %v1687
  %1814 = vmatpush.msra.mxu0 %v1683
  %1815 = vmatpush.msra.mxu0 %v1679
  %1816 = vmatmul.f32.gmra.mxu0 %v1726
  %v1817 = vpop.f32.mrf.mxu0
  %v1818 = vadd.f32 0.0, %v1817
  %1819 = vmatmul.f32.gmra.mxu0 %v1729
  %v1820 = vpop.f32.mrf.mxu0
  %v1821 = vadd.f32 0.0, %v1820
  %1822 = vdwg.mxu0
  %1823 = vst [vmem:[%s10] sm:$0xff] %v1749
  %1824 = vst [vmem:[%s10 + $0x8] sm:$0xff] %v1772
  %1825 = vst [vmem:[%s10 + $0x10] sm:$0xff] %v1752
  %1826 = vst [vmem:[%s10 + $0x18] sm:$0xff] %v1775
  %s1827 = scalar_lea.vmem %s10, 128
  %1828 = vst [vmem:[%s1827] sm:$0xff] %v1795
  %1829 = vst [vmem:[%s1827 + $0x8] sm:$0xff] %v1818
  %1830 = vst [vmem:[%s1827 + $0x10] sm:$0xff] %v1798
  %1831 = vst [vmem:[%s1827 + $0x18] sm:$0xff] %v1821
  %v1832 = vld [vmem:[%s5] sm:$0xff]
  %v1833 = vld [vmem:[%s5 + $0x8] sm:$0xff]
  %v1834 = vld [vmem:[%s5 + $0x10] sm:$0xff]
  %v1835 = vld [vmem:[%s5 + $0x18] sm:$0xff]
  %v1836 = vld [vmem:[%s5 + $0x20] sm:$0xff]
  %v1837 = vld [vmem:[%s5 + $0x28] sm:$0xff]
  %v1838 = vld [vmem:[%s5 + $0x30] sm:$0xff]
  %v1839 = vld [vmem:[%s5 + $0x38] sm:$0xff]
  %v1840 = vld [vmem:[%s5 + $0x40] sm:$0xff]
  %v1841 = vld [vmem:[%s5 + $0x48] sm:$0xff]
  %v1842 = vld [vmem:[%s5 + $0x50] sm:$0xff]
  %v1843 = vld [vmem:[%s5 + $0x58] sm:$0xff]
  %v1844 = vld [vmem:[%s5 + $0x60] sm:$0xff]
  %v1845 = vld [vmem:[%s5 + $0x68] sm:$0xff]
  %v1846 = vld [vmem:[%s5 + $0x70] sm:$0xff]
  %v1847 = vld [vmem:[%s5 + $0x78] sm:$0xff]
  %v1848 = vld [vmem:[%s5 + $0x80] sm:$0xff]
  %v1849 = vld [vmem:[%s5 + $0x88] sm:$0xff]
  %v1850 = vld [vmem:[%s5 + $0x90] sm:$0xff]
  %v1851 = vld [vmem:[%s5 + $0x98] sm:$0xff]
  %v1852 = vld [vmem:[%s5 + $0xa0] sm:$0xff]
  %v1853 = vld [vmem:[%s5 + $0xa8] sm:$0xff]
  %v1854 = vld [vmem:[%s5 + $0xb0] sm:$0xff]
  %v1855 = vld [vmem:[%s5 + $0xb8] sm:$0xff]
  %v1856 = vld [vmem:[%s5 + $0xc0] sm:$0xff]
  %v1857 = vld [vmem:[%s5 + $0xc8] sm:$0xff]
  %v1858 = vld [vmem:[%s5 + $0xd0] sm:$0xff]
  %v1859 = vld [vmem:[%s5 + $0xd8] sm:$0xff]
  %v1860 = vld [vmem:[%s5 + $0xe0] sm:$0xff]
  %v1861 = vld [vmem:[%s5 + $0xe8] sm:$0xff]
  %v1862 = vld [vmem:[%s5 + $0xf0] sm:$0xff]
  %v1863 = vld [vmem:[%s5 + $0xf8] sm:$0xff]
  %v1864 = vld [vmem:[%s5 + $0x100] sm:$0xff]
  %v1865 = vld [vmem:[%s5 + $0x108] sm:$0xff]
  %v1866 = vld [vmem:[%s5 + $0x110] sm:$0xff]
  %v1867 = vld [vmem:[%s5 + $0x118] sm:$0xff]
  %v1868 = vld [vmem:[%s5 + $0x120] sm:$0xff]
  %v1869 = vld [vmem:[%s5 + $0x128] sm:$0xff]
  %v1870 = vld [vmem:[%s5 + $0x130] sm:$0xff]
  %v1871 = vld [vmem:[%s5 + $0x138] sm:$0xff]
  %v1872 = vld [vmem:[%s5 + $0x140] sm:$0xff]
  %v1873 = vld [vmem:[%s5 + $0x148] sm:$0xff]
  %v1874 = vld [vmem:[%s5 + $0x150] sm:$0xff]
  %v1875 = vld [vmem:[%s5 + $0x158] sm:$0xff]
  %v1876 = vld [vmem:[%s5 + $0x160] sm:$0xff]
  %v1877 = vld [vmem:[%s5 + $0x168] sm:$0xff]
  %v1878 = vld [vmem:[%s5 + $0x170] sm:$0xff]
  %v1879 = vld [vmem:[%s5 + $0x178] sm:$0xff]
  %v1880 = vld [vmem:[%s5 + $0x180] sm:$0xff]
  %v1881 = vld [vmem:[%s5 + $0x188] sm:$0xff]
  %v1882 = vld [vmem:[%s5 + $0x190] sm:$0xff]
  %v1883 = vld [vmem:[%s5 + $0x198] sm:$0xff]
  %v1884 = vld [vmem:[%s5 + $0x1a0] sm:$0xff]
  %v1885 = vld [vmem:[%s5 + $0x1a8] sm:$0xff]
  %v1886 = vld [vmem:[%s5 + $0x1b0] sm:$0xff]
  %v1887 = vld [vmem:[%s5 + $0x1b8] sm:$0xff]
  %v1888 = vld [vmem:[%s5 + $0x1c0] sm:$0xff]
  %v1889 = vld [vmem:[%s5 + $0x1c8] sm:$0xff]
  %v1890 = vld [vmem:[%s5 + $0x1d0] sm:$0xff]
  %v1891 = vld [vmem:[%s5 + $0x1d8] sm:$0xff]
  %v1892 = vld [vmem:[%s5 + $0x1e0] sm:$0xff]
  %v1893 = vld [vmem:[%s5 + $0x1e8] sm:$0xff]
  %v1894 = vld [vmem:[%s5 + $0x1f0] sm:$0xff]
  %v1895 = vld [vmem:[%s5 + $0x1f8] sm:$0xff]
  %1896 = vmatpush.msra.mxu0 %v1862
  %1897 = vmatpush.msra.mxu0 %v1860
  %1898 = vmatpush.msra.mxu0 %v1858
  %1899 = vmatpush.msra.mxu0 %v1856
  %1900 = vmatpush.msra.mxu0 %v1854
  %1901 = vmatpush.msra.mxu0 %v1852
  %1902 = vmatpush.msra.mxu0 %v1850
  %1903 = vmatpush.msra.mxu0 %v1848
  %1904 = vmatpush.msra.mxu0 %v1846
  %1905 = vmatpush.msra.mxu0 %v1844
  %1906 = vmatpush.msra.mxu0 %v1842
  %1907 = vmatpush.msra.mxu0 %v1840
  %1908 = vmatpush.msra.mxu0 %v1838
  %1909 = vmatpush.msra.mxu0 %v1836
  %1910 = vmatpush.msra.mxu0 %v1834
  %1911 = vmatpush.msra.mxu0 %v1832
  %1912 = vmatmul.f32.gmra.mxu0 %v1749
  %v1913 = vpop.f32.mrf.mxu0
  %v1914 = vadd.f32 0.0, %v1913
  %1915 = vmatmul.f32.gmra.mxu0 %v1752
  %v1916 = vpop.f32.mrf.mxu0
  %v1917 = vadd.f32 0.0, %v1916
  %1918 = vdwg.mxu0
  %1919 = vmatpush.msra.mxu0 %v1894
  %1920 = vmatpush.msra.mxu0 %v1892
  %1921 = vmatpush.msra.mxu0 %v1890
  %1922 = vmatpush.msra.mxu0 %v1888
  %1923 = vmatpush.msra.mxu0 %v1886
  %1924 = vmatpush.msra.mxu0 %v1884
  %1925 = vmatpush.msra.mxu0 %v1882
  %1926 = vmatpush.msra.mxu0 %v1880
  %1927 = vmatpush.msra.mxu0 %v1878
  %1928 = vmatpush.msra.mxu0 %v1876
  %1929 = vmatpush.msra.mxu0 %v1874
  %1930 = vmatpush.msra.mxu0 %v1872
  %1931 = vmatpush.msra.mxu0 %v1870
  %1932 = vmatpush.msra.mxu0 %v1868
  %1933 = vmatpush.msra.mxu0 %v1866
  %1934 = vmatpush.msra.mxu0 %v1864
  %1935 = vmatmul.f32.gmra.mxu0 %v1772
  %v1936 = vpop.f32.mrf.mxu0
  %v1937 = vadd.f32 %v1914, %v1936
  %1938 = vmatmul.f32.gmra.mxu0 %v1775
  %v1939 = vpop.f32.mrf.mxu0
  %v1940 = vadd.f32 %v1917, %v1939
  %1941 = vdwg.mxu0
  %1942 = vmatpush.msra.mxu0 %v1863
  %1943 = vmatpush.msra.mxu0 %v1861
  %1944 = vmatpush.msra.mxu0 %v1859
  %1945 = vmatpush.msra.mxu0 %v1857
  %1946 = vmatpush.msra.mxu0 %v1855
  %1947 = vmatpush.msra.mxu0 %v1853
  %1948 = vmatpush.msra.mxu0 %v1851
  %1949 = vmatpush.msra.mxu0 %v1849
  %1950 = vmatpush.msra.mxu0 %v1847
  %1951 = vmatpush.msra.mxu0 %v1845
  %1952 = vmatpush.msra.mxu0 %v1843
  %1953 = vmatpush.msra.mxu0 %v1841
  %1954 = vmatpush.msra.mxu0 %v1839
  %1955 = vmatpush.msra.mxu0 %v1837
  %1956 = vmatpush.msra.mxu0 %v1835
  %1957 = vmatpush.msra.mxu0 %v1833
  %1958 = vmatmul.f32.gmra.mxu0 %v1749
  %v1959 = vpop.f32.mrf.mxu0
  %v1960 = vadd.f32 0.0, %v1959
  %1961 = vmatmul.f32.gmra.mxu0 %v1752
  %v1962 = vpop.f32.mrf.mxu0
  %v1963 = vadd.f32 0.0, %v1962
  %1964 = vdwg.mxu0
  %1965 = vmatpush.msra.mxu0 %v1895
  %1966 = vmatpush.msra.mxu0 %v1893
  %1967 = vmatpush.msra.mxu0 %v1891
  %1968 = vmatpush.msra.mxu0 %v1889
  %1969 = vmatpush.msra.mxu0 %v1887
  %1970 = vmatpush.msra.mxu0 %v1885
  %1971 = vmatpush.msra.mxu0 %v1883
  %1972 = vmatpush.msra.mxu0 %v1881
  %1973 = vmatpush.msra.mxu0 %v1879
  %1974 = vmatpush.msra.mxu0 %v1877
  %1975 = vmatpush.msra.mxu0 %v1875
  %1976 = vmatpush.msra.mxu0 %v1873
  %1977 = vmatpush.msra.mxu0 %v1871
  %1978 = vmatpush.msra.mxu0 %v1869
  %1979 = vmatpush.msra.mxu0 %v1867
  %1980 = vmatpush.msra.mxu0 %v1865
  %1981 = vmatmul.f32.gmra.mxu0 %v1772
  %v1982 = vpop.f32.mrf.mxu0
  %v1983 = vadd.f32 %v1960, %v1982
  %1984 = vmatmul.f32.gmra.mxu0 %v1775
  %v1985 = vpop.f32.mrf.mxu0
  %v1986 = vadd.f32 %v1963, %v1985
  %1987 = vdwg.mxu0
  %1988 = vmatpush.msra.mxu0 %v1862
  %1989 = vmatpush.msra.mxu0 %v1860
  %1990 = vmatpush.msra.mxu0 %v1858
  %1991 = vmatpush.msra.mxu0 %v1856
  %1992 = vmatpush.msra.mxu0 %v1854
  %1993 = vmatpush.msra.mxu0 %v1852
  %1994 = vmatpush.msra.mxu0 %v1850
  %1995 = vmatpush.msra.mxu0 %v1848
  %1996 = vmatpush.msra.mxu0 %v1846
  %1997 = vmatpush.msra.mxu0 %v1844
  %1998 = vmatpush.msra.mxu0 %v1842
  %1999 = vmatpush.msra.mxu0 %v1840
  %2000 = vmatpush.msra.mxu0 %v1838
  %2001 = vmatpush.msra.mxu0 %v1836
  %2002 = vmatpush.msra.mxu0 %v1834
  %2003 = vmatpush.msra.mxu0 %v1832
  %2004 = vmatmul.f32.gmra.mxu0 %v1795
  %v2005 = vpop.f32.mrf.mxu0
  %v2006 = vadd.f32 0.0, %v2005
  %2007 = vmatmul.f32.gmra.mxu0 %v1798
  %v2008 = vpop.f32.mrf.mxu0
  %v2009 = vadd.f32 0.0, %v2008
  %2010 = vdwg.mxu0
  %2011 = vmatpush.msra.mxu0 %v1894
  %2012 = vmatpush.msra.mxu0 %v1892
  %2013 = vmatpush.msra.mxu0 %v1890
  %2014 = vmatpush.msra.mxu0 %v1888
  %2015 = vmatpush.msra.mxu0 %v1886
  %2016 = vmatpush.msra.mxu0 %v1884
  %2017 = vmatpush.msra.mxu0 %v1882
  %2018 = vmatpush.msra.mxu0 %v1880
  %2019 = vmatpush.msra.mxu0 %v1878
  %2020 = vmatpush.msra.mxu0 %v1876
  %2021 = vmatpush.msra.mxu0 %v1874
  %2022 = vmatpush.msra.mxu0 %v1872
  %2023 = vmatpush.msra.mxu0 %v1870
  %2024 = vmatpush.msra.mxu0 %v1868
  %2025 = vmatpush.msra.mxu0 %v1866
  %2026 = vmatpush.msra.mxu0 %v1864
  %2027 = vmatmul.f32.gmra.mxu0 %v1818
  %v2028 = vpop.f32.mrf.mxu0
  %v2029 = vadd.f32 %v2006, %v2028
  %2030 = vmatmul.f32.gmra.mxu0 %v1821
  %v2031 = vpop.f32.mrf.mxu0
  %v2032 = vadd.f32 %v2009, %v2031
  %2033 = vdwg.mxu0
  %2034 = vmatpush.msra.mxu0 %v1863
  %2035 = vmatpush.msra.mxu0 %v1861
  %2036 = vmatpush.msra.mxu0 %v1859
  %2037 = vmatpush.msra.mxu0 %v1857
  %2038 = vmatpush.msra.mxu0 %v1855
  %2039 = vmatpush.msra.mxu0 %v1853
  %2040 = vmatpush.msra.mxu0 %v1851
  %2041 = vmatpush.msra.mxu0 %v1849
  %2042 = vmatpush.msra.mxu0 %v1847
  %2043 = vmatpush.msra.mxu0 %v1845
  %2044 = vmatpush.msra.mxu0 %v1843
  %2045 = vmatpush.msra.mxu0 %v1841
  %2046 = vmatpush.msra.mxu0 %v1839
  %2047 = vmatpush.msra.mxu0 %v1837
  %2048 = vmatpush.msra.mxu0 %v1835
  %2049 = vmatpush.msra.mxu0 %v1833
  %2050 = vmatmul.f32.gmra.mxu0 %v1795
  %v2051 = vpop.f32.mrf.mxu0
  %v2052 = vadd.f32 0.0, %v2051
  %2053 = vmatmul.f32.gmra.mxu0 %v1798
  %v2054 = vpop.f32.mrf.mxu0
  %v2055 = vadd.f32 0.0, %v2054
  %2056 = vdwg.mxu0
  %2057 = vmatpush.msra.mxu0 %v1895
  %2058 = vmatpush.msra.mxu0 %v1893
  %2059 = vmatpush.msra.mxu0 %v1891
  %2060 = vmatpush.msra.mxu0 %v1889
  %2061 = vmatpush.msra.mxu0 %v1887
  %2062 = vmatpush.msra.mxu0 %v1885
  %2063 = vmatpush.msra.mxu0 %v1883
  %2064 = vmatpush.msra.mxu0 %v1881
  %2065 = vmatpush.msra.mxu0 %v1879
  %2066 = vmatpush.msra.mxu0 %v1877
  %2067 = vmatpush.msra.mxu0 %v1875
  %2068 = vmatpush.msra.mxu0 %v1873
  %2069 = vmatpush.msra.mxu0 %v1871
  %2070 = vmatpush.msra.mxu0 %v1869
  %2071 = vmatpush.msra.mxu0 %v1867
  %2072 = vmatpush.msra.mxu0 %v1865
  %2073 = vmatmul.f32.gmra.mxu0 %v1818
  %v2074 = vpop.f32.mrf.mxu0
  %v2075 = vadd.f32 %v2052, %v2074
  %2076 = vmatmul.f32.gmra.mxu0 %v1821
  %v2077 = vpop.f32.mrf.mxu0
  %v2078 = vadd.f32 %v2055, %v2077
  %2079 = vdwg.mxu0
  %2080 = vrot.lane.b32.xlu0 %v1749, 1
  %v2081 = vpop.permute.xlu0 %2080
  %2082 = vrot.lane.b32.xlu0 %v1752, 1
  %v2083 = vpop.permute.xlu0 %2082
  %2084 = vrot.lane.b32.xlu0 %v1772, 1
  %v2085 = vpop.permute.xlu0 %2084
  %2086 = vrot.lane.b32.xlu0 %v1775, 1
  %v2087 = vpop.permute.xlu0 %2086
  %2088 = vrot.lane.b32.xlu0 %v1795, 1
  %v2089 = vpop.permute.xlu0 %2088
  %2090 = vrot.lane.b32.xlu0 %v1798, 1
  %v2091 = vpop.permute.xlu0 %2090
  %2092 = vrot.lane.b32.xlu0 %v1818, 1
  %v2093 = vpop.permute.xlu0 %2092
  %2094 = vrot.lane.b32.xlu0 %v1821, 1
  %v2095 = vpop.permute.xlu0 %2094
  %v2096 = vsel %vm56, %v2089, %v2093
  %v2097 = vsel %vm56, %v2091, %v2095
  %v2098 = vsel %vm56, %v2085, %v2089
  %v2099 = vsel %vm56, %v2087, %v2091
  %v2100 = vsel %vm56, %v2081, %v2085
  %v2101 = vsel %vm56, %v2083, %v2087
  %v2102 = vsel %vm56, %v2093, %v2081
  %v2103 = vsel %vm56, %v2095, %v2083
  %v2104 = vadd.f32 %v2102, %v1034
  %v2105 = vadd.f32 %v2100, %v1035
  %v2106 = vadd.f32 %v2098, %v1036
  %v2107 = vadd.f32 %v2096, %v1037
  %v2108 = vadd.f32 %v2103, %v1034
  %v2109 = vadd.f32 %v2101, %v1035
  %v2110 = vadd.f32 %v2099, %v1036
  %v2111 = vadd.f32 %v2097, %v1037
  %v2112 = vmax.f32 %v1749, %v2104
  %v2113 = vmax.f32 %v1772, %v2105
  %v2114 = vmax.f32 %v1795, %v2106
  %v2115 = vmax.f32 %v1818, %v2107
  %v2116 = vmax.f32 %v1752, %v2108
  %v2117 = vmax.f32 %v1775, %v2109
  %v2118 = vmax.f32 %v1798, %v2110
  %v2119 = vmax.f32 %v1821, %v2111
  %2120 = vrot.lane.b32.xlu0 %v1749, 127
  %v2121 = vpop.permute.xlu0 %2120
  %2122 = vrot.lane.b32.xlu0 %v1752, 127
  %v2123 = vpop.permute.xlu0 %2122
  %2124 = vrot.lane.b32.xlu0 %v1772, 127
  %v2125 = vpop.permute.xlu0 %2124
  %2126 = vrot.lane.b32.xlu0 %v1775, 127
  %v2127 = vpop.permute.xlu0 %2126
  %2128 = vrot.lane.b32.xlu0 %v1795, 127
  %v2129 = vpop.permute.xlu0 %2128
  %2130 = vrot.lane.b32.xlu0 %v1798, 127
  %v2131 = vpop.permute.xlu0 %2130
  %2132 = vrot.lane.b32.xlu0 %v1818, 127
  %v2133 = vpop.permute.xlu0 %2132
  %2134 = vrot.lane.b32.xlu0 %v1821, 127
  %v2135 = vpop.permute.xlu0 %2134
  %v2136 = vsel %vm94, %v2129, %v2133
  %v2137 = vsel %vm94, %v2131, %v2135
  %v2138 = vsel %vm94, %v2125, %v2129
  %v2139 = vsel %vm94, %v2127, %v2131
  %v2140 = vsel %vm94, %v2121, %v2125
  %v2141 = vsel %vm94, %v2123, %v2127
  %v2142 = vsel %vm94, %v2133, %v2121
  %v2143 = vsel %vm94, %v2135, %v2123
  %v2144 = vadd.f32 %v2140, %v1118
  %v2145 = vadd.f32 %v2138, %v1119
  %v2146 = vadd.f32 %v2136, %v1120
  %v2147 = vadd.f32 %v2142, %v1121
  %v2148 = vadd.f32 %v2141, %v1118
  %v2149 = vadd.f32 %v2139, %v1119
  %v2150 = vadd.f32 %v2137, %v1120
  %v2151 = vadd.f32 %v2143, %v1121
  %v2152 = vmax.f32 %v2112, %v2144
  %v2153 = vmax.f32 %v2113, %v2145
  %v2154 = vmax.f32 %v2114, %v2146
  %v2155 = vmax.f32 %v2115, %v2147
  %v2156 = vmax.f32 %v2116, %v2148
  %v2157 = vmax.f32 %v2117, %v2149
  %v2158 = vmax.f32 %v2118, %v2150
  %v2159 = vmax.f32 %v2119, %v2151
  %2160 = vrot.lane.b32.xlu0 %v2152, 16
  %v2161 = vpop.permute.xlu0 %2160
  %2162 = vrot.lane.b32.xlu0 %v2156, 16
  %v2163 = vpop.permute.xlu0 %2162
  %2164 = vrot.lane.b32.xlu0 %v2153, 16
  %v2165 = vpop.permute.xlu0 %2164
  %2166 = vrot.lane.b32.xlu0 %v2157, 16
  %v2167 = vpop.permute.xlu0 %2166
  %2168 = vrot.lane.b32.xlu0 %v2154, 16
  %v2169 = vpop.permute.xlu0 %2168
  %2170 = vrot.lane.b32.xlu0 %v2158, 16
  %v2171 = vpop.permute.xlu0 %2170
  %2172 = vrot.lane.b32.xlu0 %v2155, 16
  %v2173 = vpop.permute.xlu0 %2172
  %2174 = vrot.lane.b32.xlu0 %v2159, 16
  %v2175 = vpop.permute.xlu0 %2174
  %v2176 = vsel %vm124, %v2169, %v2173
  %v2177 = vsel %vm124, %v2171, %v2175
  %v2178 = vsel %vm124, %v2165, %v2169
  %v2179 = vsel %vm124, %v2167, %v2171
  %v2180 = vsel %vm124, %v2161, %v2165
  %v2181 = vsel %vm124, %v2163, %v2167
  %v2182 = vsel %vm124, %v2173, %v2161
  %v2183 = vsel %vm124, %v2175, %v2163
  %v2184 = vadd.f32 %v2182, %v1202
  %v2185 = vadd.f32 %v2180, %v1203
  %v2186 = vadd.f32 %v2178, %v1204
  %v2187 = vadd.f32 %v2176, %v1205
  %v2188 = vadd.f32 %v2183, %v1202
  %v2189 = vadd.f32 %v2181, %v1203
  %v2190 = vadd.f32 %v2179, %v1204
  %v2191 = vadd.f32 %v2177, %v1205
  %v2192 = vmax.f32 %v2152, %v2184
  %v2193 = vmax.f32 %v2153, %v2185
  %v2194 = vmax.f32 %v2154, %v2186
  %v2195 = vmax.f32 %v2155, %v2187
  %v2196 = vmax.f32 %v2156, %v2188
  %v2197 = vmax.f32 %v2157, %v2189
  %v2198 = vmax.f32 %v2158, %v2190
  %v2199 = vmax.f32 %v2159, %v2191
  %2200 = vrot.lane.b32.xlu0 %v2152, 112
  %v2201 = vpop.permute.xlu0 %2200
  %2202 = vrot.lane.b32.xlu0 %v2156, 112
  %v2203 = vpop.permute.xlu0 %2202
  %2204 = vrot.lane.b32.xlu0 %v2153, 112
  %v2205 = vpop.permute.xlu0 %2204
  %2206 = vrot.lane.b32.xlu0 %v2157, 112
  %v2207 = vpop.permute.xlu0 %2206
  %2208 = vrot.lane.b32.xlu0 %v2154, 112
  %v2209 = vpop.permute.xlu0 %2208
  %2210 = vrot.lane.b32.xlu0 %v2158, 112
  %v2211 = vpop.permute.xlu0 %2210
  %2212 = vrot.lane.b32.xlu0 %v2155, 112
  %v2213 = vpop.permute.xlu0 %2212
  %2214 = vrot.lane.b32.xlu0 %v2159, 112
  %v2215 = vpop.permute.xlu0 %2214
  %v2216 = vsel %vm194, %v2209, %v2213
  %v2217 = vsel %vm194, %v2211, %v2215
  %v2218 = vsel %vm194, %v2205, %v2209
  %v2219 = vsel %vm194, %v2207, %v2211
  %v2220 = vsel %vm194, %v2201, %v2205
  %v2221 = vsel %vm194, %v2203, %v2207
  %v2222 = vsel %vm194, %v2213, %v2201
  %v2223 = vsel %vm194, %v2215, %v2203
  %v2224 = vadd.f32 %v2220, %v1286
  %v2225 = vadd.f32 %v2218, %v1287
  %v2226 = vadd.f32 %v2216, %v1288
  %v2227 = vadd.f32 %v2222, %v1289
  %v2228 = vadd.f32 %v2221, %v1286
  %v2229 = vadd.f32 %v2219, %v1287
  %v2230 = vadd.f32 %v2217, %v1288
  %v2231 = vadd.f32 %v2223, %v1289
  %v2232 = vmax.f32 %v2192, %v2224
  %v2233 = vmax.f32 %v2193, %v2225
  %v2234 = vmax.f32 %v2194, %v2226
  %v2235 = vmax.f32 %v2195, %v2227
  %v2236 = vmax.f32 %v2196, %v2228
  %v2237 = vmax.f32 %v2197, %v2229
  %v2238 = vmax.f32 %v2198, %v2230
  %v2239 = vmax.f32 %v2199, %v2231
  %v2240 = vadd.f32 %v1937, %v1983
  %v2241 = vadd.f32 %v2240, %v2029
  %v2242 = vadd.f32 %v2241, %v2075
  %2243 = vadd.xlane.f32.xlu0 %v2242
  %v2244 = vpop.xlane.xlu0 %2243
  %v2245 = vadd.f32 %v1940, %v1986
  %v2246 = vadd.f32 %v2245, %v2032
  %v2247 = vadd.f32 %v2246, %v2078
  %2248 = vadd.xlane.f32.xlu0 %v2247
  %v2249 = vpop.xlane.xlu0 %2248
  %v2250 = vadd.f32 %v2232, %v2233
  %v2251 = vadd.f32 %v2250, %v2234
  %v2252 = vadd.f32 %v2251, %v2235
  %2253 = vadd.xlane.f32.xlu0 %v2252
  %v2254 = vpop.xlane.xlu0 %2253
  %v2255 = vadd.f32 %v2236, %v2237
  %v2256 = vadd.f32 %v2255, %v2238
  %v2257 = vadd.f32 %v2256, %v2239
  %2258 = vadd.xlane.f32.xlu0 %v2257
  %v2259 = vpop.xlane.xlu0 %2258
  %v2260 = vmul.f32 %v1937, %v1937
  %v2261 = vmul.f32 %v1983, %v1983
  %v2262 = vmul.f32 %v2029, %v2029
  %v2263 = vmul.f32 %v2075, %v2075
  %v2264 = vmul.f32 %v1940, %v1940
  %v2265 = vmul.f32 %v1986, %v1986
  %v2266 = vmul.f32 %v2032, %v2032
  %v2267 = vmul.f32 %v2078, %v2078
  %v2268 = vmul.f32 %v2232, %v2232
  %v2269 = vmul.f32 %v2233, %v2233
  %v2270 = vmul.f32 %v2234, %v2234
  %v2271 = vmul.f32 %v2235, %v2235
  %v2272 = vmul.f32 %v2236, %v2236
  %v2273 = vmul.f32 %v2237, %v2237
  %v2274 = vmul.f32 %v2238, %v2238
  %v2275 = vmul.f32 %v2239, %v2239
  %v2276 = vadd.f32 %v2260, %v2261
  %v2277 = vadd.f32 %v2276, %v2262
  %v2278 = vadd.f32 %v2277, %v2263
  %2279 = vadd.xlane.f32.xlu0 %v2278
  %v2280 = vpop.xlane.xlu0 %2279
  %v2281 = vadd.f32 %v2264, %v2265
  %v2282 = vadd.f32 %v2281, %v2266
  %v2283 = vadd.f32 %v2282, %v2267
  %2284 = vadd.xlane.f32.xlu0 %v2283
  %v2285 = vpop.xlane.xlu0 %2284
  %v2286 = vadd.f32 %v2268, %v2269
  %v2287 = vadd.f32 %v2286, %v2270
  %v2288 = vadd.f32 %v2287, %v2271
  %2289 = vadd.xlane.f32.xlu0 %v2288
  %v2290 = vpop.xlane.xlu0 %2289
  %v2291 = vadd.f32 %v2272, %v2273
  %v2292 = vadd.f32 %v2291, %v2274
  %v2293 = vadd.f32 %v2292, %v2275
  %2294 = vadd.xlane.f32.xlu0 %v2293
  %v2295 = vpop.xlane.xlu0 %2294
  %v2296 = vmul.f32 %v2244, 0.001953125
  %v2297 = vmul.f32 %v2249, 0.001953125
  %v2298 = vmul.f32 %v2254, 0.001953125
  %v2299 = vmul.f32 %v2259, 0.001953125
  %v2300 = vmul.f32 %v2280, 0.001953125
  %v2301 = vmul.f32 %v2285, 0.001953125
  %v2302 = vmul.f32 %v2290, 0.001953125
  %v2303 = vmul.f32 %v2295, 0.001953125
  %v2304 = vmul.f32 %v2296, %v2296
  %v2305 = vmul.f32 %v2297, %v2297
  %v2306 = vmul.f32 %v2298, %v2298
  %v2307 = vmul.f32 %v2299, %v2299
  %v2308 = vsub.f32 %v2300, %v2304
  %v2309 = vsub.f32 %v2301, %v2305
  %v2310 = vsub.f32 %v2302, %v2306
  %v2311 = vsub.f32 %v2303, %v2307
  %v2312 = vmax.f32 %v2308, 0.0
  %v2313 = vmax.f32 %v2309, 0.0
  %v2314 = vmax.f32 %v2310, 0.0
  %v2315 = vmax.f32 %v2311, 0.0
  %v2316 = vsub.f32 %v1937, %v2296
  %v2317 = vsub.f32 %v1983, %v2296
  %v2318 = vsub.f32 %v2029, %v2296
  %v2319 = vsub.f32 %v2075, %v2296
  %v2320 = vsub.f32 %v1940, %v2297
  %v2321 = vsub.f32 %v1986, %v2297
  %v2322 = vsub.f32 %v2032, %v2297
  %v2323 = vsub.f32 %v2078, %v2297
  %v2324 = vsub.f32 %v2232, %v2298
  %v2325 = vsub.f32 %v2233, %v2298
  %v2326 = vsub.f32 %v2234, %v2298
  %v2327 = vsub.f32 %v2235, %v2298
  %v2328 = vsub.f32 %v2236, %v2299
  %v2329 = vsub.f32 %v2237, %v2299
  %v2330 = vsub.f32 %v2238, %v2299
  %v2331 = vsub.f32 %v2239, %v2299
  %v2332 = vadd.f32 %v2312, 1e-05
  %v2333 = vadd.f32 %v2313, 1e-05
  %v2334 = vadd.f32 %v2314, 1e-05
  %v2335 = vadd.f32 %v2315, 1e-05
  %v2336 = vrsqrt.pop %v2332
  %v2337 = vmul.f32 %v2336, %v2332
  %v2338 = vmul.f32 %v2337, %v2336
  %v2339 = vmul.f32 0.5, %v2338
  %v2340 = vsub.f32 1.5, %v2339
  %v2341 = vmul.f32 %v2336, %v2340
  %vm2342 = vweird.f32 %v2332
  %vm2343 = vweird.f32 %v2336
  %vm2344 = vmor %vm2342, %vm2343
  %v2345 = vsel %vm2344, %v2336, %v2341
  %v2346 = vrsqrt.pop %v2333
  %v2347 = vmul.f32 %v2346, %v2333
  %v2348 = vmul.f32 %v2347, %v2346
  %v2349 = vmul.f32 0.5, %v2348
  %v2350 = vsub.f32 1.5, %v2349
  %v2351 = vmul.f32 %v2346, %v2350
  %vm2352 = vweird.f32 %v2333
  %vm2353 = vweird.f32 %v2346
  %vm2354 = vmor %vm2352, %vm2353
  %v2355 = vsel %vm2354, %v2346, %v2351
  %v2356 = vrsqrt.pop %v2334
  %v2357 = vmul.f32 %v2356, %v2334
  %v2358 = vmul.f32 %v2357, %v2356
  %v2359 = vmul.f32 0.5, %v2358
  %v2360 = vsub.f32 1.5, %v2359
  %v2361 = vmul.f32 %v2356, %v2360
  %vm2362 = vweird.f32 %v2334
  %vm2363 = vweird.f32 %v2356
  %vm2364 = vmor %vm2362, %vm2363
  %v2365 = vsel %vm2364, %v2356, %v2361
  %v2366 = vrsqrt.pop %v2335
  %v2367 = vmul.f32 %v2366, %v2335
  %v2368 = vmul.f32 %v2367, %v2366
  %v2369 = vmul.f32 0.5, %v2368
  %v2370 = vsub.f32 1.5, %v2369
  %v2371 = vmul.f32 %v2366, %v2370
  %vm2372 = vweird.f32 %v2335
  %vm2373 = vweird.f32 %v2366
  %vm2374 = vmor %vm2372, %vm2373
  %v2375 = vsel %vm2374, %v2366, %v2371
  %v2376 = vmul.f32 %v2316, %v2345
  %v2377 = vmul.f32 %v2317, %v2345
  %v2378 = vmul.f32 %v2318, %v2345
  %v2379 = vmul.f32 %v2319, %v2345
  %v2380 = vmul.f32 %v2320, %v2355
  %v2381 = vmul.f32 %v2321, %v2355
  %v2382 = vmul.f32 %v2322, %v2355
  %v2383 = vmul.f32 %v2323, %v2355
  %v2384 = vmul.f32 %v2324, %v2365
  %v2385 = vmul.f32 %v2325, %v2365
  %v2386 = vmul.f32 %v2326, %v2365
  %v2387 = vmul.f32 %v2327, %v2365
  %v2388 = vmul.f32 %v2328, %v2375
  %v2389 = vmul.f32 %v2329, %v2375
  %v2390 = vmul.f32 %v2330, %v2375
  %v2391 = vmul.f32 %v2331, %v2375
  %2392 = vst [vmem:[#allocation2 + $0x180] sm:$0xff] %v1749
  %2393 = vst [vmem:[#allocation2 + $0x188] sm:$0xff] %v1772
  %2394 = vst [vmem:[#allocation2 + $0x190] sm:$0xff] %v1795
  %2395 = vst [vmem:[#allocation2 + $0x198] sm:$0xff] %v1818
  %2396 = vst [vmem:[#allocation2 + $0x1a0] sm:$0xff] %v1752
  %2397 = vst [vmem:[#allocation2 + $0x1a8] sm:$0xff] %v1775
  %2398 = vst [vmem:[#allocation2 + $0x1b0] sm:$0xff] %v1798
  %2399 = vst [vmem:[#allocation2 + $0x1b8] sm:$0xff] %v1821
  %2400 = vst [vmem:[#allocation2 + $0x1c0] sm:$0xff] %v2376
  %2401 = vst [vmem:[#allocation2 + $0x1c8] sm:$0xff] %v2377
  %2402 = vst [vmem:[#allocation2 + $0x1d0] sm:$0xff] %v2378
  %2403 = vst [vmem:[#allocation2 + $0x1d8] sm:$0xff] %v2379
  %2404 = vst [vmem:[#allocation2 + $0x1e0] sm:$0xff] %v2380
  %2405 = vst [vmem:[#allocation2 + $0x1e8] sm:$0xff] %v2381
  %2406 = vst [vmem:[#allocation2 + $0x1f0] sm:$0xff] %v2382
  %2407 = vst [vmem:[#allocation2 + $0x1f8] sm:$0xff] %v2383
  %2408 = vst [vmem:[#allocation2 + $0x200] sm:$0xff] %v2384
  %2409 = vst [vmem:[#allocation2 + $0x208] sm:$0xff] %v2385
  %2410 = vst [vmem:[#allocation2 + $0x210] sm:$0xff] %v2386
  %2411 = vst [vmem:[#allocation2 + $0x218] sm:$0xff] %v2387
  %2412 = vst [vmem:[#allocation2 + $0x220] sm:$0xff] %v2388
  %2413 = vst [vmem:[#allocation2 + $0x228] sm:$0xff] %v2389
  %2414 = vst [vmem:[#allocation2 + $0x230] sm:$0xff] %v2390
  %2415 = vst [vmem:[#allocation2 + $0x238] sm:$0xff] %v2391
  %v2416 = vld [vmem:[%s7] sm:$0xff]
  %v2417 = vld [vmem:[%s7 + $0x8] sm:$0xff]
  %v2418 = vld [vmem:[%s7 + $0x10] sm:$0xff]
  %v2419 = vld [vmem:[%s7 + $0x18] sm:$0xff]
  %v2420 = vld [vmem:[#allocation2] sm:$0xff]
  %v2421 = vld [vmem:[#allocation2 + $0x8] sm:$0xff]
  %v2422 = vld [vmem:[#allocation2 + $0x10] sm:$0xff]
  %v2423 = vld [vmem:[#allocation2 + $0x18] sm:$0xff]
  %v2424 = vld [vmem:[#allocation2 + $0x20] sm:$0xff]
  %v2425 = vld [vmem:[#allocation2 + $0x28] sm:$0xff]
  %v2426 = vld [vmem:[#allocation2 + $0x30] sm:$0xff]
  %v2427 = vld [vmem:[#allocation2 + $0x38] sm:$0xff]
  %v2428 = vld [vmem:[#allocation2 + $0x40] sm:$0xff]
  %v2429 = vld [vmem:[#allocation2 + $0x48] sm:$0xff]
  %v2430 = vld [vmem:[#allocation2 + $0x50] sm:$0xff]
  %v2431 = vld [vmem:[#allocation2 + $0x58] sm:$0xff]
  %v2432 = vld [vmem:[#allocation2 + $0x60] sm:$0xff]
  %v2433 = vld [vmem:[#allocation2 + $0x68] sm:$0xff]
  %v2434 = vld [vmem:[#allocation2 + $0x70] sm:$0xff]
  %v2435 = vld [vmem:[#allocation2 + $0x78] sm:$0xff]
  %v2436 = vld [vmem:[#allocation2 + $0x80] sm:$0xff]
  %v2437 = vld [vmem:[#allocation2 + $0x88] sm:$0xff]
  %v2438 = vld [vmem:[#allocation2 + $0x90] sm:$0xff]
  %v2439 = vld [vmem:[#allocation2 + $0x98] sm:$0xff]
  %v2440 = vld [vmem:[#allocation2 + $0xa0] sm:$0xff]
  %v2441 = vld [vmem:[#allocation2 + $0xa8] sm:$0xff]
  %v2442 = vld [vmem:[#allocation2 + $0xb0] sm:$0xff]
  %v2443 = vld [vmem:[#allocation2 + $0xb8] sm:$0xff]
  %v2444 = vld [vmem:[#allocation2 + $0xc0] sm:$0xff]
  %v2445 = vld [vmem:[#allocation2 + $0xc8] sm:$0xff]
  %v2446 = vld [vmem:[#allocation2 + $0xd0] sm:$0xff]
  %v2447 = vld [vmem:[#allocation2 + $0xd8] sm:$0xff]
  %v2448 = vld [vmem:[#allocation2 + $0xe0] sm:$0xff]
  %v2449 = vld [vmem:[#allocation2 + $0xe8] sm:$0xff]
  %v2450 = vld [vmem:[#allocation2 + $0xf0] sm:$0xff]
  %v2451 = vld [vmem:[#allocation2 + $0xf8] sm:$0xff]
  %v2452 = vld [vmem:[#allocation2 + $0x100] sm:$0xff]
  %v2453 = vld [vmem:[#allocation2 + $0x108] sm:$0xff]
  %v2454 = vld [vmem:[#allocation2 + $0x110] sm:$0xff]
  %v2455 = vld [vmem:[#allocation2 + $0x118] sm:$0xff]
  %v2456 = vld [vmem:[#allocation2 + $0x120] sm:$0xff]
  %v2457 = vld [vmem:[#allocation2 + $0x128] sm:$0xff]
  %v2458 = vld [vmem:[#allocation2 + $0x130] sm:$0xff]
  %v2459 = vld [vmem:[#allocation2 + $0x138] sm:$0xff]
  %v2460 = vld [vmem:[#allocation2 + $0x140] sm:$0xff]
  %v2461 = vld [vmem:[#allocation2 + $0x148] sm:$0xff]
  %v2462 = vld [vmem:[#allocation2 + $0x150] sm:$0xff]
  %v2463 = vld [vmem:[#allocation2 + $0x158] sm:$0xff]
  %v2464 = vld [vmem:[#allocation2 + $0x160] sm:$0xff]
  %v2465 = vld [vmem:[#allocation2 + $0x168] sm:$0xff]
  %v2466 = vld [vmem:[#allocation2 + $0x170] sm:$0xff]
  %v2467 = vld [vmem:[#allocation2 + $0x178] sm:$0xff]
  %v2468 = vld [vmem:[#allocation2 + $0x180] sm:$0xff]
  %v2469 = vld [vmem:[#allocation2 + $0x188] sm:$0xff]
  %v2470 = vld [vmem:[#allocation2 + $0x190] sm:$0xff]
  %v2471 = vld [vmem:[#allocation2 + $0x198] sm:$0xff]
  %v2472 = vld [vmem:[#allocation2 + $0x1a0] sm:$0xff]
  %v2473 = vld [vmem:[#allocation2 + $0x1a8] sm:$0xff]
  %v2474 = vld [vmem:[#allocation2 + $0x1b0] sm:$0xff]
  %v2475 = vld [vmem:[#allocation2 + $0x1b8] sm:$0xff]
  %v2476 = vld [vmem:[#allocation2 + $0x1c0] sm:$0xff]
  %v2477 = vld [vmem:[#allocation2 + $0x1c8] sm:$0xff]
  %v2478 = vld [vmem:[#allocation2 + $0x1d0] sm:$0xff]
  %v2479 = vld [vmem:[#allocation2 + $0x1d8] sm:$0xff]
  %v2480 = vld [vmem:[#allocation2 + $0x1e0] sm:$0xff]
  %v2481 = vld [vmem:[#allocation2 + $0x1e8] sm:$0xff]
  %v2482 = vld [vmem:[#allocation2 + $0x1f0] sm:$0xff]
  %v2483 = vld [vmem:[#allocation2 + $0x1f8] sm:$0xff]
  %v2484 = vld [vmem:[#allocation2 + $0x200] sm:$0xff]
  %v2485 = vld [vmem:[#allocation2 + $0x208] sm:$0xff]
  %v2486 = vld [vmem:[#allocation2 + $0x210] sm:$0xff]
  %v2487 = vld [vmem:[#allocation2 + $0x218] sm:$0xff]
  %v2488 = vld [vmem:[#allocation2 + $0x220] sm:$0xff]
  %v2489 = vld [vmem:[#allocation2 + $0x228] sm:$0xff]
  %v2490 = vld [vmem:[#allocation2 + $0x230] sm:$0xff]
  %v2491 = vld [vmem:[#allocation2 + $0x238] sm:$0xff]
  %vm2492 = vcmask 130048
  %v2494 = vsel %vm2492, %v2417, 0
  %v2497 = vsel %vm2492, %v2419, 0
  %2499 = vmatpush.msra.mxu0 %v2480
  %2500 = vmatpush.msra.mxu0 %v2476
  %2501 = vmatpush.msra.mxu0 %v2472
  %2502 = vmatpush.msra.mxu0 %v2468
  %2503 = vmatpush.msra.mxu0 %v2464
  %2504 = vmatpush.msra.mxu0 %v2460
  %2505 = vmatpush.msra.mxu0 %v2456
  %2506 = vmatpush.msra.mxu0 %v2452
  %2507 = vmatpush.msra.mxu0 %v2448
  %2508 = vmatpush.msra.mxu0 %v2444
  %2509 = vmatpush.msra.mxu0 %v2440
  %2510 = vmatpush.msra.mxu0 %v2436
  %2511 = vmatpush.msra.mxu0 %v2432
  %2512 = vmatpush.msra.mxu0 %v2428
  %2513 = vmatpush.msra.mxu0 %v2424
  %2514 = vmatpush.msra.mxu0 %v2420
  %2515 = vmatmul.f32.gmra.mxu0 %v2416
  %v2516 = vpop.f32.mrf.mxu0
  %v2517 = vadd.f32 0.0, %v2516
  %2518 = vmatmul.f32.gmra.mxu0 %v2418
  %v2519 = vpop.f32.mrf.mxu0
  %v2520 = vadd.f32 0.0, %v2519
  %2521 = vdwg.mxu0
  %2522 = vmatpush.msra.mxu0 0.0
  %2523 = vmatpush.msra.mxu0 0.0
  %2524 = vmatpush.msra.mxu0 0.0
  %2525 = vmatpush.msra.mxu0 0.0
  %2526 = vmatpush.msra.mxu0 0.0
  %2527 = vmatpush.msra.mxu0 0.0
  %2528 = vmatpush.msra.mxu0 0.0
  %2529 = vmatpush.msra.mxu0 0.0
  %2530 = vmatpush.msra.mxu0 0.0
  %2531 = vmatpush.msra.mxu0 0.0
  %2532 = vmatpush.msra.mxu0 0.0
  %2533 = vmatpush.msra.mxu0 0.0
  %2534 = vmatpush.msra.mxu0 0.0
  %2535 = vmatpush.msra.mxu0 0.0
  %2536 = vmatpush.msra.mxu0 %v2488
  %2537 = vmatpush.msra.mxu0 %v2484
  %2538 = vmatmul.f32.gmra.mxu0 %v2494
  %v2539 = vpop.f32.mrf.mxu0
  %v2540 = vadd.f32 %v2517, %v2539
  %2541 = vmatmul.f32.gmra.mxu0 %v2497
  %v2542 = vpop.f32.mrf.mxu0
  %v2543 = vadd.f32 %v2520, %v2542
  %2544 = vdwg.mxu0
  %2545 = vmatpush.msra.mxu0 %v2481
  %2546 = vmatpush.msra.mxu0 %v2477
  %2547 = vmatpush.msra.mxu0 %v2473
  %2548 = vmatpush.msra.mxu0 %v2469
  %2549 = vmatpush.msra.mxu0 %v2465
  %2550 = vmatpush.msra.mxu0 %v2461
  %2551 = vmatpush.msra.mxu0 %v2457
  %2552 = vmatpush.msra.mxu0 %v2453
  %2553 = vmatpush.msra.mxu0 %v2449
  %2554 = vmatpush.msra.mxu0 %v2445
  %2555 = vmatpush.msra.mxu0 %v2441
  %2556 = vmatpush.msra.mxu0 %v2437
  %2557 = vmatpush.msra.mxu0 %v2433
  %2558 = vmatpush.msra.mxu0 %v2429
  %2559 = vmatpush.msra.mxu0 %v2425
  %2560 = vmatpush.msra.mxu0 %v2421
  %2561 = vmatmul.f32.gmra.mxu0 %v2416
  %v2562 = vpop.f32.mrf.mxu0
  %v2563 = vadd.f32 0.0, %v2562
  %2564 = vmatmul.f32.gmra.mxu0 %v2418
  %v2565 = vpop.f32.mrf.mxu0
  %v2566 = vadd.f32 0.0, %v2565
  %2567 = vdwg.mxu0
  %2568 = vmatpush.msra.mxu0 0.0
  %2569 = vmatpush.msra.mxu0 0.0
  %2570 = vmatpush.msra.mxu0 0.0
  %2571 = vmatpush.msra.mxu0 0.0
  %2572 = vmatpush.msra.mxu0 0.0
  %2573 = vmatpush.msra.mxu0 0.0
  %2574 = vmatpush.msra.mxu0 0.0
  %2575 = vmatpush.msra.mxu0 0.0
  %2576 = vmatpush.msra.mxu0 0.0
  %2577 = vmatpush.msra.mxu0 0.0
  %2578 = vmatpush.msra.mxu0 0.0
  %2579 = vmatpush.msra.mxu0 0.0
  %2580 = vmatpush.msra.mxu0 0.0
  %2581 = vmatpush.msra.mxu0 0.0
  %2582 = vmatpush.msra.mxu0 %v2489
  %2583 = vmatpush.msra.mxu0 %v2485
  %2584 = vmatmul.f32.gmra.mxu0 %v2494
  %v2585 = vpop.f32.mrf.mxu0
  %v2586 = vadd.f32 %v2563, %v2585
  %2587 = vmatmul.f32.gmra.mxu0 %v2497
  %v2588 = vpop.f32.mrf.mxu0
  %v2589 = vadd.f32 %v2566, %v2588
  %2590 = vdwg.mxu0
  %2591 = vmatpush.msra.mxu0 %v2482
  %2592 = vmatpush.msra.mxu0 %v2478
  %2593 = vmatpush.msra.mxu0 %v2474
  %2594 = vmatpush.msra.mxu0 %v2470
  %2595 = vmatpush.msra.mxu0 %v2466
  %2596 = vmatpush.msra.mxu0 %v2462
  %2597 = vmatpush.msra.mxu0 %v2458
  %2598 = vmatpush.msra.mxu0 %v2454
  %2599 = vmatpush.msra.mxu0 %v2450
  %2600 = vmatpush.msra.mxu0 %v2446
  %2601 = vmatpush.msra.mxu0 %v2442
  %2602 = vmatpush.msra.mxu0 %v2438
  %2603 = vmatpush.msra.mxu0 %v2434
  %2604 = vmatpush.msra.mxu0 %v2430
  %2605 = vmatpush.msra.mxu0 %v2426
  %2606 = vmatpush.msra.mxu0 %v2422
  %2607 = vmatmul.f32.gmra.mxu0 %v2416
  %v2608 = vpop.f32.mrf.mxu0
  %v2609 = vadd.f32 0.0, %v2608
  %2610 = vmatmul.f32.gmra.mxu0 %v2418
  %v2611 = vpop.f32.mrf.mxu0
  %v2612 = vadd.f32 0.0, %v2611
  %2613 = vdwg.mxu0
  %2614 = vmatpush.msra.mxu0 0.0
  %2615 = vmatpush.msra.mxu0 0.0
  %2616 = vmatpush.msra.mxu0 0.0
  %2617 = vmatpush.msra.mxu0 0.0
  %2618 = vmatpush.msra.mxu0 0.0
  %2619 = vmatpush.msra.mxu0 0.0
  %2620 = vmatpush.msra.mxu0 0.0
  %2621 = vmatpush.msra.mxu0 0.0
  %2622 = vmatpush.msra.mxu0 0.0
  %2623 = vmatpush.msra.mxu0 0.0
  %2624 = vmatpush.msra.mxu0 0.0
  %2625 = vmatpush.msra.mxu0 0.0
  %2626 = vmatpush.msra.mxu0 0.0
  %2627 = vmatpush.msra.mxu0 0.0
  %2628 = vmatpush.msra.mxu0 %v2490
  %2629 = vmatpush.msra.mxu0 %v2486
  %2630 = vmatmul.f32.gmra.mxu0 %v2494
  %v2631 = vpop.f32.mrf.mxu0
  %v2632 = vadd.f32 %v2609, %v2631
  %2633 = vmatmul.f32.gmra.mxu0 %v2497
  %v2634 = vpop.f32.mrf.mxu0
  %v2635 = vadd.f32 %v2612, %v2634
  %2636 = vdwg.mxu0
  %2637 = vmatpush.msra.mxu0 %v2483
  %2638 = vmatpush.msra.mxu0 %v2479
  %2639 = vmatpush.msra.mxu0 %v2475
  %2640 = vmatpush.msra.mxu0 %v2471
  %2641 = vmatpush.msra.mxu0 %v2467
  %2642 = vmatpush.msra.mxu0 %v2463
  %2643 = vmatpush.msra.mxu0 %v2459
  %2644 = vmatpush.msra.mxu0 %v2455
  %2645 = vmatpush.msra.mxu0 %v2451
  %2646 = vmatpush.msra.mxu0 %v2447
  %2647 = vmatpush.msra.mxu0 %v2443
  %2648 = vmatpush.msra.mxu0 %v2439
  %2649 = vmatpush.msra.mxu0 %v2435
  %2650 = vmatpush.msra.mxu0 %v2431
  %2651 = vmatpush.msra.mxu0 %v2427
  %2652 = vmatpush.msra.mxu0 %v2423
  %2653 = vmatmul.f32.gmra.mxu0 %v2416
  %v2654 = vpop.f32.mrf.mxu0
  %v2655 = vadd.f32 0.0, %v2654
  %2656 = vmatmul.f32.gmra.mxu0 %v2418
  %v2657 = vpop.f32.mrf.mxu0
  %v2658 = vadd.f32 0.0, %v2657
  %2659 = vdwg.mxu0
  %2660 = vmatpush.msra.mxu0 0.0
  %2661 = vmatpush.msra.mxu0 0.0
  %2662 = vmatpush.msra.mxu0 0.0
  %2663 = vmatpush.msra.mxu0 0.0
  %2664 = vmatpush.msra.mxu0 0.0
  %2665 = vmatpush.msra.mxu0 0.0
  %2666 = vmatpush.msra.mxu0 0.0
  %2667 = vmatpush.msra.mxu0 0.0
  %2668 = vmatpush.msra.mxu0 0.0
  %2669 = vmatpush.msra.mxu0 0.0
  %2670 = vmatpush.msra.mxu0 0.0
  %2671 = vmatpush.msra.mxu0 0.0
  %2672 = vmatpush.msra.mxu0 0.0
  %2673 = vmatpush.msra.mxu0 0.0
  %2674 = vmatpush.msra.mxu0 %v2491
  %2675 = vmatpush.msra.mxu0 %v2487
  %2676 = vmatmul.f32.gmra.mxu0 %v2494
  %v2677 = vpop.f32.mrf.mxu0
  %v2678 = vadd.f32 %v2655, %v2677
  %2679 = vmatmul.f32.gmra.mxu0 %v2497
  %v2680 = vpop.f32.mrf.mxu0
  %v2681 = vadd.f32 %v2658, %v2680
  %2682 = vdwg.mxu0
  %2683 = vst [vmem:[%s10 + $0x20] sm:$0xff] %v2540
  %2684 = vst [vmem:[%s10 + $0x28] sm:$0xff] %v2586
  %2685 = vst [vmem:[%s10 + $0x30] sm:$0xff] %v2543
  %2686 = vst [vmem:[%s10 + $0x38] sm:$0xff] %v2589
  %2687 = vst [vmem:[%s1827 + $0x20] sm:$0xff] %v2632
  %2688 = vst [vmem:[%s1827 + $0x28] sm:$0xff] %v2678
  %2689 = vst [vmem:[%s1827 + $0x30] sm:$0xff] %v2635
  %2690 = vst [vmem:[%s1827 + $0x38] sm:$0xff] %v2681
  %v2691 = vld [vmem:[%s5] sm:$0xff]
  %v2692 = vld [vmem:[%s5 + $0x8] sm:$0xff]
  %v2693 = vld [vmem:[%s5 + $0x10] sm:$0xff]
  %v2694 = vld [vmem:[%s5 + $0x18] sm:$0xff]
  %v2695 = vld [vmem:[%s5 + $0x20] sm:$0xff]
  %v2696 = vld [vmem:[%s5 + $0x28] sm:$0xff]
  %v2697 = vld [vmem:[%s5 + $0x30] sm:$0xff]
  %v2698 = vld [vmem:[%s5 + $0x38] sm:$0xff]
  %v2699 = vld [vmem:[%s5 + $0x40] sm:$0xff]
  %v2700 = vld [vmem:[%s5 + $0x48] sm:$0xff]
  %v2701 = vld [vmem:[%s5 + $0x50] sm:$0xff]
  %v2702 = vld [vmem:[%s5 + $0x58] sm:$0xff]
  %v2703 = vld [vmem:[%s5 + $0x60] sm:$0xff]
  %v2704 = vld [vmem:[%s5 + $0x68] sm:$0xff]
  %v2705 = vld [vmem:[%s5 + $0x70] sm:$0xff]
  %v2706 = vld [vmem:[%s5 + $0x78] sm:$0xff]
  %v2707 = vld [vmem:[%s5 + $0x80] sm:$0xff]
  %v2708 = vld [vmem:[%s5 + $0x88] sm:$0xff]
  %v2709 = vld [vmem:[%s5 + $0x90] sm:$0xff]
  %v2710 = vld [vmem:[%s5 + $0x98] sm:$0xff]
  %v2711 = vld [vmem:[%s5 + $0xa0] sm:$0xff]
  %v2712 = vld [vmem:[%s5 + $0xa8] sm:$0xff]
  %v2713 = vld [vmem:[%s5 + $0xb0] sm:$0xff]
  %v2714 = vld [vmem:[%s5 + $0xb8] sm:$0xff]
  %v2715 = vld [vmem:[%s5 + $0xc0] sm:$0xff]
  %v2716 = vld [vmem:[%s5 + $0xc8] sm:$0xff]
  %v2717 = vld [vmem:[%s5 + $0xd0] sm:$0xff]
  %v2718 = vld [vmem:[%s5 + $0xd8] sm:$0xff]
  %v2719 = vld [vmem:[%s5 + $0xe0] sm:$0xff]
  %v2720 = vld [vmem:[%s5 + $0xe8] sm:$0xff]
  %v2721 = vld [vmem:[%s5 + $0xf0] sm:$0xff]
  %v2722 = vld [vmem:[%s5 + $0xf8] sm:$0xff]
  %v2723 = vld [vmem:[%s5 + $0x100] sm:$0xff]
  %v2724 = vld [vmem:[%s5 + $0x108] sm:$0xff]
  %v2725 = vld [vmem:[%s5 + $0x110] sm:$0xff]
  %v2726 = vld [vmem:[%s5 + $0x118] sm:$0xff]
  %v2727 = vld [vmem:[%s5 + $0x120] sm:$0xff]
  %v2728 = vld [vmem:[%s5 + $0x128] sm:$0xff]
  %v2729 = vld [vmem:[%s5 + $0x130] sm:$0xff]
  %v2730 = vld [vmem:[%s5 + $0x138] sm:$0xff]
  %v2731 = vld [vmem:[%s5 + $0x140] sm:$0xff]
  %v2732 = vld [vmem:[%s5 + $0x148] sm:$0xff]
  %v2733 = vld [vmem:[%s5 + $0x150] sm:$0xff]
  %v2734 = vld [vmem:[%s5 + $0x158] sm:$0xff]
  %v2735 = vld [vmem:[%s5 + $0x160] sm:$0xff]
  %v2736 = vld [vmem:[%s5 + $0x168] sm:$0xff]
  %v2737 = vld [vmem:[%s5 + $0x170] sm:$0xff]
  %v2738 = vld [vmem:[%s5 + $0x178] sm:$0xff]
  %v2739 = vld [vmem:[%s5 + $0x180] sm:$0xff]
  %v2740 = vld [vmem:[%s5 + $0x188] sm:$0xff]
  %v2741 = vld [vmem:[%s5 + $0x190] sm:$0xff]
  %v2742 = vld [vmem:[%s5 + $0x198] sm:$0xff]
  %v2743 = vld [vmem:[%s5 + $0x1a0] sm:$0xff]
  %v2744 = vld [vmem:[%s5 + $0x1a8] sm:$0xff]
  %v2745 = vld [vmem:[%s5 + $0x1b0] sm:$0xff]
  %v2746 = vld [vmem:[%s5 + $0x1b8] sm:$0xff]
  %v2747 = vld [vmem:[%s5 + $0x1c0] sm:$0xff]
  %v2748 = vld [vmem:[%s5 + $0x1c8] sm:$0xff]
  %v2749 = vld [vmem:[%s5 + $0x1d0] sm:$0xff]
  %v2750 = vld [vmem:[%s5 + $0x1d8] sm:$0xff]
  %v2751 = vld [vmem:[%s5 + $0x1e0] sm:$0xff]
  %v2752 = vld [vmem:[%s5 + $0x1e8] sm:$0xff]
  %v2753 = vld [vmem:[%s5 + $0x1f0] sm:$0xff]
  %v2754 = vld [vmem:[%s5 + $0x1f8] sm:$0xff]
  %2755 = vmatpush.msra.mxu0 %v2721
  %2756 = vmatpush.msra.mxu0 %v2719
  %2757 = vmatpush.msra.mxu0 %v2717
  %2758 = vmatpush.msra.mxu0 %v2715
  %2759 = vmatpush.msra.mxu0 %v2713
  %2760 = vmatpush.msra.mxu0 %v2711
  %2761 = vmatpush.msra.mxu0 %v2709
  %2762 = vmatpush.msra.mxu0 %v2707
  %2763 = vmatpush.msra.mxu0 %v2705
  %2764 = vmatpush.msra.mxu0 %v2703
  %2765 = vmatpush.msra.mxu0 %v2701
  %2766 = vmatpush.msra.mxu0 %v2699
  %2767 = vmatpush.msra.mxu0 %v2697
  %2768 = vmatpush.msra.mxu0 %v2695
  %2769 = vmatpush.msra.mxu0 %v2693
  %2770 = vmatpush.msra.mxu0 %v2691
  %2771 = vmatmul.f32.gmra.mxu0 %v2540
  %v2772 = vpop.f32.mrf.mxu0
  %v2773 = vadd.f32 0.0, %v2772
  %2774 = vmatmul.f32.gmra.mxu0 %v2543
  %v2775 = vpop.f32.mrf.mxu0
  %v2776 = vadd.f32 0.0, %v2775
  %2777 = vdwg.mxu0
  %2778 = vmatpush.msra.mxu0 %v2753
  %2779 = vmatpush.msra.mxu0 %v2751
  %2780 = vmatpush.msra.mxu0 %v2749
  %2781 = vmatpush.msra.mxu0 %v2747
  %2782 = vmatpush.msra.mxu0 %v2745
  %2783 = vmatpush.msra.mxu0 %v2743
  %2784 = vmatpush.msra.mxu0 %v2741
  %2785 = vmatpush.msra.mxu0 %v2739
  %2786 = vmatpush.msra.mxu0 %v2737
  %2787 = vmatpush.msra.mxu0 %v2735
  %2788 = vmatpush.msra.mxu0 %v2733
  %2789 = vmatpush.msra.mxu0 %v2731
  %2790 = vmatpush.msra.mxu0 %v2729
  %2791 = vmatpush.msra.mxu0 %v2727
  %2792 = vmatpush.msra.mxu0 %v2725
  %2793 = vmatpush.msra.mxu0 %v2723
  %2794 = vmatmul.f32.gmra.mxu0 %v2586
  %v2795 = vpop.f32.mrf.mxu0
  %v2796 = vadd.f32 %v2773, %v2795
  %2797 = vmatmul.f32.gmra.mxu0 %v2589
  %v2798 = vpop.f32.mrf.mxu0
  %v2799 = vadd.f32 %v2776, %v2798
  %2800 = vdwg.mxu0
  %2801 = vmatpush.msra.mxu0 %v2722
  %2802 = vmatpush.msra.mxu0 %v2720
  %2803 = vmatpush.msra.mxu0 %v2718
  %2804 = vmatpush.msra.mxu0 %v2716
  %2805 = vmatpush.msra.mxu0 %v2714
  %2806 = vmatpush.msra.mxu0 %v2712
  %2807 = vmatpush.msra.mxu0 %v2710
  %2808 = vmatpush.msra.mxu0 %v2708
  %2809 = vmatpush.msra.mxu0 %v2706
  %2810 = vmatpush.msra.mxu0 %v2704
  %2811 = vmatpush.msra.mxu0 %v2702
  %2812 = vmatpush.msra.mxu0 %v2700
  %2813 = vmatpush.msra.mxu0 %v2698
  %2814 = vmatpush.msra.mxu0 %v2696
  %2815 = vmatpush.msra.mxu0 %v2694
  %2816 = vmatpush.msra.mxu0 %v2692
  %2817 = vmatmul.f32.gmra.mxu0 %v2540
  %v2818 = vpop.f32.mrf.mxu0
  %v2819 = vadd.f32 0.0, %v2818
  %2820 = vmatmul.f32.gmra.mxu0 %v2543
  %v2821 = vpop.f32.mrf.mxu0
  %v2822 = vadd.f32 0.0, %v2821
  %2823 = vdwg.mxu0
  %2824 = vmatpush.msra.mxu0 %v2754
  %2825 = vmatpush.msra.mxu0 %v2752
  %2826 = vmatpush.msra.mxu0 %v2750
  %2827 = vmatpush.msra.mxu0 %v2748
  %2828 = vmatpush.msra.mxu0 %v2746
  %2829 = vmatpush.msra.mxu0 %v2744
  %2830 = vmatpush.msra.mxu0 %v2742
  %2831 = vmatpush.msra.mxu0 %v2740
  %2832 = vmatpush.msra.mxu0 %v2738
  %2833 = vmatpush.msra.mxu0 %v2736
  %2834 = vmatpush.msra.mxu0 %v2734
  %2835 = vmatpush.msra.mxu0 %v2732
  %2836 = vmatpush.msra.mxu0 %v2730
  %2837 = vmatpush.msra.mxu0 %v2728
  %2838 = vmatpush.msra.mxu0 %v2726
  %2839 = vmatpush.msra.mxu0 %v2724
  %2840 = vmatmul.f32.gmra.mxu0 %v2586
  %v2841 = vpop.f32.mrf.mxu0
  %v2842 = vadd.f32 %v2819, %v2841
  %2843 = vmatmul.f32.gmra.mxu0 %v2589
  %v2844 = vpop.f32.mrf.mxu0
  %v2845 = vadd.f32 %v2822, %v2844
  %2846 = vdwg.mxu0
  %2847 = vmatpush.msra.mxu0 %v2721
  %2848 = vmatpush.msra.mxu0 %v2719
  %2849 = vmatpush.msra.mxu0 %v2717
  %2850 = vmatpush.msra.mxu0 %v2715
  %2851 = vmatpush.msra.mxu0 %v2713
  %2852 = vmatpush.msra.mxu0 %v2711
  %2853 = vmatpush.msra.mxu0 %v2709
  %2854 = vmatpush.msra.mxu0 %v2707
  %2855 = vmatpush.msra.mxu0 %v2705
  %2856 = vmatpush.msra.mxu0 %v2703
  %2857 = vmatpush.msra.mxu0 %v2701
  %2858 = vmatpush.msra.mxu0 %v2699
  %2859 = vmatpush.msra.mxu0 %v2697
  %2860 = vmatpush.msra.mxu0 %v2695
  %2861 = vmatpush.msra.mxu0 %v2693
  %2862 = vmatpush.msra.mxu0 %v2691
  %2863 = vmatmul.f32.gmra.mxu0 %v2632
  %v2864 = vpop.f32.mrf.mxu0
  %v2865 = vadd.f32 0.0, %v2864
  %2866 = vmatmul.f32.gmra.mxu0 %v2635
  %v2867 = vpop.f32.mrf.mxu0
  %v2868 = vadd.f32 0.0, %v2867
  %2869 = vdwg.mxu0
  %2870 = vmatpush.msra.mxu0 %v2753
  %2871 = vmatpush.msra.mxu0 %v2751
  %2872 = vmatpush.msra.mxu0 %v2749
  %2873 = vmatpush.msra.mxu0 %v2747
  %2874 = vmatpush.msra.mxu0 %v2745
  %2875 = vmatpush.msra.mxu0 %v2743
  %2876 = vmatpush.msra.mxu0 %v2741
  %2877 = vmatpush.msra.mxu0 %v2739
  %2878 = vmatpush.msra.mxu0 %v2737
  %2879 = vmatpush.msra.mxu0 %v2735
  %2880 = vmatpush.msra.mxu0 %v2733
  %2881 = vmatpush.msra.mxu0 %v2731
  %2882 = vmatpush.msra.mxu0 %v2729
  %2883 = vmatpush.msra.mxu0 %v2727
  %2884 = vmatpush.msra.mxu0 %v2725
  %2885 = vmatpush.msra.mxu0 %v2723
  %2886 = vmatmul.f32.gmra.mxu0 %v2678
  %v2887 = vpop.f32.mrf.mxu0
  %v2888 = vadd.f32 %v2865, %v2887
  %2889 = vmatmul.f32.gmra.mxu0 %v2681
  %v2890 = vpop.f32.mrf.mxu0
  %v2891 = vadd.f32 %v2868, %v2890
  %2892 = vdwg.mxu0
  %2893 = vmatpush.msra.mxu0 %v2722
  %2894 = vmatpush.msra.mxu0 %v2720
  %2895 = vmatpush.msra.mxu0 %v2718
  %2896 = vmatpush.msra.mxu0 %v2716
  %2897 = vmatpush.msra.mxu0 %v2714
  %2898 = vmatpush.msra.mxu0 %v2712
  %2899 = vmatpush.msra.mxu0 %v2710
  %2900 = vmatpush.msra.mxu0 %v2708
  %2901 = vmatpush.msra.mxu0 %v2706
  %2902 = vmatpush.msra.mxu0 %v2704
  %2903 = vmatpush.msra.mxu0 %v2702
  %2904 = vmatpush.msra.mxu0 %v2700
  %2905 = vmatpush.msra.mxu0 %v2698
  %2906 = vmatpush.msra.mxu0 %v2696
  %2907 = vmatpush.msra.mxu0 %v2694
  %2908 = vmatpush.msra.mxu0 %v2692
  %2909 = vmatmul.f32.gmra.mxu0 %v2632
  %v2910 = vpop.f32.mrf.mxu0
  %v2911 = vadd.f32 0.0, %v2910
  %2912 = vmatmul.f32.gmra.mxu0 %v2635
  %v2913 = vpop.f32.mrf.mxu0
  %v2914 = vadd.f32 0.0, %v2913
  %2915 = vdwg.mxu0
  %2916 = vmatpush.msra.mxu0 %v2754
  %2917 = vmatpush.msra.mxu0 %v2752
  %2918 = vmatpush.msra.mxu0 %v2750
  %2919 = vmatpush.msra.mxu0 %v2748
  %2920 = vmatpush.msra.mxu0 %v2746
  %2921 = vmatpush.msra.mxu0 %v2744
  %2922 = vmatpush.msra.mxu0 %v2742
  %2923 = vmatpush.msra.mxu0 %v2740
  %2924 = vmatpush.msra.mxu0 %v2738
  %2925 = vmatpush.msra.mxu0 %v2736
  %2926 = vmatpush.msra.mxu0 %v2734
  %2927 = vmatpush.msra.mxu0 %v2732
  %2928 = vmatpush.msra.mxu0 %v2730
  %2929 = vmatpush.msra.mxu0 %v2728
  %2930 = vmatpush.msra.mxu0 %v2726
  %2931 = vmatpush.msra.mxu0 %v2724
  %2932 = vmatmul.f32.gmra.mxu0 %v2678
  %v2933 = vpop.f32.mrf.mxu0
  %v2934 = vadd.f32 %v2911, %v2933
  %2935 = vmatmul.f32.gmra.mxu0 %v2681
  %v2936 = vpop.f32.mrf.mxu0
  %v2937 = vadd.f32 %v2914, %v2936
  %2938 = vdwg.mxu0
  %2939 = vrot.lane.b32.xlu0 %v2540, 1
  %v2940 = vpop.permute.xlu0 %2939
  %2941 = vrot.lane.b32.xlu0 %v2543, 1
  %v2942 = vpop.permute.xlu0 %2941
  %2943 = vrot.lane.b32.xlu0 %v2586, 1
  %v2944 = vpop.permute.xlu0 %2943
  %2945 = vrot.lane.b32.xlu0 %v2589, 1
  %v2946 = vpop.permute.xlu0 %2945
  %2947 = vrot.lane.b32.xlu0 %v2632, 1
  %v2948 = vpop.permute.xlu0 %2947
  %2949 = vrot.lane.b32.xlu0 %v2635, 1
  %v2950 = vpop.permute.xlu0 %2949
  %2951 = vrot.lane.b32.xlu0 %v2678, 1
  %v2952 = vpop.permute.xlu0 %2951
  %2953 = vrot.lane.b32.xlu0 %v2681, 1
  %v2954 = vpop.permute.xlu0 %2953
  %v2955 = vsel %vm56, %v2948, %v2952
  %v2956 = vsel %vm56, %v2950, %v2954
  %v2957 = vsel %vm56, %v2944, %v2948
  %v2958 = vsel %vm56, %v2946, %v2950
  %v2959 = vsel %vm56, %v2940, %v2944
  %v2960 = vsel %vm56, %v2942, %v2946
  %v2961 = vsel %vm56, %v2952, %v2940
  %v2962 = vsel %vm56, %v2954, %v2942
  %v2963 = vadd.f32 %v2961, %v1034
  %v2964 = vadd.f32 %v2959, %v1035
  %v2965 = vadd.f32 %v2957, %v1036
  %v2966 = vadd.f32 %v2955, %v1037
  %v2967 = vadd.f32 %v2962, %v1034
  %v2968 = vadd.f32 %v2960, %v1035
  %v2969 = vadd.f32 %v2958, %v1036
  %v2970 = vadd.f32 %v2956, %v1037
  %v2971 = vmax.f32 %v2540, %v2963
  %v2972 = vmax.f32 %v2586, %v2964
  %v2973 = vmax.f32 %v2632, %v2965
  %v2974 = vmax.f32 %v2678, %v2966
  %v2975 = vmax.f32 %v2543, %v2967
  %v2976 = vmax.f32 %v2589, %v2968
  %v2977 = vmax.f32 %v2635, %v2969
  %v2978 = vmax.f32 %v2681, %v2970
  %2979 = vrot.lane.b32.xlu0 %v2540, 127
  %v2980 = vpop.permute.xlu0 %2979
  %2981 = vrot.lane.b32.xlu0 %v2543, 127
  %v2982 = vpop.permute.xlu0 %2981
  %2983 = vrot.lane.b32.xlu0 %v2586, 127
  %v2984 = vpop.permute.xlu0 %2983
  %2985 = vrot.lane.b32.xlu0 %v2589, 127
  %v2986 = vpop.permute.xlu0 %2985
  %2987 = vrot.lane.b32.xlu0 %v2632, 127
  %v2988 = vpop.permute.xlu0 %2987
  %2989 = vrot.lane.b32.xlu0 %v2635, 127
  %v2990 = vpop.permute.xlu0 %2989
  %2991 = vrot.lane.b32.xlu0 %v2678, 127
  %v2992 = vpop.permute.xlu0 %2991
  %2993 = vrot.lane.b32.xlu0 %v2681, 127
  %v2994 = vpop.permute.xlu0 %2993
  %v2995 = vsel %vm94, %v2988, %v2992
  %v2996 = vsel %vm94, %v2990, %v2994
  %v2997 = vsel %vm94, %v2984, %v2988
  %v2998 = vsel %vm94, %v2986, %v2990
  %v2999 = vsel %vm94, %v2980, %v2984
  %v3000 = vsel %vm94, %v2982, %v2986
  %v3001 = vsel %vm94, %v2992, %v2980
  %v3002 = vsel %vm94, %v2994, %v2982
  %v3003 = vadd.f32 %v2999, %v1118
  %v3004 = vadd.f32 %v2997, %v1119
  %v3005 = vadd.f32 %v2995, %v1120
  %v3006 = vadd.f32 %v3001, %v1121
  %v3007 = vadd.f32 %v3000, %v1118
  %v3008 = vadd.f32 %v2998, %v1119
  %v3009 = vadd.f32 %v2996, %v1120
  %v3010 = vadd.f32 %v3002, %v1121
  %v3011 = vmax.f32 %v2971, %v3003
  %v3012 = vmax.f32 %v2972, %v3004
  %v3013 = vmax.f32 %v2973, %v3005
  %v3014 = vmax.f32 %v2974, %v3006
  %v3015 = vmax.f32 %v2975, %v3007
  %v3016 = vmax.f32 %v2976, %v3008
  %v3017 = vmax.f32 %v2977, %v3009
  %v3018 = vmax.f32 %v2978, %v3010
  %3019 = vrot.lane.b32.xlu0 %v3011, 16
  %v3020 = vpop.permute.xlu0 %3019
  %3021 = vrot.lane.b32.xlu0 %v3015, 16
  %v3022 = vpop.permute.xlu0 %3021
  %3023 = vrot.lane.b32.xlu0 %v3012, 16
  %v3024 = vpop.permute.xlu0 %3023
  %3025 = vrot.lane.b32.xlu0 %v3016, 16
  %v3026 = vpop.permute.xlu0 %3025
  %3027 = vrot.lane.b32.xlu0 %v3013, 16
  %v3028 = vpop.permute.xlu0 %3027
  %3029 = vrot.lane.b32.xlu0 %v3017, 16
  %v3030 = vpop.permute.xlu0 %3029
  %3031 = vrot.lane.b32.xlu0 %v3014, 16
  %v3032 = vpop.permute.xlu0 %3031
  %3033 = vrot.lane.b32.xlu0 %v3018, 16
  %v3034 = vpop.permute.xlu0 %3033
  %v3035 = vsel %vm124, %v3028, %v3032
  %v3036 = vsel %vm124, %v3030, %v3034
  %v3037 = vsel %vm124, %v3024, %v3028
  %v3038 = vsel %vm124, %v3026, %v3030
  %v3039 = vsel %vm124, %v3020, %v3024
  %v3040 = vsel %vm124, %v3022, %v3026
  %v3041 = vsel %vm124, %v3032, %v3020
  %v3042 = vsel %vm124, %v3034, %v3022
  %v3043 = vadd.f32 %v3041, %v1202
  %v3044 = vadd.f32 %v3039, %v1203
  %v3045 = vadd.f32 %v3037, %v1204
  %v3046 = vadd.f32 %v3035, %v1205
  %v3047 = vadd.f32 %v3042, %v1202
  %v3048 = vadd.f32 %v3040, %v1203
  %v3049 = vadd.f32 %v3038, %v1204
  %v3050 = vadd.f32 %v3036, %v1205
  %v3051 = vmax.f32 %v3011, %v3043
  %v3052 = vmax.f32 %v3012, %v3044
  %v3053 = vmax.f32 %v3013, %v3045
  %v3054 = vmax.f32 %v3014, %v3046
  %v3055 = vmax.f32 %v3015, %v3047
  %v3056 = vmax.f32 %v3016, %v3048
  %v3057 = vmax.f32 %v3017, %v3049
  %v3058 = vmax.f32 %v3018, %v3050
  %3059 = vrot.lane.b32.xlu0 %v3011, 112
  %v3060 = vpop.permute.xlu0 %3059
  %3061 = vrot.lane.b32.xlu0 %v3015, 112
  %v3062 = vpop.permute.xlu0 %3061
  %3063 = vrot.lane.b32.xlu0 %v3012, 112
  %v3064 = vpop.permute.xlu0 %3063
  %3065 = vrot.lane.b32.xlu0 %v3016, 112
  %v3066 = vpop.permute.xlu0 %3065
  %3067 = vrot.lane.b32.xlu0 %v3013, 112
  %v3068 = vpop.permute.xlu0 %3067
  %3069 = vrot.lane.b32.xlu0 %v3017, 112
  %v3070 = vpop.permute.xlu0 %3069
  %3071 = vrot.lane.b32.xlu0 %v3014, 112
  %v3072 = vpop.permute.xlu0 %3071
  %3073 = vrot.lane.b32.xlu0 %v3018, 112
  %v3074 = vpop.permute.xlu0 %3073
  %v3075 = vsel %vm194, %v3068, %v3072
  %v3076 = vsel %vm194, %v3070, %v3074
  %v3077 = vsel %vm194, %v3064, %v3068
  %v3078 = vsel %vm194, %v3066, %v3070
  %v3079 = vsel %vm194, %v3060, %v3064
  %v3080 = vsel %vm194, %v3062, %v3066
  %v3081 = vsel %vm194, %v3072, %v3060
  %v3082 = vsel %vm194, %v3074, %v3062
  %v3083 = vadd.f32 %v3079, %v1286
  %v3084 = vadd.f32 %v3077, %v1287
  %v3085 = vadd.f32 %v3075, %v1288
  %v3086 = vadd.f32 %v3081, %v1289
  %v3087 = vadd.f32 %v3080, %v1286
  %v3088 = vadd.f32 %v3078, %v1287
  %v3089 = vadd.f32 %v3076, %v1288
  %v3090 = vadd.f32 %v3082, %v1289
  %v3091 = vmax.f32 %v3051, %v3083
  %v3092 = vmax.f32 %v3052, %v3084
  %v3093 = vmax.f32 %v3053, %v3085
  %v3094 = vmax.f32 %v3054, %v3086
  %v3095 = vmax.f32 %v3055, %v3087
  %v3096 = vmax.f32 %v3056, %v3088
  %v3097 = vmax.f32 %v3057, %v3089
  %v3098 = vmax.f32 %v3058, %v3090
  %v3099 = vadd.f32 %v2796, %v2842
  %v3100 = vadd.f32 %v3099, %v2888
  %v3101 = vadd.f32 %v3100, %v2934
  %3102 = vadd.xlane.f32.xlu0 %v3101
  %v3103 = vpop.xlane.xlu0 %3102
  %v3104 = vadd.f32 %v2799, %v2845
  %v3105 = vadd.f32 %v3104, %v2891
  %v3106 = vadd.f32 %v3105, %v2937
  %3107 = vadd.xlane.f32.xlu0 %v3106
  %v3108 = vpop.xlane.xlu0 %3107
  %v3109 = vadd.f32 %v3091, %v3092
  %v3110 = vadd.f32 %v3109, %v3093
  %v3111 = vadd.f32 %v3110, %v3094
  %3112 = vadd.xlane.f32.xlu0 %v3111
  %v3113 = vpop.xlane.xlu0 %3112
  %v3114 = vadd.f32 %v3095, %v3096
  %v3115 = vadd.f32 %v3114, %v3097
  %v3116 = vadd.f32 %v3115, %v3098
  %3117 = vadd.xlane.f32.xlu0 %v3116
  %v3118 = vpop.xlane.xlu0 %3117
  %v3119 = vmul.f32 %v2796, %v2796
  %v3120 = vmul.f32 %v2842, %v2842
  %v3121 = vmul.f32 %v2888, %v2888
  %v3122 = vmul.f32 %v2934, %v2934
  %v3123 = vmul.f32 %v2799, %v2799
  %v3124 = vmul.f32 %v2845, %v2845
  %v3125 = vmul.f32 %v2891, %v2891
  %v3126 = vmul.f32 %v2937, %v2937
  %v3127 = vmul.f32 %v3091, %v3091
  %v3128 = vmul.f32 %v3092, %v3092
  %v3129 = vmul.f32 %v3093, %v3093
  %v3130 = vmul.f32 %v3094, %v3094
  %v3131 = vmul.f32 %v3095, %v3095
  %v3132 = vmul.f32 %v3096, %v3096
  %v3133 = vmul.f32 %v3097, %v3097
  %v3134 = vmul.f32 %v3098, %v3098
  %v3135 = vadd.f32 %v3119, %v3120
  %v3136 = vadd.f32 %v3135, %v3121
  %v3137 = vadd.f32 %v3136, %v3122
  %3138 = vadd.xlane.f32.xlu0 %v3137
  %v3139 = vpop.xlane.xlu0 %3138
  %v3140 = vadd.f32 %v3123, %v3124
  %v3141 = vadd.f32 %v3140, %v3125
  %v3142 = vadd.f32 %v3141, %v3126
  %3143 = vadd.xlane.f32.xlu0 %v3142
  %v3144 = vpop.xlane.xlu0 %3143
  %v3145 = vadd.f32 %v3127, %v3128
  %v3146 = vadd.f32 %v3145, %v3129
  %v3147 = vadd.f32 %v3146, %v3130
  %3148 = vadd.xlane.f32.xlu0 %v3147
  %v3149 = vpop.xlane.xlu0 %3148
  %v3150 = vadd.f32 %v3131, %v3132
  %v3151 = vadd.f32 %v3150, %v3133
  %v3152 = vadd.f32 %v3151, %v3134
  %3153 = vadd.xlane.f32.xlu0 %v3152
  %v3154 = vpop.xlane.xlu0 %3153
  %v3155 = vmul.f32 %v3103, 0.001953125
  %v3156 = vmul.f32 %v3108, 0.001953125
  %v3157 = vmul.f32 %v3113, 0.001953125
  %v3158 = vmul.f32 %v3118, 0.001953125
  %v3159 = vmul.f32 %v3139, 0.001953125
  %v3160 = vmul.f32 %v3144, 0.001953125
  %v3161 = vmul.f32 %v3149, 0.001953125
  %v3162 = vmul.f32 %v3154, 0.001953125
  %v3163 = vmul.f32 %v3155, %v3155
  %v3164 = vmul.f32 %v3156, %v3156
  %v3165 = vmul.f32 %v3157, %v3157
  %v3166 = vmul.f32 %v3158, %v3158
  %v3167 = vsub.f32 %v3159, %v3163
  %v3168 = vsub.f32 %v3160, %v3164
  %v3169 = vsub.f32 %v3161, %v3165
  %v3170 = vsub.f32 %v3162, %v3166
  %v3171 = vmax.f32 %v3167, 0.0
  %v3172 = vmax.f32 %v3168, 0.0
  %v3173 = vmax.f32 %v3169, 0.0
  %v3174 = vmax.f32 %v3170, 0.0
  %v3175 = vsub.f32 %v2796, %v3155
  %v3176 = vsub.f32 %v2842, %v3155
  %v3177 = vsub.f32 %v2888, %v3155
  %v3178 = vsub.f32 %v2934, %v3155
  %v3179 = vsub.f32 %v2799, %v3156
  %v3180 = vsub.f32 %v2845, %v3156
  %v3181 = vsub.f32 %v2891, %v3156
  %v3182 = vsub.f32 %v2937, %v3156
  %v3183 = vsub.f32 %v3091, %v3157
  %v3184 = vsub.f32 %v3092, %v3157
  %v3185 = vsub.f32 %v3093, %v3157
  %v3186 = vsub.f32 %v3094, %v3157
  %v3187 = vsub.f32 %v3095, %v3158
  %v3188 = vsub.f32 %v3096, %v3158
  %v3189 = vsub.f32 %v3097, %v3158
  %v3190 = vsub.f32 %v3098, %v3158
  %v3191 = vadd.f32 %v3171, 1e-05
  %v3192 = vadd.f32 %v3172, 1e-05
  %v3193 = vadd.f32 %v3173, 1e-05
  %v3194 = vadd.f32 %v3174, 1e-05
  %v3195 = vrsqrt.pop %v3191
  %v3196 = vmul.f32 %v3195, %v3191
  %v3197 = vmul.f32 %v3196, %v3195
  %v3198 = vmul.f32 0.5, %v3197
  %v3199 = vsub.f32 1.5, %v3198
  %v3200 = vmul.f32 %v3195, %v3199
  %vm3201 = vweird.f32 %v3191
  %vm3202 = vweird.f32 %v3195
  %vm3203 = vmor %vm3201, %vm3202
  %v3204 = vsel %vm3203, %v3195, %v3200
  %v3205 = vrsqrt.pop %v3192
  %v3206 = vmul.f32 %v3205, %v3192
  %v3207 = vmul.f32 %v3206, %v3205
  %v3208 = vmul.f32 0.5, %v3207
  %v3209 = vsub.f32 1.5, %v3208
  %v3210 = vmul.f32 %v3205, %v3209
  %vm3211 = vweird.f32 %v3192
  %vm3212 = vweird.f32 %v3205
  %vm3213 = vmor %vm3211, %vm3212
  %v3214 = vsel %vm3213, %v3205, %v3210
  %v3215 = vrsqrt.pop %v3193
  %v3216 = vmul.f32 %v3215, %v3193
  %v3217 = vmul.f32 %v3216, %v3215
  %v3218 = vmul.f32 0.5, %v3217
  %v3219 = vsub.f32 1.5, %v3218
  %v3220 = vmul.f32 %v3215, %v3219
  %vm3221 = vweird.f32 %v3193
  %vm3222 = vweird.f32 %v3215
  %vm3223 = vmor %vm3221, %vm3222
  %v3224 = vsel %vm3223, %v3215, %v3220
  %v3225 = vrsqrt.pop %v3194
  %v3226 = vmul.f32 %v3225, %v3194
  %v3227 = vmul.f32 %v3226, %v3225
  %v3228 = vmul.f32 0.5, %v3227
  %v3229 = vsub.f32 1.5, %v3228
  %v3230 = vmul.f32 %v3225, %v3229
  %vm3231 = vweird.f32 %v3194
  %vm3232 = vweird.f32 %v3225
  %vm3233 = vmor %vm3231, %vm3232
  %v3234 = vsel %vm3233, %v3225, %v3230
  %v3235 = vmul.f32 %v3175, %v3204
  %v3236 = vmul.f32 %v3176, %v3204
  %v3237 = vmul.f32 %v3177, %v3204
  %v3238 = vmul.f32 %v3178, %v3204
  %v3239 = vmul.f32 %v3179, %v3214
  %v3240 = vmul.f32 %v3180, %v3214
  %v3241 = vmul.f32 %v3181, %v3214
  %v3242 = vmul.f32 %v3182, %v3214
  %v3243 = vmul.f32 %v3183, %v3224
  %v3244 = vmul.f32 %v3184, %v3224
  %v3245 = vmul.f32 %v3185, %v3224
  %v3246 = vmul.f32 %v3186, %v3224
  %v3247 = vmul.f32 %v3187, %v3234
  %v3248 = vmul.f32 %v3188, %v3234
  %v3249 = vmul.f32 %v3189, %v3234
  %v3250 = vmul.f32 %v3190, %v3234
  %3251 = vst [vmem:[#allocation2 + $0x240] sm:$0xff] %v2540
  %3252 = vst [vmem:[#allocation2 + $0x248] sm:$0xff] %v2586
  %3253 = vst [vmem:[#allocation2 + $0x250] sm:$0xff] %v2632
  %3254 = vst [vmem:[#allocation2 + $0x258] sm:$0xff] %v2678
  %3255 = vst [vmem:[#allocation2 + $0x260] sm:$0xff] %v2543
  %3256 = vst [vmem:[#allocation2 + $0x268] sm:$0xff] %v2589
  %3257 = vst [vmem:[#allocation2 + $0x270] sm:$0xff] %v2635
  %3258 = vst [vmem:[#allocation2 + $0x278] sm:$0xff] %v2681
  %3259 = vst [vmem:[#allocation2 + $0x280] sm:$0xff] %v3235
  %3260 = vst [vmem:[#allocation2 + $0x288] sm:$0xff] %v3236
  %3261 = vst [vmem:[#allocation2 + $0x290] sm:$0xff] %v3237
  %3262 = vst [vmem:[#allocation2 + $0x298] sm:$0xff] %v3238
  %3263 = vst [vmem:[#allocation2 + $0x2a0] sm:$0xff] %v3239
  %3264 = vst [vmem:[#allocation2 + $0x2a8] sm:$0xff] %v3240
  %3265 = vst [vmem:[#allocation2 + $0x2b0] sm:$0xff] %v3241
  %3266 = vst [vmem:[#allocation2 + $0x2b8] sm:$0xff] %v3242
  %3267 = vst [vmem:[#allocation2 + $0x2c0] sm:$0xff] %v3243
  %3268 = vst [vmem:[#allocation2 + $0x2c8] sm:$0xff] %v3244
  %3269 = vst [vmem:[#allocation2 + $0x2d0] sm:$0xff] %v3245
  %3270 = vst [vmem:[#allocation2 + $0x2d8] sm:$0xff] %v3246
  %3271 = vst [vmem:[#allocation2 + $0x2e0] sm:$0xff] %v3247
  %3272 = vst [vmem:[#allocation2 + $0x2e8] sm:$0xff] %v3248
  %3273 = vst [vmem:[#allocation2 + $0x2f0] sm:$0xff] %v3249
  %3274 = vst [vmem:[#allocation2 + $0x2f8] sm:$0xff] %v3250
  %v3275 = vld [vmem:[%s8] sm:$0xff]
  %v3276 = vld [vmem:[%s8 + $0x8] sm:$0xff]
  %v3277 = vld [vmem:[%s8 + $0x10] sm:$0xff]
  %v3278 = vld [vmem:[%s8 + $0x18] sm:$0xff]
  %v3279 = vld [vmem:[#allocation2] sm:$0xff]
  %v3280 = vld [vmem:[#allocation2 + $0x8] sm:$0xff]
  %v3281 = vld [vmem:[#allocation2 + $0x10] sm:$0xff]
  %v3282 = vld [vmem:[#allocation2 + $0x18] sm:$0xff]
  %v3283 = vld [vmem:[#allocation2 + $0x20] sm:$0xff]
  %v3284 = vld [vmem:[#allocation2 + $0x28] sm:$0xff]
  %v3285 = vld [vmem:[#allocation2 + $0x30] sm:$0xff]
  %v3286 = vld [vmem:[#allocation2 + $0x38] sm:$0xff]
  %v3287 = vld [vmem:[#allocation2 + $0x40] sm:$0xff]
  %v3288 = vld [vmem:[#allocation2 + $0x48] sm:$0xff]
  %v3289 = vld [vmem:[#allocation2 + $0x50] sm:$0xff]
  %v3290 = vld [vmem:[#allocation2 + $0x58] sm:$0xff]
  %v3291 = vld [vmem:[#allocation2 + $0x60] sm:$0xff]
  %v3292 = vld [vmem:[#allocation2 + $0x68] sm:$0xff]
  %v3293 = vld [vmem:[#allocation2 + $0x70] sm:$0xff]
  %v3294 = vld [vmem:[#allocation2 + $0x78] sm:$0xff]
  %v3295 = vld [vmem:[#allocation2 + $0x80] sm:$0xff]
  %v3296 = vld [vmem:[#allocation2 + $0x88] sm:$0xff]
  %v3297 = vld [vmem:[#allocation2 + $0x90] sm:$0xff]
  %v3298 = vld [vmem:[#allocation2 + $0x98] sm:$0xff]
  %v3299 = vld [vmem:[#allocation2 + $0xa0] sm:$0xff]
  %v3300 = vld [vmem:[#allocation2 + $0xa8] sm:$0xff]
  %v3301 = vld [vmem:[#allocation2 + $0xb0] sm:$0xff]
  %v3302 = vld [vmem:[#allocation2 + $0xb8] sm:$0xff]
  %v3303 = vld [vmem:[#allocation2 + $0xc0] sm:$0xff]
  %v3304 = vld [vmem:[#allocation2 + $0xc8] sm:$0xff]
  %v3305 = vld [vmem:[#allocation2 + $0xd0] sm:$0xff]
  %v3306 = vld [vmem:[#allocation2 + $0xd8] sm:$0xff]
  %v3307 = vld [vmem:[#allocation2 + $0xe0] sm:$0xff]
  %v3308 = vld [vmem:[#allocation2 + $0xe8] sm:$0xff]
  %v3309 = vld [vmem:[#allocation2 + $0xf0] sm:$0xff]
  %v3310 = vld [vmem:[#allocation2 + $0xf8] sm:$0xff]
  %v3311 = vld [vmem:[#allocation2 + $0x100] sm:$0xff]
  %v3312 = vld [vmem:[#allocation2 + $0x108] sm:$0xff]
  %v3313 = vld [vmem:[#allocation2 + $0x110] sm:$0xff]
  %v3314 = vld [vmem:[#allocation2 + $0x118] sm:$0xff]
  %v3315 = vld [vmem:[#allocation2 + $0x120] sm:$0xff]
  %v3316 = vld [vmem:[#allocation2 + $0x128] sm:$0xff]
  %v3317 = vld [vmem:[#allocation2 + $0x130] sm:$0xff]
  %v3318 = vld [vmem:[#allocation2 + $0x138] sm:$0xff]
  %v3319 = vld [vmem:[#allocation2 + $0x140] sm:$0xff]
  %v3320 = vld [vmem:[#allocation2 + $0x148] sm:$0xff]
  %v3321 = vld [vmem:[#allocation2 + $0x150] sm:$0xff]
  %v3322 = vld [vmem:[#allocation2 + $0x158] sm:$0xff]
  %v3323 = vld [vmem:[#allocation2 + $0x160] sm:$0xff]
  %v3324 = vld [vmem:[#allocation2 + $0x168] sm:$0xff]
  %v3325 = vld [vmem:[#allocation2 + $0x170] sm:$0xff]
  %v3326 = vld [vmem:[#allocation2 + $0x178] sm:$0xff]
  %v3327 = vld [vmem:[#allocation2 + $0x180] sm:$0xff]
  %v3328 = vld [vmem:[#allocation2 + $0x188] sm:$0xff]
  %v3329 = vld [vmem:[#allocation2 + $0x190] sm:$0xff]
  %v3330 = vld [vmem:[#allocation2 + $0x198] sm:$0xff]
  %v3331 = vld [vmem:[#allocation2 + $0x1a0] sm:$0xff]
  %v3332 = vld [vmem:[#allocation2 + $0x1a8] sm:$0xff]
  %v3333 = vld [vmem:[#allocation2 + $0x1b0] sm:$0xff]
  %v3334 = vld [vmem:[#allocation2 + $0x1b8] sm:$0xff]
  %v3335 = vld [vmem:[#allocation2 + $0x1c0] sm:$0xff]
  %v3336 = vld [vmem:[#allocation2 + $0x1c8] sm:$0xff]
  %v3337 = vld [vmem:[#allocation2 + $0x1d0] sm:$0xff]
  %v3338 = vld [vmem:[#allocation2 + $0x1d8] sm:$0xff]
  %v3339 = vld [vmem:[#allocation2 + $0x1e0] sm:$0xff]
  %v3340 = vld [vmem:[#allocation2 + $0x1e8] sm:$0xff]
  %v3341 = vld [vmem:[#allocation2 + $0x1f0] sm:$0xff]
  %v3342 = vld [vmem:[#allocation2 + $0x1f8] sm:$0xff]
  %v3343 = vld [vmem:[#allocation2 + $0x200] sm:$0xff]
  %v3344 = vld [vmem:[#allocation2 + $0x208] sm:$0xff]
  %v3345 = vld [vmem:[#allocation2 + $0x210] sm:$0xff]
  %v3346 = vld [vmem:[#allocation2 + $0x218] sm:$0xff]
  %v3347 = vld [vmem:[#allocation2 + $0x220] sm:$0xff]
  %v3348 = vld [vmem:[#allocation2 + $0x228] sm:$0xff]
  %v3349 = vld [vmem:[#allocation2 + $0x230] sm:$0xff]
  %v3350 = vld [vmem:[#allocation2 + $0x238] sm:$0xff]
  %v3351 = vld [vmem:[#allocation2 + $0x240] sm:$0xff]
  %v3352 = vld [vmem:[#allocation2 + $0x248] sm:$0xff]
  %v3353 = vld [vmem:[#allocation2 + $0x250] sm:$0xff]
  %v3354 = vld [vmem:[#allocation2 + $0x258] sm:$0xff]
  %v3355 = vld [vmem:[#allocation2 + $0x260] sm:$0xff]
  %v3356 = vld [vmem:[#allocation2 + $0x268] sm:$0xff]
  %v3357 = vld [vmem:[#allocation2 + $0x270] sm:$0xff]
  %v3358 = vld [vmem:[#allocation2 + $0x278] sm:$0xff]
  %v3359 = vld [vmem:[#allocation2 + $0x280] sm:$0xff]
  %v3360 = vld [vmem:[#allocation2 + $0x288] sm:$0xff]
  %v3361 = vld [vmem:[#allocation2 + $0x290] sm:$0xff]
  %v3362 = vld [vmem:[#allocation2 + $0x298] sm:$0xff]
  %v3363 = vld [vmem:[#allocation2 + $0x2a0] sm:$0xff]
  %v3364 = vld [vmem:[#allocation2 + $0x2a8] sm:$0xff]
  %v3365 = vld [vmem:[#allocation2 + $0x2b0] sm:$0xff]
  %v3366 = vld [vmem:[#allocation2 + $0x2b8] sm:$0xff]
  %v3367 = vld [vmem:[#allocation2 + $0x2c0] sm:$0xff]
  %v3368 = vld [vmem:[#allocation2 + $0x2c8] sm:$0xff]
  %v3369 = vld [vmem:[#allocation2 + $0x2d0] sm:$0xff]
  %v3370 = vld [vmem:[#allocation2 + $0x2d8] sm:$0xff]
  %v3371 = vld [vmem:[#allocation2 + $0x2e0] sm:$0xff]
  %v3372 = vld [vmem:[#allocation2 + $0x2e8] sm:$0xff]
  %v3373 = vld [vmem:[#allocation2 + $0x2f0] sm:$0xff]
  %v3374 = vld [vmem:[#allocation2 + $0x2f8] sm:$0xff]
  %vm3375 = vcmask 523264
  %v3377 = vsel %vm3375, %v3276, 0
  %v3380 = vsel %vm3375, %v3278, 0
  %3382 = vmatpush.msra.mxu0 %v3339
  %3383 = vmatpush.msra.mxu0 %v3335
  %3384 = vmatpush.msra.mxu0 %v3331
  %3385 = vmatpush.msra.mxu0 %v3327
  %3386 = vmatpush.msra.mxu0 %v3323
  %3387 = vmatpush.msra.mxu0 %v3319
  %3388 = vmatpush.msra.mxu0 %v3315
  %3389 = vmatpush.msra.mxu0 %v3311
  %3390 = vmatpush.msra.mxu0 %v3307
  %3391 = vmatpush.msra.mxu0 %v3303
  %3392 = vmatpush.msra.mxu0 %v3299
  %3393 = vmatpush.msra.mxu0 %v3295
  %3394 = vmatpush.msra.mxu0 %v3291
  %3395 = vmatpush.msra.mxu0 %v3287
  %3396 = vmatpush.msra.mxu0 %v3283
  %3397 = vmatpush.msra.mxu0 %v3279
  %3398 = vmatmul.f32.gmra.mxu0 %v3275
  %v3399 = vpop.f32.mrf.mxu0
  %v3400 = vadd.f32 0.0, %v3399
  %3401 = vmatmul.f32.gmra.mxu0 %v3277
  %v3402 = vpop.f32.mrf.mxu0
  %v3403 = vadd.f32 0.0, %v3402
  %3404 = vdwg.mxu0
  %3405 = vmatpush.msra.mxu0 0.0
  %3406 = vmatpush.msra.mxu0 0.0
  %3407 = vmatpush.msra.mxu0 0.0
  %3408 = vmatpush.msra.mxu0 0.0
  %3409 = vmatpush.msra.mxu0 0.0
  %3410 = vmatpush.msra.mxu0 0.0
  %3411 = vmatpush.msra.mxu0 0.0
  %3412 = vmatpush.msra.mxu0 0.0
  %3413 = vmatpush.msra.mxu0 %v3371
  %3414 = vmatpush.msra.mxu0 %v3367
  %3415 = vmatpush.msra.mxu0 %v3363
  %3416 = vmatpush.msra.mxu0 %v3359
  %3417 = vmatpush.msra.mxu0 %v3355
  %3418 = vmatpush.msra.mxu0 %v3351
  %3419 = vmatpush.msra.mxu0 %v3347
  %3420 = vmatpush.msra.mxu0 %v3343
  %3421 = vmatmul.f32.gmra.mxu0 %v3377
  %v3422 = vpop.f32.mrf.mxu0
  %v3423 = vadd.f32 %v3400, %v3422
  %3424 = vmatmul.f32.gmra.mxu0 %v3380
  %v3425 = vpop.f32.mrf.mxu0
  %v3426 = vadd.f32 %v3403, %v3425
  %3427 = vdwg.mxu0
  %3428 = vmatpush.msra.mxu0 %v3340
  %3429 = vmatpush.msra.mxu0 %v3336
  %3430 = vmatpush.msra.mxu0 %v3332
  %3431 = vmatpush.msra.mxu0 %v3328
  %3432 = vmatpush.msra.mxu0 %v3324
  %3433 = vmatpush.msra.mxu0 %v3320
  %3434 = vmatpush.msra.mxu0 %v3316
  %3435 = vmatpush.msra.mxu0 %v3312
  %3436 = vmatpush.msra.mxu0 %v3308
  %3437 = vmatpush.msra.mxu0 %v3304
  %3438 = vmatpush.msra.mxu0 %v3300
  %3439 = vmatpush.msra.mxu0 %v3296
  %3440 = vmatpush.msra.mxu0 %v3292
  %3441 = vmatpush.msra.mxu0 %v3288
  %3442 = vmatpush.msra.mxu0 %v3284
  %3443 = vmatpush.msra.mxu0 %v3280
  %3444 = vmatmul.f32.gmra.mxu0 %v3275
  %v3445 = vpop.f32.mrf.mxu0
  %v3446 = vadd.f32 0.0, %v3445
  %3447 = vmatmul.f32.gmra.mxu0 %v3277
  %v3448 = vpop.f32.mrf.mxu0
  %v3449 = vadd.f32 0.0, %v3448
  %3450 = vdwg.mxu0
  %3451 = vmatpush.msra.mxu0 0.0
  %3452 = vmatpush.msra.mxu0 0.0
  %3453 = vmatpush.msra.mxu0 0.0
  %3454 = vmatpush.msra.mxu0 0.0
  %3455 = vmatpush.msra.mxu0 0.0
  %3456 = vmatpush.msra.mxu0 0.0
  %3457 = vmatpush.msra.mxu0 0.0
  %3458 = vmatpush.msra.mxu0 0.0
  %3459 = vmatpush.msra.mxu0 %v3372
  %3460 = vmatpush.msra.mxu0 %v3368
  %3461 = vmatpush.msra.mxu0 %v3364
  %3462 = vmatpush.msra.mxu0 %v3360
  %3463 = vmatpush.msra.mxu0 %v3356
  %3464 = vmatpush.msra.mxu0 %v3352
  %3465 = vmatpush.msra.mxu0 %v3348
  %3466 = vmatpush.msra.mxu0 %v3344
  %3467 = vmatmul.f32.gmra.mxu0 %v3377
  %v3468 = vpop.f32.mrf.mxu0
  %v3469 = vadd.f32 %v3446, %v3468
  %3470 = vmatmul.f32.gmra.mxu0 %v3380
  %v3471 = vpop.f32.mrf.mxu0
  %v3472 = vadd.f32 %v3449, %v3471
  %3473 = vdwg.mxu0
  %3474 = vmatpush.msra.mxu0 %v3341
  %3475 = vmatpush.msra.mxu0 %v3337
  %3476 = vmatpush.msra.mxu0 %v3333
  %3477 = vmatpush.msra.mxu0 %v3329
  %3478 = vmatpush.msra.mxu0 %v3325
  %3479 = vmatpush.msra.mxu0 %v3321
  %3480 = vmatpush.msra.mxu0 %v3317
  %3481 = vmatpush.msra.mxu0 %v3313
  %3482 = vmatpush.msra.mxu0 %v3309
  %3483 = vmatpush.msra.mxu0 %v3305
  %3484 = vmatpush.msra.mxu0 %v3301
  %3485 = vmatpush.msra.mxu0 %v3297
  %3486 = vmatpush.msra.mxu0 %v3293
  %3487 = vmatpush.msra.mxu0 %v3289
  %3488 = vmatpush.msra.mxu0 %v3285
  %3489 = vmatpush.msra.mxu0 %v3281
  %3490 = vmatmul.f32.gmra.mxu0 %v3275
  %v3491 = vpop.f32.mrf.mxu0
  %v3492 = vadd.f32 0.0, %v3491
  %3493 = vmatmul.f32.gmra.mxu0 %v3277
  %v3494 = vpop.f32.mrf.mxu0
  %v3495 = vadd.f32 0.0, %v3494
  %3496 = vdwg.mxu0
  %3497 = vmatpush.msra.mxu0 0.0
  %3498 = vmatpush.msra.mxu0 0.0
  %3499 = vmatpush.msra.mxu0 0.0
  %3500 = vmatpush.msra.mxu0 0.0
  %3501 = vmatpush.msra.mxu0 0.0
  %3502 = vmatpush.msra.mxu0 0.0
  %3503 = vmatpush.msra.mxu0 0.0
  %3504 = vmatpush.msra.mxu0 0.0
  %3505 = vmatpush.msra.mxu0 %v3373
  %3506 = vmatpush.msra.mxu0 %v3369
  %3507 = vmatpush.msra.mxu0 %v3365
  %3508 = vmatpush.msra.mxu0 %v3361
  %3509 = vmatpush.msra.mxu0 %v3357
  %3510 = vmatpush.msra.mxu0 %v3353
  %3511 = vmatpush.msra.mxu0 %v3349
  %3512 = vmatpush.msra.mxu0 %v3345
  %3513 = vmatmul.f32.gmra.mxu0 %v3377
  %v3514 = vpop.f32.mrf.mxu0
  %v3515 = vadd.f32 %v3492, %v3514
  %3516 = vmatmul.f32.gmra.mxu0 %v3380
  %v3517 = vpop.f32.mrf.mxu0
  %v3518 = vadd.f32 %v3495, %v3517
  %3519 = vdwg.mxu0
  %3520 = vmatpush.msra.mxu0 %v3342
  %3521 = vmatpush.msra.mxu0 %v3338
  %3522 = vmatpush.msra.mxu0 %v3334
  %3523 = vmatpush.msra.mxu0 %v3330
  %3524 = vmatpush.msra.mxu0 %v3326
  %3525 = vmatpush.msra.mxu0 %v3322
  %3526 = vmatpush.msra.mxu0 %v3318
  %3527 = vmatpush.msra.mxu0 %v3314
  %3528 = vmatpush.msra.mxu0 %v3310
  %3529 = vmatpush.msra.mxu0 %v3306
  %3530 = vmatpush.msra.mxu0 %v3302
  %3531 = vmatpush.msra.mxu0 %v3298
  %3532 = vmatpush.msra.mxu0 %v3294
  %3533 = vmatpush.msra.mxu0 %v3290
  %3534 = vmatpush.msra.mxu0 %v3286
  %3535 = vmatpush.msra.mxu0 %v3282
  %3536 = vmatmul.f32.gmra.mxu0 %v3275
  %v3537 = vpop.f32.mrf.mxu0
  %v3538 = vadd.f32 0.0, %v3537
  %3539 = vmatmul.f32.gmra.mxu0 %v3277
  %v3540 = vpop.f32.mrf.mxu0
  %v3541 = vadd.f32 0.0, %v3540
  %3542 = vdwg.mxu0
  %3543 = vmatpush.msra.mxu0 0.0
  %3544 = vmatpush.msra.mxu0 0.0
  %3545 = vmatpush.msra.mxu0 0.0
  %3546 = vmatpush.msra.mxu0 0.0
  %3547 = vmatpush.msra.mxu0 0.0
  %3548 = vmatpush.msra.mxu0 0.0
  %3549 = vmatpush.msra.mxu0 0.0
  %3550 = vmatpush.msra.mxu0 0.0
  %3551 = vmatpush.msra.mxu0 %v3374
  %3552 = vmatpush.msra.mxu0 %v3370
  %3553 = vmatpush.msra.mxu0 %v3366
  %3554 = vmatpush.msra.mxu0 %v3362
  %3555 = vmatpush.msra.mxu0 %v3358
  %3556 = vmatpush.msra.mxu0 %v3354
  %3557 = vmatpush.msra.mxu0 %v3350
  %3558 = vmatpush.msra.mxu0 %v3346
  %3559 = vmatmul.f32.gmra.mxu0 %v3377
  %v3560 = vpop.f32.mrf.mxu0
  %v3561 = vadd.f32 %v3538, %v3560
  %3562 = vmatmul.f32.gmra.mxu0 %v3380
  %v3563 = vpop.f32.mrf.mxu0
  %v3564 = vadd.f32 %v3541, %v3563
  %3565 = vdwg.mxu0
  %3566 = vst [vmem:[%s10 + $0x40] sm:$0xff] %v3423
  %3567 = vst [vmem:[%s10 + $0x48] sm:$0xff] %v3469
  %3568 = vst [vmem:[%s10 + $0x50] sm:$0xff] %v3426
  %3569 = vst [vmem:[%s10 + $0x58] sm:$0xff] %v3472
  %3570 = vst [vmem:[%s1827 + $0x40] sm:$0xff] %v3515
  %3571 = vst [vmem:[%s1827 + $0x48] sm:$0xff] %v3561
  %3572 = vst [vmem:[%s1827 + $0x50] sm:$0xff] %v3518
  %3573 = vst [vmem:[%s1827 + $0x58] sm:$0xff] %v3564
  %v3574 = vld [vmem:[%s5] sm:$0xff]
  %v3575 = vld [vmem:[%s5 + $0x8] sm:$0xff]
  %v3576 = vld [vmem:[%s5 + $0x10] sm:$0xff]
  %v3577 = vld [vmem:[%s5 + $0x18] sm:$0xff]
  %v3578 = vld [vmem:[%s5 + $0x20] sm:$0xff]
  %v3579 = vld [vmem:[%s5 + $0x28] sm:$0xff]
  %v3580 = vld [vmem:[%s5 + $0x30] sm:$0xff]
  %v3581 = vld [vmem:[%s5 + $0x38] sm:$0xff]
  %v3582 = vld [vmem:[%s5 + $0x40] sm:$0xff]
  %v3583 = vld [vmem:[%s5 + $0x48] sm:$0xff]
  %v3584 = vld [vmem:[%s5 + $0x50] sm:$0xff]
  %v3585 = vld [vmem:[%s5 + $0x58] sm:$0xff]
  %v3586 = vld [vmem:[%s5 + $0x60] sm:$0xff]
  %v3587 = vld [vmem:[%s5 + $0x68] sm:$0xff]
  %v3588 = vld [vmem:[%s5 + $0x70] sm:$0xff]
  %v3589 = vld [vmem:[%s5 + $0x78] sm:$0xff]
  %v3590 = vld [vmem:[%s5 + $0x80] sm:$0xff]
  %v3591 = vld [vmem:[%s5 + $0x88] sm:$0xff]
  %v3592 = vld [vmem:[%s5 + $0x90] sm:$0xff]
  %v3593 = vld [vmem:[%s5 + $0x98] sm:$0xff]
  %v3594 = vld [vmem:[%s5 + $0xa0] sm:$0xff]
  %v3595 = vld [vmem:[%s5 + $0xa8] sm:$0xff]
  %v3596 = vld [vmem:[%s5 + $0xb0] sm:$0xff]
  %v3597 = vld [vmem:[%s5 + $0xb8] sm:$0xff]
  %v3598 = vld [vmem:[%s5 + $0xc0] sm:$0xff]
  %v3599 = vld [vmem:[%s5 + $0xc8] sm:$0xff]
  %v3600 = vld [vmem:[%s5 + $0xd0] sm:$0xff]
  %v3601 = vld [vmem:[%s5 + $0xd8] sm:$0xff]
  %v3602 = vld [vmem:[%s5 + $0xe0] sm:$0xff]
  %v3603 = vld [vmem:[%s5 + $0xe8] sm:$0xff]
  %v3604 = vld [vmem:[%s5 + $0xf0] sm:$0xff]
  %v3605 = vld [vmem:[%s5 + $0xf8] sm:$0xff]
  %v3606 = vld [vmem:[%s5 + $0x100] sm:$0xff]
  %v3607 = vld [vmem:[%s5 + $0x108] sm:$0xff]
  %v3608 = vld [vmem:[%s5 + $0x110] sm:$0xff]
  %v3609 = vld [vmem:[%s5 + $0x118] sm:$0xff]
  %v3610 = vld [vmem:[%s5 + $0x120] sm:$0xff]
  %v3611 = vld [vmem:[%s5 + $0x128] sm:$0xff]
  %v3612 = vld [vmem:[%s5 + $0x130] sm:$0xff]
  %v3613 = vld [vmem:[%s5 + $0x138] sm:$0xff]
  %v3614 = vld [vmem:[%s5 + $0x140] sm:$0xff]
  %v3615 = vld [vmem:[%s5 + $0x148] sm:$0xff]
  %v3616 = vld [vmem:[%s5 + $0x150] sm:$0xff]
  %v3617 = vld [vmem:[%s5 + $0x158] sm:$0xff]
  %v3618 = vld [vmem:[%s5 + $0x160] sm:$0xff]
  %v3619 = vld [vmem:[%s5 + $0x168] sm:$0xff]
  %v3620 = vld [vmem:[%s5 + $0x170] sm:$0xff]
  %v3621 = vld [vmem:[%s5 + $0x178] sm:$0xff]
  %v3622 = vld [vmem:[%s5 + $0x180] sm:$0xff]
  %v3623 = vld [vmem:[%s5 + $0x188] sm:$0xff]
  %v3624 = vld [vmem:[%s5 + $0x190] sm:$0xff]
  %v3625 = vld [vmem:[%s5 + $0x198] sm:$0xff]
  %v3626 = vld [vmem:[%s5 + $0x1a0] sm:$0xff]
  %v3627 = vld [vmem:[%s5 + $0x1a8] sm:$0xff]
  %v3628 = vld [vmem:[%s5 + $0x1b0] sm:$0xff]
  %v3629 = vld [vmem:[%s5 + $0x1b8] sm:$0xff]
  %v3630 = vld [vmem:[%s5 + $0x1c0] sm:$0xff]
  %v3631 = vld [vmem:[%s5 + $0x1c8] sm:$0xff]
  %v3632 = vld [vmem:[%s5 + $0x1d0] sm:$0xff]
  %v3633 = vld [vmem:[%s5 + $0x1d8] sm:$0xff]
  %v3634 = vld [vmem:[%s5 + $0x1e0] sm:$0xff]
  %v3635 = vld [vmem:[%s5 + $0x1e8] sm:$0xff]
  %v3636 = vld [vmem:[%s5 + $0x1f0] sm:$0xff]
  %v3637 = vld [vmem:[%s5 + $0x1f8] sm:$0xff]
  %3638 = vmatpush.msra.mxu0 %v3604
  %3639 = vmatpush.msra.mxu0 %v3602
  %3640 = vmatpush.msra.mxu0 %v3600
  %3641 = vmatpush.msra.mxu0 %v3598
  %3642 = vmatpush.msra.mxu0 %v3596
  %3643 = vmatpush.msra.mxu0 %v3594
  %3644 = vmatpush.msra.mxu0 %v3592
  %3645 = vmatpush.msra.mxu0 %v3590
  %3646 = vmatpush.msra.mxu0 %v3588
  %3647 = vmatpush.msra.mxu0 %v3586
  %3648 = vmatpush.msra.mxu0 %v3584
  %3649 = vmatpush.msra.mxu0 %v3582
  %3650 = vmatpush.msra.mxu0 %v3580
  %3651 = vmatpush.msra.mxu0 %v3578
  %3652 = vmatpush.msra.mxu0 %v3576
  %3653 = vmatpush.msra.mxu0 %v3574
  %3654 = vmatmul.f32.gmra.mxu0 %v3423
  %v3655 = vpop.f32.mrf.mxu0
  %v3656 = vadd.f32 0.0, %v3655
  %3657 = vmatmul.f32.gmra.mxu0 %v3426
  %v3658 = vpop.f32.mrf.mxu0
  %v3659 = vadd.f32 0.0, %v3658
  %3660 = vdwg.mxu0
  %3661 = vmatpush.msra.mxu0 %v3636
  %3662 = vmatpush.msra.mxu0 %v3634
  %3663 = vmatpush.msra.mxu0 %v3632
  %3664 = vmatpush.msra.mxu0 %v3630
  %3665 = vmatpush.msra.mxu0 %v3628
  %3666 = vmatpush.msra.mxu0 %v3626
  %3667 = vmatpush.msra.mxu0 %v3624
  %3668 = vmatpush.msra.mxu0 %v3622
  %3669 = vmatpush.msra.mxu0 %v3620
  %3670 = vmatpush.msra.mxu0 %v3618
  %3671 = vmatpush.msra.mxu0 %v3616
  %3672 = vmatpush.msra.mxu0 %v3614
  %3673 = vmatpush.msra.mxu0 %v3612
  %3674 = vmatpush.msra.mxu0 %v3610
  %3675 = vmatpush.msra.mxu0 %v3608
  %3676 = vmatpush.msra.mxu0 %v3606
  %3677 = vmatmul.f32.gmra.mxu0 %v3469
  %v3678 = vpop.f32.mrf.mxu0
  %v3679 = vadd.f32 %v3656, %v3678
  %3680 = vmatmul.f32.gmra.mxu0 %v3472
  %v3681 = vpop.f32.mrf.mxu0
  %v3682 = vadd.f32 %v3659, %v3681
  %3683 = vdwg.mxu0
  %3684 = vmatpush.msra.mxu0 %v3605
  %3685 = vmatpush.msra.mxu0 %v3603
  %3686 = vmatpush.msra.mxu0 %v3601
  %3687 = vmatpush.msra.mxu0 %v3599
  %3688 = vmatpush.msra.mxu0 %v3597
  %3689 = vmatpush.msra.mxu0 %v3595
  %3690 = vmatpush.msra.mxu0 %v3593
  %3691 = vmatpush.msra.mxu0 %v3591
  %3692 = vmatpush.msra.mxu0 %v3589
  %3693 = vmatpush.msra.mxu0 %v3587
  %3694 = vmatpush.msra.mxu0 %v3585
  %3695 = vmatpush.msra.mxu0 %v3583
  %3696 = vmatpush.msra.mxu0 %v3581
  %3697 = vmatpush.msra.mxu0 %v3579
  %3698 = vmatpush.msra.mxu0 %v3577
  %3699 = vmatpush.msra.mxu0 %v3575
  %3700 = vmatmul.f32.gmra.mxu0 %v3423
  %v3701 = vpop.f32.mrf.mxu0
  %v3702 = vadd.f32 0.0, %v3701
  %3703 = vmatmul.f32.gmra.mxu0 %v3426
  %v3704 = vpop.f32.mrf.mxu0
  %v3705 = vadd.f32 0.0, %v3704
  %3706 = vdwg.mxu0
  %3707 = vmatpush.msra.mxu0 %v3637
  %3708 = vmatpush.msra.mxu0 %v3635
  %3709 = vmatpush.msra.mxu0 %v3633
  %3710 = vmatpush.msra.mxu0 %v3631
  %3711 = vmatpush.msra.mxu0 %v3629
  %3712 = vmatpush.msra.mxu0 %v3627
  %3713 = vmatpush.msra.mxu0 %v3625
  %3714 = vmatpush.msra.mxu0 %v3623
  %3715 = vmatpush.msra.mxu0 %v3621
  %3716 = vmatpush.msra.mxu0 %v3619
  %3717 = vmatpush.msra.mxu0 %v3617
  %3718 = vmatpush.msra.mxu0 %v3615
  %3719 = vmatpush.msra.mxu0 %v3613
  %3720 = vmatpush.msra.mxu0 %v3611
  %3721 = vmatpush.msra.mxu0 %v3609
  %3722 = vmatpush.msra.mxu0 %v3607
  %3723 = vmatmul.f32.gmra.mxu0 %v3469
  %v3724 = vpop.f32.mrf.mxu0
  %v3725 = vadd.f32 %v3702, %v3724
  %3726 = vmatmul.f32.gmra.mxu0 %v3472
  %v3727 = vpop.f32.mrf.mxu0
  %v3728 = vadd.f32 %v3705, %v3727
  %3729 = vdwg.mxu0
  %3730 = vmatpush.msra.mxu0 %v3604
  %3731 = vmatpush.msra.mxu0 %v3602
  %3732 = vmatpush.msra.mxu0 %v3600
  %3733 = vmatpush.msra.mxu0 %v3598
  %3734 = vmatpush.msra.mxu0 %v3596
  %3735 = vmatpush.msra.mxu0 %v3594
  %3736 = vmatpush.msra.mxu0 %v3592
  %3737 = vmatpush.msra.mxu0 %v3590
  %3738 = vmatpush.msra.mxu0 %v3588
  %3739 = vmatpush.msra.mxu0 %v3586
  %3740 = vmatpush.msra.mxu0 %v3584
  %3741 = vmatpush.msra.mxu0 %v3582
  %3742 = vmatpush.msra.mxu0 %v3580
  %3743 = vmatpush.msra.mxu0 %v3578
  %3744 = vmatpush.msra.mxu0 %v3576
  %3745 = vmatpush.msra.mxu0 %v3574
  %3746 = vmatmul.f32.gmra.mxu0 %v3515
  %v3747 = vpop.f32.mrf.mxu0
  %v3748 = vadd.f32 0.0, %v3747
  %3749 = vmatmul.f32.gmra.mxu0 %v3518
  %v3750 = vpop.f32.mrf.mxu0
  %v3751 = vadd.f32 0.0, %v3750
  %3752 = vdwg.mxu0
  %3753 = vmatpush.msra.mxu0 %v3636
  %3754 = vmatpush.msra.mxu0 %v3634
  %3755 = vmatpush.msra.mxu0 %v3632
  %3756 = vmatpush.msra.mxu0 %v3630
  %3757 = vmatpush.msra.mxu0 %v3628
  %3758 = vmatpush.msra.mxu0 %v3626
  %3759 = vmatpush.msra.mxu0 %v3624
  %3760 = vmatpush.msra.mxu0 %v3622
  %3761 = vmatpush.msra.mxu0 %v3620
  %3762 = vmatpush.msra.mxu0 %v3618
  %3763 = vmatpush.msra.mxu0 %v3616
  %3764 = vmatpush.msra.mxu0 %v3614
  %3765 = vmatpush.msra.mxu0 %v3612
  %3766 = vmatpush.msra.mxu0 %v3610
  %3767 = vmatpush.msra.mxu0 %v3608
  %3768 = vmatpush.msra.mxu0 %v3606
  %3769 = vmatmul.f32.gmra.mxu0 %v3561
  %v3770 = vpop.f32.mrf.mxu0
  %v3771 = vadd.f32 %v3748, %v3770
  %3772 = vmatmul.f32.gmra.mxu0 %v3564
  %v3773 = vpop.f32.mrf.mxu0
  %v3774 = vadd.f32 %v3751, %v3773
  %3775 = vdwg.mxu0
  %3776 = vmatpush.msra.mxu0 %v3605
  %3777 = vmatpush.msra.mxu0 %v3603
  %3778 = vmatpush.msra.mxu0 %v3601
  %3779 = vmatpush.msra.mxu0 %v3599
  %3780 = vmatpush.msra.mxu0 %v3597
  %3781 = vmatpush.msra.mxu0 %v3595
  %3782 = vmatpush.msra.mxu0 %v3593
  %3783 = vmatpush.msra.mxu0 %v3591
  %3784 = vmatpush.msra.mxu0 %v3589
  %3785 = vmatpush.msra.mxu0 %v3587
  %3786 = vmatpush.msra.mxu0 %v3585
  %3787 = vmatpush.msra.mxu0 %v3583
  %3788 = vmatpush.msra.mxu0 %v3581
  %3789 = vmatpush.msra.mxu0 %v3579
  %3790 = vmatpush.msra.mxu0 %v3577
  %3791 = vmatpush.msra.mxu0 %v3575
  %3792 = vmatmul.f32.gmra.mxu0 %v3515
  %v3793 = vpop.f32.mrf.mxu0
  %v3794 = vadd.f32 0.0, %v3793
  %3795 = vmatmul.f32.gmra.mxu0 %v3518
  %v3796 = vpop.f32.mrf.mxu0
  %v3797 = vadd.f32 0.0, %v3796
  %3798 = vdwg.mxu0
  %3799 = vmatpush.msra.mxu0 %v3637
  %3800 = vmatpush.msra.mxu0 %v3635
  %3801 = vmatpush.msra.mxu0 %v3633
  %3802 = vmatpush.msra.mxu0 %v3631
  %3803 = vmatpush.msra.mxu0 %v3629
  %3804 = vmatpush.msra.mxu0 %v3627
  %3805 = vmatpush.msra.mxu0 %v3625
  %3806 = vmatpush.msra.mxu0 %v3623
  %3807 = vmatpush.msra.mxu0 %v3621
  %3808 = vmatpush.msra.mxu0 %v3619
  %3809 = vmatpush.msra.mxu0 %v3617
  %3810 = vmatpush.msra.mxu0 %v3615
  %3811 = vmatpush.msra.mxu0 %v3613
  %3812 = vmatpush.msra.mxu0 %v3611
  %3813 = vmatpush.msra.mxu0 %v3609
  %3814 = vmatpush.msra.mxu0 %v3607
  %3815 = vmatmul.f32.gmra.mxu0 %v3561
  %v3816 = vpop.f32.mrf.mxu0
  %v3817 = vadd.f32 %v3794, %v3816
  %3818 = vmatmul.f32.gmra.mxu0 %v3564
  %v3819 = vpop.f32.mrf.mxu0
  %v3820 = vadd.f32 %v3797, %v3819
  %3821 = vdwg.mxu0
  %3822 = vrot.lane.b32.xlu0 %v3423, 1
  %v3823 = vpop.permute.xlu0 %3822
  %3824 = vrot.lane.b32.xlu0 %v3426, 1
  %v3825 = vpop.permute.xlu0 %3824
  %3826 = vrot.lane.b32.xlu0 %v3469, 1
  %v3827 = vpop.permute.xlu0 %3826
  %3828 = vrot.lane.b32.xlu0 %v3472, 1
  %v3829 = vpop.permute.xlu0 %3828
  %3830 = vrot.lane.b32.xlu0 %v3515, 1
  %v3831 = vpop.permute.xlu0 %3830
  %3832 = vrot.lane.b32.xlu0 %v3518, 1
  %v3833 = vpop.permute.xlu0 %3832
  %3834 = vrot.lane.b32.xlu0 %v3561, 1
  %v3835 = vpop.permute.xlu0 %3834
  %3836 = vrot.lane.b32.xlu0 %v3564, 1
  %v3837 = vpop.permute.xlu0 %3836
  %v3838 = vsel %vm56, %v3831, %v3835
  %v3839 = vsel %vm56, %v3833, %v3837
  %v3840 = vsel %vm56, %v3827, %v3831
  %v3841 = vsel %vm56, %v3829, %v3833
  %v3842 = vsel %vm56, %v3823, %v3827
  %v3843 = vsel %vm56, %v3825, %v3829
  %v3844 = vsel %vm56, %v3835, %v3823
  %v3845 = vsel %vm56, %v3837, %v3825
  %v3846 = vadd.f32 %v3844, %v1034
  %v3847 = vadd.f32 %v3842, %v1035
  %v3848 = vadd.f32 %v3840, %v1036
  %v3849 = vadd.f32 %v3838, %v1037
  %v3850 = vadd.f32 %v3845, %v1034
  %v3851 = vadd.f32 %v3843, %v1035
  %v3852 = vadd.f32 %v3841, %v1036
  %v3853 = vadd.f32 %v3839, %v1037
  %v3854 = vmax.f32 %v3423, %v3846
  %v3855 = vmax.f32 %v3469, %v3847
  %v3856 = vmax.f32 %v3515, %v3848
  %v3857 = vmax.f32 %v3561, %v3849
  %v3858 = vmax.f32 %v3426, %v3850
  %v3859 = vmax.f32 %v3472, %v3851
  %v3860 = vmax.f32 %v3518, %v3852
  %v3861 = vmax.f32 %v3564, %v3853
  %3862 = vrot.lane.b32.xlu0 %v3423, 127
  %v3863 = vpop.permute.xlu0 %3862
  %3864 = vrot.lane.b32.xlu0 %v3426, 127
  %v3865 = vpop.permute.xlu0 %3864
  %3866 = vrot.lane.b32.xlu0 %v3469, 127
  %v3867 = vpop.permute.xlu0 %3866
  %3868 = vrot.lane.b32.xlu0 %v3472, 127
  %v3869 = vpop.permute.xlu0 %3868
  %3870 = vrot.lane.b32.xlu0 %v3515, 127
  %v3871 = vpop.permute.xlu0 %3870
  %3872 = vrot.lane.b32.xlu0 %v3518, 127
  %v3873 = vpop.permute.xlu0 %3872
  %3874 = vrot.lane.b32.xlu0 %v3561, 127
  %v3875 = vpop.permute.xlu0 %3874
  %3876 = vrot.lane.b32.xlu0 %v3564, 127
  %v3877 = vpop.permute.xlu0 %3876
  %v3878 = vsel %vm94, %v3871, %v3875
  %v3879 = vsel %vm94, %v3873, %v3877
  %v3880 = vsel %vm94, %v3867, %v3871
  %v3881 = vsel %vm94, %v3869, %v3873
  %v3882 = vsel %vm94, %v3863, %v3867
  %v3883 = vsel %vm94, %v3865, %v3869
  %v3884 = vsel %vm94, %v3875, %v3863
  %v3885 = vsel %vm94, %v3877, %v3865
  %v3886 = vadd.f32 %v3882, %v1118
  %v3887 = vadd.f32 %v3880, %v1119
  %v3888 = vadd.f32 %v3878, %v1120
  %v3889 = vadd.f32 %v3884, %v1121
  %v3890 = vadd.f32 %v3883, %v1118
  %v3891 = vadd.f32 %v3881, %v1119
  %v3892 = vadd.f32 %v3879, %v1120
  %v3893 = vadd.f32 %v3885, %v1121
  %v3894 = vmax.f32 %v3854, %v3886
  %v3895 = vmax.f32 %v3855, %v3887
  %v3896 = vmax.f32 %v3856, %v3888
  %v3897 = vmax.f32 %v3857, %v3889
  %v3898 = vmax.f32 %v3858, %v3890
  %v3899 = vmax.f32 %v3859, %v3891
  %v3900 = vmax.f32 %v3860, %v3892
  %v3901 = vmax.f32 %v3861, %v3893
  %3902 = vrot.lane.b32.xlu0 %v3894, 16
  %v3903 = vpop.permute.xlu0 %3902
  %3904 = vrot.lane.b32.xlu0 %v3898, 16
  %v3905 = vpop.permute.xlu0 %3904
  %3906 = vrot.lane.b32.xlu0 %v3895, 16
  %v3907 = vpop.permute.xlu0 %3906
  %3908 = vrot.lane.b32.xlu0 %v3899, 16
  %v3909 = vpop.permute.xlu0 %3908
  %3910 = vrot.lane.b32.xlu0 %v3896, 16
  %v3911 = vpop.permute.xlu0 %3910
  %3912 = vrot.lane.b32.xlu0 %v3900, 16
  %v3913 = vpop.permute.xlu0 %3912
  %3914 = vrot.lane.b32.xlu0 %v3897, 16
  %v3915 = vpop.permute.xlu0 %3914
  %3916 = vrot.lane.b32.xlu0 %v3901, 16
  %v3917 = vpop.permute.xlu0 %3916
  %v3918 = vsel %vm124, %v3911, %v3915
  %v3919 = vsel %vm124, %v3913, %v3917
  %v3920 = vsel %vm124, %v3907, %v3911
  %v3921 = vsel %vm124, %v3909, %v3913
  %v3922 = vsel %vm124, %v3903, %v3907
  %v3923 = vsel %vm124, %v3905, %v3909
  %v3924 = vsel %vm124, %v3915, %v3903
  %v3925 = vsel %vm124, %v3917, %v3905
  %v3926 = vadd.f32 %v3924, %v1202
  %v3927 = vadd.f32 %v3922, %v1203
  %v3928 = vadd.f32 %v3920, %v1204
  %v3929 = vadd.f32 %v3918, %v1205
  %v3930 = vadd.f32 %v3925, %v1202
  %v3931 = vadd.f32 %v3923, %v1203
  %v3932 = vadd.f32 %v3921, %v1204
  %v3933 = vadd.f32 %v3919, %v1205
  %v3934 = vmax.f32 %v3894, %v3926
  %v3935 = vmax.f32 %v3895, %v3927
  %v3936 = vmax.f32 %v3896, %v3928
  %v3937 = vmax.f32 %v3897, %v3929
  %v3938 = vmax.f32 %v3898, %v3930
  %v3939 = vmax.f32 %v3899, %v3931
  %v3940 = vmax.f32 %v3900, %v3932
  %v3941 = vmax.f32 %v3901, %v3933
  %3942 = vrot.lane.b32.xlu0 %v3894, 112
  %v3943 = vpop.permute.xlu0 %3942
  %3944 = vrot.lane.b32.xlu0 %v3898, 112
  %v3945 = vpop.permute.xlu0 %3944
  %3946 = vrot.lane.b32.xlu0 %v3895, 112
  %v3947 = vpop.permute.xlu0 %3946
  %3948 = vrot.lane.b32.xlu0 %v3899, 112
  %v3949 = vpop.permute.xlu0 %3948
  %3950 = vrot.lane.b32.xlu0 %v3896, 112
  %v3951 = vpop.permute.xlu0 %3950
  %3952 = vrot.lane.b32.xlu0 %v3900, 112
  %v3953 = vpop.permute.xlu0 %3952
  %3954 = vrot.lane.b32.xlu0 %v3897, 112
  %v3955 = vpop.permute.xlu0 %3954
  %3956 = vrot.lane.b32.xlu0 %v3901, 112
  %v3957 = vpop.permute.xlu0 %3956
  %v3958 = vsel %vm194, %v3951, %v3955
  %v3959 = vsel %vm194, %v3953, %v3957
  %v3960 = vsel %vm194, %v3947, %v3951
  %v3961 = vsel %vm194, %v3949, %v3953
  %v3962 = vsel %vm194, %v3943, %v3947
  %v3963 = vsel %vm194, %v3945, %v3949
  %v3964 = vsel %vm194, %v3955, %v3943
  %v3965 = vsel %vm194, %v3957, %v3945
  %v3966 = vadd.f32 %v3962, %v1286
  %v3967 = vadd.f32 %v3960, %v1287
  %v3968 = vadd.f32 %v3958, %v1288
  %v3969 = vadd.f32 %v3964, %v1289
  %v3970 = vadd.f32 %v3963, %v1286
  %v3971 = vadd.f32 %v3961, %v1287
  %v3972 = vadd.f32 %v3959, %v1288
  %v3973 = vadd.f32 %v3965, %v1289
  %v3974 = vmax.f32 %v3934, %v3966
  %v3975 = vmax.f32 %v3935, %v3967
  %v3976 = vmax.f32 %v3936, %v3968
  %v3977 = vmax.f32 %v3937, %v3969
  %v3978 = vmax.f32 %v3938, %v3970
  %v3979 = vmax.f32 %v3939, %v3971
  %v3980 = vmax.f32 %v3940, %v3972
  %v3981 = vmax.f32 %v3941, %v3973
  %v3982 = vadd.f32 %v3679, %v3725
  %v3983 = vadd.f32 %v3982, %v3771
  %v3984 = vadd.f32 %v3983, %v3817
  %3985 = vadd.xlane.f32.xlu0 %v3984
  %v3986 = vpop.xlane.xlu0 %3985
  %v3987 = vadd.f32 %v3682, %v3728
  %v3988 = vadd.f32 %v3987, %v3774
  %v3989 = vadd.f32 %v3988, %v3820
  %3990 = vadd.xlane.f32.xlu0 %v3989
  %v3991 = vpop.xlane.xlu0 %3990
  %v3992 = vadd.f32 %v3974, %v3975
  %v3993 = vadd.f32 %v3992, %v3976
  %v3994 = vadd.f32 %v3993, %v3977
  %3995 = vadd.xlane.f32.xlu0 %v3994
  %v3996 = vpop.xlane.xlu0 %3995
  %v3997 = vadd.f32 %v3978, %v3979
  %v3998 = vadd.f32 %v3997, %v3980
  %v3999 = vadd.f32 %v3998, %v3981
  %4000 = vadd.xlane.f32.xlu0 %v3999
  %v4001 = vpop.xlane.xlu0 %4000
  %v4002 = vmul.f32 %v3679, %v3679
  %v4003 = vmul.f32 %v3725, %v3725
  %v4004 = vmul.f32 %v3771, %v3771
  %v4005 = vmul.f32 %v3817, %v3817
  %v4006 = vmul.f32 %v3682, %v3682
  %v4007 = vmul.f32 %v3728, %v3728
  %v4008 = vmul.f32 %v3774, %v3774
  %v4009 = vmul.f32 %v3820, %v3820
  %v4010 = vmul.f32 %v3974, %v3974
  %v4011 = vmul.f32 %v3975, %v3975
  %v4012 = vmul.f32 %v3976, %v3976
  %v4013 = vmul.f32 %v3977, %v3977
  %v4014 = vmul.f32 %v3978, %v3978
  %v4015 = vmul.f32 %v3979, %v3979
  %v4016 = vmul.f32 %v3980, %v3980
  %v4017 = vmul.f32 %v3981, %v3981
  %v4018 = vadd.f32 %v4002, %v4003
  %v4019 = vadd.f32 %v4018, %v4004
  %v4020 = vadd.f32 %v4019, %v4005
  %4021 = vadd.xlane.f32.xlu0 %v4020
  %v4022 = vpop.xlane.xlu0 %4021
  %v4023 = vadd.f32 %v4006, %v4007
  %v4024 = vadd.f32 %v4023, %v4008
  %v4025 = vadd.f32 %v4024, %v4009
  %4026 = vadd.xlane.f32.xlu0 %v4025
  %v4027 = vpop.xlane.xlu0 %4026
  %v4028 = vadd.f32 %v4010, %v4011
  %v4029 = vadd.f32 %v4028, %v4012
  %v4030 = vadd.f32 %v4029, %v4013
  %4031 = vadd.xlane.f32.xlu0 %v4030
  %v4032 = vpop.xlane.xlu0 %4031
  %v4033 = vadd.f32 %v4014, %v4015
  %v4034 = vadd.f32 %v4033, %v4016
  %v4035 = vadd.f32 %v4034, %v4017
  %4036 = vadd.xlane.f32.xlu0 %v4035
  %v4037 = vpop.xlane.xlu0 %4036
  %v4038 = vmul.f32 %v3986, 0.001953125
  %v4039 = vmul.f32 %v3991, 0.001953125
  %v4040 = vmul.f32 %v3996, 0.001953125
  %v4041 = vmul.f32 %v4001, 0.001953125
  %v4042 = vmul.f32 %v4022, 0.001953125
  %v4043 = vmul.f32 %v4027, 0.001953125
  %v4044 = vmul.f32 %v4032, 0.001953125
  %v4045 = vmul.f32 %v4037, 0.001953125
  %v4046 = vmul.f32 %v4038, %v4038
  %v4047 = vmul.f32 %v4039, %v4039
  %v4048 = vmul.f32 %v4040, %v4040
  %v4049 = vmul.f32 %v4041, %v4041
  %v4050 = vsub.f32 %v4042, %v4046
  %v4051 = vsub.f32 %v4043, %v4047
  %v4052 = vsub.f32 %v4044, %v4048
  %v4053 = vsub.f32 %v4045, %v4049
  %v4054 = vmax.f32 %v4050, 0.0
  %v4055 = vmax.f32 %v4051, 0.0
  %v4056 = vmax.f32 %v4052, 0.0
  %v4057 = vmax.f32 %v4053, 0.0
  %v4058 = vsub.f32 %v3679, %v4038
  %v4059 = vsub.f32 %v3725, %v4038
  %v4060 = vsub.f32 %v3771, %v4038
  %v4061 = vsub.f32 %v3817, %v4038
  %v4062 = vsub.f32 %v3682, %v4039
  %v4063 = vsub.f32 %v3728, %v4039
  %v4064 = vsub.f32 %v3774, %v4039
  %v4065 = vsub.f32 %v3820, %v4039
  %v4066 = vsub.f32 %v3974, %v4040
  %v4067 = vsub.f32 %v3975, %v4040
  %v4068 = vsub.f32 %v3976, %v4040
  %v4069 = vsub.f32 %v3977, %v4040
  %v4070 = vsub.f32 %v3978, %v4041
  %v4071 = vsub.f32 %v3979, %v4041
  %v4072 = vsub.f32 %v3980, %v4041
  %v4073 = vsub.f32 %v3981, %v4041
  %v4074 = vadd.f32 %v4054, 1e-05
  %v4075 = vadd.f32 %v4055, 1e-05
  %v4076 = vadd.f32 %v4056, 1e-05
  %v4077 = vadd.f32 %v4057, 1e-05
  %v4078 = vrsqrt.pop %v4074
  %v4079 = vmul.f32 %v4078, %v4074
  %v4080 = vmul.f32 %v4079, %v4078
  %v4081 = vmul.f32 0.5, %v4080
  %v4082 = vsub.f32 1.5, %v4081
  %v4083 = vmul.f32 %v4078, %v4082
  %vm4084 = vweird.f32 %v4074
  %vm4085 = vweird.f32 %v4078
  %vm4086 = vmor %vm4084, %vm4085
  %v4087 = vsel %vm4086, %v4078, %v4083
  %v4088 = vrsqrt.pop %v4075
  %v4089 = vmul.f32 %v4088, %v4075
  %v4090 = vmul.f32 %v4089, %v4088
  %v4091 = vmul.f32 0.5, %v4090
  %v4092 = vsub.f32 1.5, %v4091
  %v4093 = vmul.f32 %v4088, %v4092
  %vm4094 = vweird.f32 %v4075
  %vm4095 = vweird.f32 %v4088
  %vm4096 = vmor %vm4094, %vm4095
  %v4097 = vsel %vm4096, %v4088, %v4093
  %v4098 = vrsqrt.pop %v4076
  %v4099 = vmul.f32 %v4098, %v4076
  %v4100 = vmul.f32 %v4099, %v4098
  %v4101 = vmul.f32 0.5, %v4100
  %v4102 = vsub.f32 1.5, %v4101
  %v4103 = vmul.f32 %v4098, %v4102
  %vm4104 = vweird.f32 %v4076
  %vm4105 = vweird.f32 %v4098
  %vm4106 = vmor %vm4104, %vm4105
  %v4107 = vsel %vm4106, %v4098, %v4103
  %v4108 = vrsqrt.pop %v4077
  %v4109 = vmul.f32 %v4108, %v4077
  %v4110 = vmul.f32 %v4109, %v4108
  %v4111 = vmul.f32 0.5, %v4110
  %v4112 = vsub.f32 1.5, %v4111
  %v4113 = vmul.f32 %v4108, %v4112
  %vm4114 = vweird.f32 %v4077
  %vm4115 = vweird.f32 %v4108
  %vm4116 = vmor %vm4114, %vm4115
  %v4117 = vsel %vm4116, %v4108, %v4113
  %v4118 = vmul.f32 %v4058, %v4087
  %v4119 = vmul.f32 %v4059, %v4087
  %v4120 = vmul.f32 %v4060, %v4087
  %v4121 = vmul.f32 %v4061, %v4087
  %v4122 = vmul.f32 %v4062, %v4097
  %v4123 = vmul.f32 %v4063, %v4097
  %v4124 = vmul.f32 %v4064, %v4097
  %v4125 = vmul.f32 %v4065, %v4097
  %v4126 = vmul.f32 %v4066, %v4107
  %v4127 = vmul.f32 %v4067, %v4107
  %v4128 = vmul.f32 %v4068, %v4107
  %v4129 = vmul.f32 %v4069, %v4107
  %v4130 = vmul.f32 %v4070, %v4117
  %v4131 = vmul.f32 %v4071, %v4117
  %v4132 = vmul.f32 %v4072, %v4117
  %v4133 = vmul.f32 %v4073, %v4117
  %4134 = vst [vmem:[#allocation2 + $0x300] sm:$0xff] %v3423
  %4135 = vst [vmem:[#allocation2 + $0x308] sm:$0xff] %v3469
  %4136 = vst [vmem:[#allocation2 + $0x310] sm:$0xff] %v3515
  %4137 = vst [vmem:[#allocation2 + $0x318] sm:$0xff] %v3561
  %4138 = vst [vmem:[#allocation2 + $0x320] sm:$0xff] %v3426
  %4139 = vst [vmem:[#allocation2 + $0x328] sm:$0xff] %v3472
  %4140 = vst [vmem:[#allocation2 + $0x330] sm:$0xff] %v3518
  %4141 = vst [vmem:[#allocation2 + $0x338] sm:$0xff] %v3564
  %4142 = vst [vmem:[#allocation2 + $0x340] sm:$0xff] %v4118
  %4143 = vst [vmem:[#allocation2 + $0x348] sm:$0xff] %v4119
  %4144 = vst [vmem:[#allocation2 + $0x350] sm:$0xff] %v4120
  %4145 = vst [vmem:[#allocation2 + $0x358] sm:$0xff] %v4121
  %4146 = vst [vmem:[#allocation2 + $0x360] sm:$0xff] %v4122
  %4147 = vst [vmem:[#allocation2 + $0x368] sm:$0xff] %v4123
  %4148 = vst [vmem:[#allocation2 + $0x370] sm:$0xff] %v4124
  %4149 = vst [vmem:[#allocation2 + $0x378] sm:$0xff] %v4125
  %4150 = vst [vmem:[#allocation2 + $0x380] sm:$0xff] %v4126
  %4151 = vst [vmem:[#allocation2 + $0x388] sm:$0xff] %v4127
  %4152 = vst [vmem:[#allocation2 + $0x390] sm:$0xff] %v4128
  %4153 = vst [vmem:[#allocation2 + $0x398] sm:$0xff] %v4129
  %4154 = vst [vmem:[#allocation2 + $0x3a0] sm:$0xff] %v4130
  %4155 = vst [vmem:[#allocation2 + $0x3a8] sm:$0xff] %v4131
  %4156 = vst [vmem:[#allocation2 + $0x3b0] sm:$0xff] %v4132
  %4157 = vst [vmem:[#allocation2 + $0x3b8] sm:$0xff] %v4133
  %v4158 = vld [vmem:[%s9] sm:$0xff]
  %v4159 = vld [vmem:[%s9 + $0x8] sm:$0xff]
  %v4160 = vld [vmem:[%s9 + $0x10] sm:$0xff]
  %v4161 = vld [vmem:[%s9 + $0x18] sm:$0xff]
  %v4162 = vld [vmem:[#allocation2] sm:$0xff]
  %v4163 = vld [vmem:[#allocation2 + $0x8] sm:$0xff]
  %v4164 = vld [vmem:[#allocation2 + $0x10] sm:$0xff]
  %v4165 = vld [vmem:[#allocation2 + $0x18] sm:$0xff]
  %v4166 = vld [vmem:[#allocation2 + $0x20] sm:$0xff]
  %v4167 = vld [vmem:[#allocation2 + $0x28] sm:$0xff]
  %v4168 = vld [vmem:[#allocation2 + $0x30] sm:$0xff]
  %v4169 = vld [vmem:[#allocation2 + $0x38] sm:$0xff]
  %v4170 = vld [vmem:[#allocation2 + $0x40] sm:$0xff]
  %v4171 = vld [vmem:[#allocation2 + $0x48] sm:$0xff]
  %v4172 = vld [vmem:[#allocation2 + $0x50] sm:$0xff]
  %v4173 = vld [vmem:[#allocation2 + $0x58] sm:$0xff]
  %v4174 = vld [vmem:[#allocation2 + $0x60] sm:$0xff]
  %v4175 = vld [vmem:[#allocation2 + $0x68] sm:$0xff]
  %v4176 = vld [vmem:[#allocation2 + $0x70] sm:$0xff]
  %v4177 = vld [vmem:[#allocation2 + $0x78] sm:$0xff]
  %v4178 = vld [vmem:[#allocation2 + $0x80] sm:$0xff]
  %v4179 = vld [vmem:[#allocation2 + $0x88] sm:$0xff]
  %v4180 = vld [vmem:[#allocation2 + $0x90] sm:$0xff]
  %v4181 = vld [vmem:[#allocation2 + $0x98] sm:$0xff]
  %v4182 = vld [vmem:[#allocation2 + $0xa0] sm:$0xff]
  %v4183 = vld [vmem:[#allocation2 + $0xa8] sm:$0xff]
  %v4184 = vld [vmem:[#allocation2 + $0xb0] sm:$0xff]
  %v4185 = vld [vmem:[#allocation2 + $0xb8] sm:$0xff]
  %v4186 = vld [vmem:[#allocation2 + $0xc0] sm:$0xff]
  %v4187 = vld [vmem:[#allocation2 + $0xc8] sm:$0xff]
  %v4188 = vld [vmem:[#allocation2 + $0xd0] sm:$0xff]
  %v4189 = vld [vmem:[#allocation2 + $0xd8] sm:$0xff]
  %v4190 = vld [vmem:[#allocation2 + $0xe0] sm:$0xff]
  %v4191 = vld [vmem:[#allocation2 + $0xe8] sm:$0xff]
  %v4192 = vld [vmem:[#allocation2 + $0xf0] sm:$0xff]
  %v4193 = vld [vmem:[#allocation2 + $0xf8] sm:$0xff]
  %v4194 = vld [vmem:[#allocation2 + $0x100] sm:$0xff]
  %v4195 = vld [vmem:[#allocation2 + $0x108] sm:$0xff]
  %v4196 = vld [vmem:[#allocation2 + $0x110] sm:$0xff]
  %v4197 = vld [vmem:[#allocation2 + $0x118] sm:$0xff]
  %v4198 = vld [vmem:[#allocation2 + $0x120] sm:$0xff]
  %v4199 = vld [vmem:[#allocation2 + $0x128] sm:$0xff]
  %v4200 = vld [vmem:[#allocation2 + $0x130] sm:$0xff]
  %v4201 = vld [vmem:[#allocation2 + $0x138] sm:$0xff]
  %v4202 = vld [vmem:[#allocation2 + $0x140] sm:$0xff]
  %v4203 = vld [vmem:[#allocation2 + $0x148] sm:$0xff]
  %v4204 = vld [vmem:[#allocation2 + $0x150] sm:$0xff]
  %v4205 = vld [vmem:[#allocation2 + $0x158] sm:$0xff]
  %v4206 = vld [vmem:[#allocation2 + $0x160] sm:$0xff]
  %v4207 = vld [vmem:[#allocation2 + $0x168] sm:$0xff]
  %v4208 = vld [vmem:[#allocation2 + $0x170] sm:$0xff]
  %v4209 = vld [vmem:[#allocation2 + $0x178] sm:$0xff]
  %v4210 = vld [vmem:[#allocation2 + $0x180] sm:$0xff]
  %v4211 = vld [vmem:[#allocation2 + $0x188] sm:$0xff]
  %v4212 = vld [vmem:[#allocation2 + $0x190] sm:$0xff]
  %v4213 = vld [vmem:[#allocation2 + $0x198] sm:$0xff]
  %v4214 = vld [vmem:[#allocation2 + $0x1a0] sm:$0xff]
  %v4215 = vld [vmem:[#allocation2 + $0x1a8] sm:$0xff]
  %v4216 = vld [vmem:[#allocation2 + $0x1b0] sm:$0xff]
  %v4217 = vld [vmem:[#allocation2 + $0x1b8] sm:$0xff]
  %v4218 = vld [vmem:[#allocation2 + $0x1c0] sm:$0xff]
  %v4219 = vld [vmem:[#allocation2 + $0x1c8] sm:$0xff]
  %v4220 = vld [vmem:[#allocation2 + $0x1d0] sm:$0xff]
  %v4221 = vld [vmem:[#allocation2 + $0x1d8] sm:$0xff]
  %v4222 = vld [vmem:[#allocation2 + $0x1e0] sm:$0xff]
  %v4223 = vld [vmem:[#allocation2 + $0x1e8] sm:$0xff]
  %v4224 = vld [vmem:[#allocation2 + $0x1f0] sm:$0xff]
  %v4225 = vld [vmem:[#allocation2 + $0x1f8] sm:$0xff]
  %v4226 = vld [vmem:[#allocation2 + $0x200] sm:$0xff]
  %v4227 = vld [vmem:[#allocation2 + $0x208] sm:$0xff]
  %v4228 = vld [vmem:[#allocation2 + $0x210] sm:$0xff]
  %v4229 = vld [vmem:[#allocation2 + $0x218] sm:$0xff]
  %v4230 = vld [vmem:[#allocation2 + $0x220] sm:$0xff]
  %v4231 = vld [vmem:[#allocation2 + $0x228] sm:$0xff]
  %v4232 = vld [vmem:[#allocation2 + $0x230] sm:$0xff]
  %v4233 = vld [vmem:[#allocation2 + $0x238] sm:$0xff]
  %v4234 = vld [vmem:[#allocation2 + $0x240] sm:$0xff]
  %v4235 = vld [vmem:[#allocation2 + $0x248] sm:$0xff]
  %v4236 = vld [vmem:[#allocation2 + $0x250] sm:$0xff]
  %v4237 = vld [vmem:[#allocation2 + $0x258] sm:$0xff]
  %v4238 = vld [vmem:[#allocation2 + $0x260] sm:$0xff]
  %v4239 = vld [vmem:[#allocation2 + $0x268] sm:$0xff]
  %v4240 = vld [vmem:[#allocation2 + $0x270] sm:$0xff]
  %v4241 = vld [vmem:[#allocation2 + $0x278] sm:$0xff]
  %v4242 = vld [vmem:[#allocation2 + $0x280] sm:$0xff]
  %v4243 = vld [vmem:[#allocation2 + $0x288] sm:$0xff]
  %v4244 = vld [vmem:[#allocation2 + $0x290] sm:$0xff]
  %v4245 = vld [vmem:[#allocation2 + $0x298] sm:$0xff]
  %v4246 = vld [vmem:[#allocation2 + $0x2a0] sm:$0xff]
  %v4247 = vld [vmem:[#allocation2 + $0x2a8] sm:$0xff]
  %v4248 = vld [vmem:[#allocation2 + $0x2b0] sm:$0xff]
  %v4249 = vld [vmem:[#allocation2 + $0x2b8] sm:$0xff]
  %v4250 = vld [vmem:[#allocation2 + $0x2c0] sm:$0xff]
  %v4251 = vld [vmem:[#allocation2 + $0x2c8] sm:$0xff]
  %v4252 = vld [vmem:[#allocation2 + $0x2d0] sm:$0xff]
  %v4253 = vld [vmem:[#allocation2 + $0x2d8] sm:$0xff]
  %v4254 = vld [vmem:[#allocation2 + $0x2e0] sm:$0xff]
  %v4255 = vld [vmem:[#allocation2 + $0x2e8] sm:$0xff]
  %v4256 = vld [vmem:[#allocation2 + $0x2f0] sm:$0xff]
  %v4257 = vld [vmem:[#allocation2 + $0x2f8] sm:$0xff]
  %v4258 = vld [vmem:[#allocation2 + $0x300] sm:$0xff]
  %v4259 = vld [vmem:[#allocation2 + $0x308] sm:$0xff]
  %v4260 = vld [vmem:[#allocation2 + $0x310] sm:$0xff]
  %v4261 = vld [vmem:[#allocation2 + $0x318] sm:$0xff]
  %v4262 = vld [vmem:[#allocation2 + $0x320] sm:$0xff]
  %v4263 = vld [vmem:[#allocation2 + $0x328] sm:$0xff]
  %v4264 = vld [vmem:[#allocation2 + $0x330] sm:$0xff]
  %v4265 = vld [vmem:[#allocation2 + $0x338] sm:$0xff]
  %v4266 = vld [vmem:[#allocation2 + $0x340] sm:$0xff]
  %v4267 = vld [vmem:[#allocation2 + $0x348] sm:$0xff]
  %v4268 = vld [vmem:[#allocation2 + $0x350] sm:$0xff]
  %v4269 = vld [vmem:[#allocation2 + $0x358] sm:$0xff]
  %v4270 = vld [vmem:[#allocation2 + $0x360] sm:$0xff]
  %v4271 = vld [vmem:[#allocation2 + $0x368] sm:$0xff]
  %v4272 = vld [vmem:[#allocation2 + $0x370] sm:$0xff]
  %v4273 = vld [vmem:[#allocation2 + $0x378] sm:$0xff]
  %v4274 = vld [vmem:[#allocation2 + $0x380] sm:$0xff]
  %v4275 = vld [vmem:[#allocation2 + $0x388] sm:$0xff]
  %v4276 = vld [vmem:[#allocation2 + $0x390] sm:$0xff]
  %v4277 = vld [vmem:[#allocation2 + $0x398] sm:$0xff]
  %v4278 = vld [vmem:[#allocation2 + $0x3a0] sm:$0xff]
  %v4279 = vld [vmem:[#allocation2 + $0x3a8] sm:$0xff]
  %v4280 = vld [vmem:[#allocation2 + $0x3b0] sm:$0xff]
  %v4281 = vld [vmem:[#allocation2 + $0x3b8] sm:$0xff]
  %vm4282 = vcmask 916480
  %v4284 = vsel %vm4282, %v4159, 0
  %v4287 = vsel %vm4282, %v4161, 0
  %4289 = vmatpush.msra.mxu0 %v4222
  %4290 = vmatpush.msra.mxu0 %v4218
  %4291 = vmatpush.msra.mxu0 %v4214
  %4292 = vmatpush.msra.mxu0 %v4210
  %4293 = vmatpush.msra.mxu0 %v4206
  %4294 = vmatpush.msra.mxu0 %v4202
  %4295 = vmatpush.msra.mxu0 %v4198
  %4296 = vmatpush.msra.mxu0 %v4194
  %4297 = vmatpush.msra.mxu0 %v4190
  %4298 = vmatpush.msra.mxu0 %v4186
  %4299 = vmatpush.msra.mxu0 %v4182
  %4300 = vmatpush.msra.mxu0 %v4178
  %4301 = vmatpush.msra.mxu0 %v4174
  %4302 = vmatpush.msra.mxu0 %v4170
  %4303 = vmatpush.msra.mxu0 %v4166
  %4304 = vmatpush.msra.mxu0 %v4162
  %4305 = vmatmul.f32.gmra.mxu0 %v4158
  %v4306 = vpop.f32.mrf.mxu0
  %v4307 = vadd.f32 0.0, %v4306
  %4308 = vmatmul.f32.gmra.mxu0 %v4160
  %v4309 = vpop.f32.mrf.mxu0
  %v4310 = vadd.f32 0.0, %v4309
  %4311 = vdwg.mxu0
  %4312 = vmatpush.msra.mxu0 0.0
  %4313 = vmatpush.msra.mxu0 0.0
  %4314 = vmatpush.msra.mxu0 %v4278
  %4315 = vmatpush.msra.mxu0 %v4274
  %4316 = vmatpush.msra.mxu0 %v4270
  %4317 = vmatpush.msra.mxu0 %v4266
  %4318 = vmatpush.msra.mxu0 %v4262
  %4319 = vmatpush.msra.mxu0 %v4258
  %4320 = vmatpush.msra.mxu0 %v4254
  %4321 = vmatpush.msra.mxu0 %v4250
  %4322 = vmatpush.msra.mxu0 %v4246
  %4323 = vmatpush.msra.mxu0 %v4242
  %4324 = vmatpush.msra.mxu0 %v4238
  %4325 = vmatpush.msra.mxu0 %v4234
  %4326 = vmatpush.msra.mxu0 %v4230
  %4327 = vmatpush.msra.mxu0 %v4226
  %4328 = vmatmul.f32.gmra.mxu0 %v4284
  %v4329 = vpop.f32.mrf.mxu0
  %v4330 = vadd.f32 %v4307, %v4329
  %4331 = vmatmul.f32.gmra.mxu0 %v4287
  %v4332 = vpop.f32.mrf.mxu0
  %v4333 = vadd.f32 %v4310, %v4332
  %4334 = vdwg.mxu0
  %4335 = vmatpush.msra.mxu0 %v4223
  %4336 = vmatpush.msra.mxu0 %v4219
  %4337 = vmatpush.msra.mxu0 %v4215
  %4338 = vmatpush.msra.mxu0 %v4211
  %4339 = vmatpush.msra.mxu0 %v4207
  %4340 = vmatpush.msra.mxu0 %v4203
  %4341 = vmatpush.msra.mxu0 %v4199
  %4342 = vmatpush.msra.mxu0 %v4195
  %4343 = vmatpush.msra.mxu0 %v4191
  %4344 = vmatpush.msra.mxu0 %v4187
  %4345 = vmatpush.msra.mxu0 %v4183
  %4346 = vmatpush.msra.mxu0 %v4179
  %4347 = vmatpush.msra.mxu0 %v4175
  %4348 = vmatpush.msra.mxu0 %v4171
  %4349 = vmatpush.msra.mxu0 %v4167
  %4350 = vmatpush.msra.mxu0 %v4163
  %4351 = vmatmul.f32.gmra.mxu0 %v4158
  %v4352 = vpop.f32.mrf.mxu0
  %v4353 = vadd.f32 0.0, %v4352
  %4354 = vmatmul.f32.gmra.mxu0 %v4160
  %v4355 = vpop.f32.mrf.mxu0
  %v4356 = vadd.f32 0.0, %v4355
  %4357 = vdwg.mxu0
  %4358 = vmatpush.msra.mxu0 0.0
  %4359 = vmatpush.msra.mxu0 0.0
  %4360 = vmatpush.msra.mxu0 %v4279
  %4361 = vmatpush.msra.mxu0 %v4275
  %4362 = vmatpush.msra.mxu0 %v4271
  %4363 = vmatpush.msra.mxu0 %v4267
  %4364 = vmatpush.msra.mxu0 %v4263
  %4365 = vmatpush.msra.mxu0 %v4259
  %4366 = vmatpush.msra.mxu0 %v4255
  %4367 = vmatpush.msra.mxu0 %v4251
  %4368 = vmatpush.msra.mxu0 %v4247
  %4369 = vmatpush.msra.mxu0 %v4243
  %4370 = vmatpush.msra.mxu0 %v4239
  %4371 = vmatpush.msra.mxu0 %v4235
  %4372 = vmatpush.msra.mxu0 %v4231
  %4373 = vmatpush.msra.mxu0 %v4227
  %4374 = vmatmul.f32.gmra.mxu0 %v4284
  %v4375 = vpop.f32.mrf.mxu0
  %v4376 = vadd.f32 %v4353, %v4375
  %4377 = vmatmul.f32.gmra.mxu0 %v4287
  %v4378 = vpop.f32.mrf.mxu0
  %v4379 = vadd.f32 %v4356, %v4378
  %4380 = vdwg.mxu0
  %4381 = vmatpush.msra.mxu0 %v4224
  %4382 = vmatpush.msra.mxu0 %v4220
  %4383 = vmatpush.msra.mxu0 %v4216
  %4384 = vmatpush.msra.mxu0 %v4212
  %4385 = vmatpush.msra.mxu0 %v4208
  %4386 = vmatpush.msra.mxu0 %v4204
  %4387 = vmatpush.msra.mxu0 %v4200
  %4388 = vmatpush.msra.mxu0 %v4196
  %4389 = vmatpush.msra.mxu0 %v4192
  %4390 = vmatpush.msra.mxu0 %v4188
  %4391 = vmatpush.msra.mxu0 %v4184
  %4392 = vmatpush.msra.mxu0 %v4180
  %4393 = vmatpush.msra.mxu0 %v4176
  %4394 = vmatpush.msra.mxu0 %v4172
  %4395 = vmatpush.msra.mxu0 %v4168
  %4396 = vmatpush.msra.mxu0 %v4164
  %4397 = vmatmul.f32.gmra.mxu0 %v4158
  %v4398 = vpop.f32.mrf.mxu0
  %v4399 = vadd.f32 0.0, %v4398
  %4400 = vmatmul.f32.gmra.mxu0 %v4160
  %v4401 = vpop.f32.mrf.mxu0
  %v4402 = vadd.f32 0.0, %v4401
  %4403 = vdwg.mxu0
  %4404 = vmatpush.msra.mxu0 0.0
  %4405 = vmatpush.msra.mxu0 0.0
  %4406 = vmatpush.msra.mxu0 %v4280
  %4407 = vmatpush.msra.mxu0 %v4276
  %4408 = vmatpush.msra.mxu0 %v4272
  %4409 = vmatpush.msra.mxu0 %v4268
  %4410 = vmatpush.msra.mxu0 %v4264
  %4411 = vmatpush.msra.mxu0 %v4260
  %4412 = vmatpush.msra.mxu0 %v4256
  %4413 = vmatpush.msra.mxu0 %v4252
  %4414 = vmatpush.msra.mxu0 %v4248
  %4415 = vmatpush.msra.mxu0 %v4244
  %4416 = vmatpush.msra.mxu0 %v4240
  %4417 = vmatpush.msra.mxu0 %v4236
  %4418 = vmatpush.msra.mxu0 %v4232
  %4419 = vmatpush.msra.mxu0 %v4228
  %4420 = vmatmul.f32.gmra.mxu0 %v4284
  %v4421 = vpop.f32.mrf.mxu0
  %v4422 = vadd.f32 %v4399, %v4421
  %4423 = vmatmul.f32.gmra.mxu0 %v4287
  %v4424 = vpop.f32.mrf.mxu0
  %v4425 = vadd.f32 %v4402, %v4424
  %4426 = vdwg.mxu0
  %4427 = vmatpush.msra.mxu0 %v4225
  %4428 = vmatpush.msra.mxu0 %v4221
  %4429 = vmatpush.msra.mxu0 %v4217
  %4430 = vmatpush.msra.mxu0 %v4213
  %4431 = vmatpush.msra.mxu0 %v4209
  %4432 = vmatpush.msra.mxu0 %v4205
  %4433 = vmatpush.msra.mxu0 %v4201
  %4434 = vmatpush.msra.mxu0 %v4197
  %4435 = vmatpush.msra.mxu0 %v4193
  %4436 = vmatpush.msra.mxu0 %v4189
  %4437 = vmatpush.msra.mxu0 %v4185
  %4438 = vmatpush.msra.mxu0 %v4181
  %4439 = vmatpush.msra.mxu0 %v4177
  %4440 = vmatpush.msra.mxu0 %v4173
  %4441 = vmatpush.msra.mxu0 %v4169
  %4442 = vmatpush.msra.mxu0 %v4165
  %4443 = vmatmul.f32.gmra.mxu0 %v4158
  %v4444 = vpop.f32.mrf.mxu0
  %v4445 = vadd.f32 0.0, %v4444
  %4446 = vmatmul.f32.gmra.mxu0 %v4160
  %v4447 = vpop.f32.mrf.mxu0
  %v4448 = vadd.f32 0.0, %v4447
  %4449 = vdwg.mxu0
  %4450 = vmatpush.msra.mxu0 0.0
  %4451 = vmatpush.msra.mxu0 0.0
  %4452 = vmatpush.msra.mxu0 %v4281
  %4453 = vmatpush.msra.mxu0 %v4277
  %4454 = vmatpush.msra.mxu0 %v4273
  %4455 = vmatpush.msra.mxu0 %v4269
  %4456 = vmatpush.msra.mxu0 %v4265
  %4457 = vmatpush.msra.mxu0 %v4261
  %4458 = vmatpush.msra.mxu0 %v4257
  %4459 = vmatpush.msra.mxu0 %v4253
  %4460 = vmatpush.msra.mxu0 %v4249
  %4461 = vmatpush.msra.mxu0 %v4245
  %4462 = vmatpush.msra.mxu0 %v4241
  %4463 = vmatpush.msra.mxu0 %v4237
  %4464 = vmatpush.msra.mxu0 %v4233
  %4465 = vmatpush.msra.mxu0 %v4229
  %4466 = vmatmul.f32.gmra.mxu0 %v4284
  %v4467 = vpop.f32.mrf.mxu0
  %v4468 = vadd.f32 %v4445, %v4467
  %4469 = vmatmul.f32.gmra.mxu0 %v4287
  %v4470 = vpop.f32.mrf.mxu0
  %v4471 = vadd.f32 %v4448, %v4470
  %4472 = vdwg.mxu0
  %4473 = vst [vmem:[%s10 + $0x60] sm:$0xff] %v4330
  %4474 = vst [vmem:[%s10 + $0x68] sm:$0xff] %v4376
  %4475 = vst [vmem:[%s10 + $0x70] sm:$0xff] %v4333
  %4476 = vst [vmem:[%s10 + $0x78] sm:$0xff] %v4379
  %4477 = vst [vmem:[%s1827 + $0x60] sm:$0xff] %v4422
  %4478 = vst [vmem:[%s1827 + $0x68] sm:$0xff] %v4468
  %4479 = vst [vmem:[%s1827 + $0x70] sm:$0xff] %v4425
  %4480 = vst [vmem:[%s1827 + $0x78] sm:$0xff] %v4471
  // Predicated region
  $region42: #{darts_cell_forward.1} parent=0 // pred_check
    _
  $region43: #{darts_cell_forward.1} parent=0 // pred_check_branch
    %4482 = sbr.rel (0) target = $region45
  $region44: #{darts_cell_forward.1} parent=0 // pred_region
    _
  $region45: #{darts_cell_forward.1} parent=0 // pred_fallthru
    _
  // Predicated region
  $region46: #{darts_cell_forward.1} parent=0 // pred_check
    _
  $region47: #{darts_cell_forward.1} parent=0 // pred_check_branch
    %4484 = sbr.rel (0) target = $region49
  $region48: #{darts_cell_forward.1} parent=0 // pred_region
    _
  $region49: #{darts_cell_forward.1} parent=0 // pred_fallthru
    _

</llo_original>
